<compile_context>
chip_gen: v7x
topology: tpu7x:2x2x1
jax: 0.10.0
libtpu: 0.0.40
codegen_flags: <defaults>
</compile_context>

<pallas_src>
from functools import partial

import jax
import jax.numpy as jnp
from jax import lax
from jax.experimental import pallas as pl
from jax.experimental.pallas import tpu as pltpu

EPS = 1e-5
LANE = 128


def _round_up(x, m):
    return (x + m - 1) // m * m


# ------------------------------ Pallas kernels ------------------------------ #
def conv_stats_kernel(slab_ref, w_ref, out_ref, sum_ref, sq_ref,
                      *, tap_offsets, th, wo):
    """3x3 conv on one row tile + one-pass BatchNorm partial statistics.

    slab_ref: (R_s, W_s, Cin)  bf16 halo slab (stride folded in by the glue)
    w_ref:    (9, Cin, Cpad)   bf16 per-tap weights, Cout zero-padded to Cpad
    out_ref:  (Mt, Cpad)       f32 conv output rows, Mt = th * wo
    sum_ref:  (8, Cpad)        f32 per-channel sum of this tile (row 0 valid)
    sq_ref:   (8, Cpad)        f32 per-channel sum of squares  (row 0 valid)
    """
    mt = th * wo
    cpad = out_ref.shape[-1]
    # bf16 in HBM/VMEM halves DMA traffic; widen once so the tap slicing /
    # reshape runs on the plain f32 layout path, re-narrow right before the MXU.
    slab = slab_ref[...].astype(jnp.float32)           # (R_s, W_s, Cin)

    acc = jnp.zeros((mt, cpad), jnp.float32)
    # The 9 taps accumulate into a single f32 accumulator (one logical
    # K = 9*Cin contraction).  They are issued as 9 MXU dots rather than one
    # physically fused (Mt, 9*Cin) matmul because assembling that LHS in-kernel
    # needs lane-offset scatter/concat relayouts that cost more than the extra
    # MXU issues at these (memory-bound) channel counts.
    for k, (r0, c0) in enumerate(tap_offsets):          # static 9-iteration loop
        piece = slab[r0:r0 + th, c0:c0 + wo, :]         # unit-stride tap slice
        piece = piece.reshape(mt, piece.shape[-1]).astype(jnp.bfloat16)
        acc = acc + jnp.dot(piece, w_ref[k],
                            preferred_element_type=jnp.float32)
    out_ref[...] = acc

    # One-pass BN partials for this tile: per-channel sum and sum of squares.
    s1 = jnp.sum(acc, axis=0, keepdims=True)            # (1, Cpad)
    s2 = jnp.sum(acc * acc, axis=0, keepdims=True)      # (1, Cpad)
    sum_ref[...] = jnp.broadcast_to(s1, sum_ref.shape)
    sq_ref[...] = jnp.broadcast_to(s2, sq_ref.shape)


def scale_shift_kernel(x_ref, scale_ref, shift_ref, o_ref, *, relu):
    """BN normalize pass: y = x * scale + shift (+ ReLU), lane-dense."""
    y = x_ref[...] * scale_ref[...] + shift_ref[...]
    if relu:
        y = jnp.maximum(y, 0.0)
    o_ref[...] = y


# --------------------------------- glue ------------------------------------- #
def _choose_row_tile(ho, wo, cin, cpad, stride, vmem_budget=8 * 1024 * 1024):
    """Largest divisor of Ho whose per-tile working set fits a VMEM budget.

    Budget is conservative so double-buffered tiles stay well inside v7x's
    64 MiB physical VMEM (and the default scoped limits on v5e/v6e).
    """
    best = None
    for th in range(1, ho + 1):
        if ho % th != 0 or (th * wo) % 8 != 0:
            continue                                    # keep 8-row-aligned blocks
        r_s = (th - 1) * stride + 3
        w_s = (wo - 1) * stride + 3
        work = 2 * (r_s * w_s * cin * 2)                # double-buffered bf16 slab
        work += 2 * (th * wo * cpad * 4)                # double-buffered f32 out tile
        work += 2 * (th * wo * cpad * 4)                # f32 accumulator + widened slab
        work += 9 * cin * cpad * 2                      # bf16 weights
        if work <= vmem_budget:
            best = th
    if best is None:
        raise ValueError("no row tile with (th * wo) % 8 == 0 fits VMEM budget")
    return best


def _build_slabs(xp, th, stride, ho, wo):
    """Build (T, R_s, W_s, Cin) halo slabs; return slabs and static tap offsets.

    For stride 2 the slab rows/cols are phase-reordered ([even; odd]) so that
    every tap becomes a unit-stride slice inside the kernel.  Duplication vs.
    the padded input is only the 1-2 halo rows per tile (not 9x im2col).
    """
    n, hp, wp, cin = xp.shape
    n_rt = ho // th
    slabs = []
    if stride == 1:
        r_s, w_s = th + 2, wo + 2
        for rt in range(n_rt):
            slabs.append(xp[:, rt * th: rt * th + r_s, :w_s, :])
        tap_off = [(kh, kw) for kh in range(3) for kw in range(3)]
    else:  # stride == 2
        xe, xo = xp[:, 0::2], xp[:, 1::2]               # even / odd padded rows
        for rt in range(n_rt):
            re_ = xe[:, rt * th: rt * th + th + 1]      # th+1 even rows
            ro_ = xo[:, rt * th: rt * th + th]          # th   odd rows
            rows = jnp.concatenate([re_, ro_], axis=1)  # (N, 2*th+1, Wp, Cin)
            cols = jnp.concatenate(
                [rows[:, :, 0:2 * wo + 1:2], rows[:, :, 1:2 * wo:2]], axis=2)
            slabs.append(cols)                          # (N, 2*th+1, 2*wo+1, Cin)
        rstart = {0: 0, 1: th + 1, 2: 1}
        cstart = {0: 0, 1: wo + 1, 2: 1}
        tap_off = [(rstart[kh], cstart[kw]) for kh in range(3) for kw in range(3)]
    s = jnp.stack(slabs, axis=1)                        # (N, n_rt, R_s, W_s, Cin)
    return s.reshape(n * n_rt, *s.shape[2:]), tap_off


def conv_bn_layer(y, w_hwio, gamma, beta, *, stride, relu):
    """Conv2d(3x3, pad=1, no bias) + train-mode BatchNorm (+ ReLU)."""
    n, h, w, cin = y.shape
    cout = w_hwio.shape[-1]
    ho = (h + 2 - 3) // stride + 1
    wo = (w + 2 - 3) // stride + 1
    cpad = _round_up(cout, LANE)

    th = _choose_row_tile(ho, wo, cin, cpad, stride)
    n_rt = ho // th
    t = n * n_rt
    mt = th * wo
    m = t * mt

    # spatial zero-pad; matmul operands travel as bf16 (f32 accumulation).
    xp = jnp.pad(y, ((0, 0), (1, 1), (1, 1), (0, 0))).astype(jnp.bfloat16)
    slabs, tap_off = _build_slabs(xp, th, stride, ho, wo)
    r_s, w_s = slabs.shape[1], slabs.shape[2]

    # weights (3,3,Cin,Cout) -> (9, Cin, Cpad) bf16, channels zero-padded to 128.
    w_taps = jnp.zeros((9, cin, cpad), jnp.float32)
    w_taps = w_taps.at[:, :, :cout].set(w_hwio.reshape(9, cin, cout))
    w_taps = w_taps.astype(jnp.bfloat16)

    # ---- pass 1: tiled conv + per-tile channel statistics ---- #
    conv_out, sums, sqs = pl.pallas_call(
        partial(conv_stats_kernel, tap_offsets=tuple(tap_off), th=th, wo=wo),
        grid=(t,),
        in_specs=[
            pl.BlockSpec((None, r_s, w_s, cin), lambda i: (i, 0, 0, 0)),
            pl.BlockSpec((9, cin, cpad), lambda i: (0, 0, 0)),
        ],
        out_specs=(
            pl.BlockSpec((mt, cpad), lambda i: (i, 0)),
            pl.BlockSpec((None, 8, cpad), lambda i: (i, 0, 0)),
            pl.BlockSpec((None, 8, cpad), lambda i: (i, 0, 0)),
        ),
        out_shape=(
            jax.ShapeDtypeStruct((m, cpad), jnp.float32),
            jax.ShapeDtypeStruct((t, 8, cpad), jnp.float32),
            jax.ShapeDtypeStruct((t, 8, cpad), jnp.float32),
        ),
        compiler_params=pltpu.CompilerParams(
            dimension_semantics=("parallel",),
            vmem_limit_bytes=32 * 1024 * 1024,
        ),
    )(slabs, w_taps)

    # ---- fold stats into per-channel scale/shift once per layer ---- #
    total = jnp.sum(sums[:, 0, :], axis=0)              # (Cpad,)
    total_sq = jnp.sum(sqs[:, 0, :], axis=0)
    mean = total / m
    var = jnp.maximum(total_sq / m - mean * mean, 0.0)  # biased (training) var
    gamma_p = jnp.zeros((cpad,), jnp.float32).at[:cout].set(gamma)
    beta_p = jnp.zeros((cpad,), jnp.float32).at[:cout].set(beta)
    scale = gamma_p * lax.rsqrt(var + EPS)
    shift = beta_p - mean * scale

    # ---- pass 2: lane-dense normalize (+ ReLU) ---- #
    y2 = pl.pallas_call(
        partial(scale_shift_kernel, relu=relu),
        grid=(t,),
        in_specs=[
            pl.BlockSpec((mt, cpad), lambda i: (i, 0)),
            pl.BlockSpec((1, cpad), lambda i: (0, 0)),
            pl.BlockSpec((1, cpad), lambda i: (0, 0)),
        ],
        out_specs=pl.BlockSpec((mt, cpad), lambda i: (i, 0)),
        out_shape=jax.ShapeDtypeStruct((m, cpad), jnp.float32),
        compiler_params=pltpu.CompilerParams(dimension_semantics=("parallel",)),
    )(conv_out, scale.reshape(1, cpad), shift.reshape(1, cpad))

    # rows are ordered (n, row_tile, i, j) -> back to NHWC, drop lane padding.
    y2 = y2.reshape(n, n_rt, th, wo, cpad)[..., :cout]
    return y2.reshape(n, ho, wo, cout)


def deep_conv_forward(x_nchw, params):
    """params: list of (w_hwio, gamma, beta, stride, relu)."""
    y = jnp.transpose(x_nchw, (0, 2, 3, 1))             # NCHW -> NHWC
    for (w_hwio, gamma, beta, stride, relu) in params:
        y = conv_bn_layer(y, w_hwio, gamma, beta, stride=stride, relu=relu)
    return jnp.transpose(y, (0, 3, 1, 2))               # NHWC -> NCHW


# --------------------------- parameter initialization ----------------------- #
def init_params(key, in_channel, inter_channel, out_channel):
    specs = [  # (Cin, Cout, stride, relu)
        (in_channel, inter_channel, 2, True),
        (inter_channel, inter_channel, 1, True),
        (inter_channel, out_channel, 1, False),
    ]
    params = []
    for (cin, cout, stride, relu) in specs:
        key, kw, kg = jax.random.split(key, 3)
        std = (2.0 / (cin * 9)) ** 0.5                   # kaiming-normal, fan_in
        w_hwio = std * jax.random.normal(kw, (3, 3, cin, cout), jnp.float32)
        gamma = 1.0 + 0.02 * jax.random.normal(kg, (cout,), jnp.float32)
        beta = jnp.zeros((cout,), jnp.float32)
        params.append((w_hwio, gamma, beta, stride, relu))
    return params
    # TODO(synk): BatchNorm running-stat (momentum) buffer updates are a
    # training-time side effect that does not affect this forward output.


# ------------------------------ pure-JAX reference -------------------------- #
def reference_forward(x_nchw, params):
    """Same precision policy (bf16 conv operands, f32 accumulation/BN)."""
    y = jnp.transpose(x_nchw, (0, 2, 3, 1)).astype(jnp.float32)
    for (w_hwio, gamma, beta, stride, relu) in params:
        z = lax.conv_general_dilated(
            y.astype(jnp.bfloat16), w_hwio.astype(jnp.bfloat16),
            (stride, stride), ((1, 1), (1, 1)),
            dimension_numbers=("NHWC", "HWIO", "NHWC"),
            preferred_element_type=jnp.float32)
        mean = jnp.mean(z, axis=(0, 1, 2))
        var = jnp.var(z, axis=(0, 1, 2))                 # biased, training mode
        y = (z - mean) * (gamma * lax.rsqrt(var + EPS)) + beta
        if relu:
            y = jnp.maximum(y, 0.0)
    return jnp.transpose(y, (0, 3, 1, 2))


# ----------------------------------- main ------------------------------------ #
if __name__ == "__main__":
    key = jax.random.PRNGKey(0)
    kx, kp = jax.random.split(key)

    in_channel, inter_channel, out_channel = 4, 8, 8
    N, H, W = 2, 16, 16

    x = jax.random.normal(kx, (N, in_channel, H, W), jnp.float32)  # NCHW
    params = init_params(kp, in_channel, inter_channel, out_channel)

    fwd = jax.jit(lambda xx: deep_conv_forward(xx, params))
    out = jax.block_until_ready(fwd(x))

    assert out.shape == (N, out_channel, H // 2, W // 2), out.shape
    ref = jax.block_until_ready(reference_forward(x, params))
    max_err = float(jnp.max(jnp.abs(out - ref)))
    assert jnp.allclose(out, ref, atol=2e-3, rtol=2e-3), max_err

    print("KERNEL_OK")
</pallas_src>

<mosaic_0001>
module attributes {stable_mosaic.version = 11 : i64} {
  func.func @conv_stats_kernel(%arg0: i32, %arg1: memref<1x17x17x4xbf16, #tpu.memory_space<vmem>>, %arg2: memref<9x4x128xbf16, #tpu.memory_space<vmem>>, %arg3: memref<64x128xf32, #tpu.memory_space<vmem>>, %arg4: memref<1x8x128xf32, #tpu.memory_space<vmem>>, %arg5: memref<1x8x128xf32, #tpu.memory_space<vmem>>) attributes {dimension_semantics = [#tpu.dimension_semantics<parallel>], iteration_bounds = array<i64: 2>, scalar_prefetch = 0 : i64, scratch_operands = 0 : i64, tpu.core_type = #tpu.core_type<tc>, window_params = [{transform_indices = @transform_0, window_bounds = array<i64: 1, 17, 17, 4>}, {pipeline_mode = #tpu.pipeline_mode<synchronous>, transform_indices = @transform_1, window_bounds = array<i64: 9, 4, 128>}, {transform_indices = @transform_2, window_bounds = array<i64: 64, 128>}, {transform_indices = @transform_3, window_bounds = array<i64: 1, 8, 128>}, {transform_indices = @transform_4, window_bounds = array<i64: 1, 8, 128>}]} {
    %c0 = arith.constant 0 : index
    %c0_0 = arith.constant 0 : index
    %c0_1 = arith.constant 0 : index
    %c0_2 = arith.constant 0 : index
    %0 = vector.load %arg1[%c0, %c0_0, %c0_1, %c0_2] : memref<1x17x17x4xbf16, #tpu.memory_space<vmem>>, vector<1x17x17x4xbf16>
    %1 = vector.shape_cast %0 : vector<1x17x17x4xbf16> to vector<17x17x4xbf16>
    %2 = arith.extf %1 : vector<17x17x4xbf16> to vector<17x17x4xf32>
    %cst = arith.constant 0.000000e+00 : f32
    %3 = vector.broadcast %cst : f32 to vector<64x128xf32>
    %4 = vector.extract_strided_slice %2 {offsets = [0, 0, 0], sizes = [8, 8, 4], strides = [1, 1, 1]} : vector<17x17x4xf32> to vector<8x8x4xf32>
    %5 = vector.shape_cast %4 : vector<8x8x4xf32> to vector<64x4xf32>
    %6 = arith.truncf %5 : vector<64x4xf32> to vector<64x4xbf16>
    %c0_3 = arith.constant 0 : index
    %c0_4 = arith.constant 0 : index
    %c0_5 = arith.constant 0 : index
    %7 = vector.load %arg2[%c0_3, %c0_4, %c0_5] : memref<9x4x128xbf16, #tpu.memory_space<vmem>>, vector<1x4x128xbf16>
    %8 = vector.shape_cast %7 : vector<1x4x128xbf16> to vector<4x128xbf16>
    %cst_6 = arith.constant dense<0.000000e+00> : vector<64x128xf32>
    %9 = tpu.matmul %6, %8, %cst_6 {dimension_numbers = #tpu.dot_dimension_numbers<[1], [0], [0], [1], [0, 0, 1, 1], [], []>} : vector<64x4xbf16>, vector<4x128xbf16>, vector<64x128xf32> -> vector<64x128xf32>
    %10 = arith.addf %3, %9 : vector<64x128xf32>
    %11 = vector.extract_strided_slice %2 {offsets = [0, 9, 0], sizes = [8, 8, 4], strides = [1, 1, 1]} : vector<17x17x4xf32> to vector<8x8x4xf32>
    %12 = vector.shape_cast %11 : vector<8x8x4xf32> to vector<64x4xf32>
    %13 = arith.truncf %12 : vector<64x4xf32> to vector<64x4xbf16>
    %c1 = arith.constant 1 : index
    %c0_7 = arith.constant 0 : index
    %c0_8 = arith.constant 0 : index
    %14 = vector.load %arg2[%c1, %c0_7, %c0_8] : memref<9x4x128xbf16, #tpu.memory_space<vmem>>, vector<1x4x128xbf16>
    %15 = vector.shape_cast %14 : vector<1x4x128xbf16> to vector<4x128xbf16>
    %cst_9 = arith.constant dense<0.000000e+00> : vector<64x128xf32>
    %16 = tpu.matmul %13, %15, %cst_9 {dimension_numbers = #tpu.dot_dimension_numbers<[1], [0], [0], [1], [0, 0, 1, 1], [], []>} : vector<64x4xbf16>, vector<4x128xbf16>, vector<64x128xf32> -> vector<64x128xf32>
    %17 = arith.addf %10, %16 : vector<64x128xf32>
    %18 = vector.extract_strided_slice %2 {offsets = [0, 1, 0], sizes = [8, 8, 4], strides = [1, 1, 1]} : vector<17x17x4xf32> to vector<8x8x4xf32>
    %19 = vector.shape_cast %18 : vector<8x8x4xf32> to vector<64x4xf32>
    %20 = arith.truncf %19 : vector<64x4xf32> to vector<64x4xbf16>
    %c2 = arith.constant 2 : index
    %c0_10 = arith.constant 0 : index
    %c0_11 = arith.constant 0 : index
    %21 = vector.load %arg2[%c2, %c0_10, %c0_11] : memref<9x4x128xbf16, #tpu.memory_space<vmem>>, vector<1x4x128xbf16>
    %22 = vector.shape_cast %21 : vector<1x4x128xbf16> to vector<4x128xbf16>
    %cst_12 = arith.constant dense<0.000000e+00> : vector<64x128xf32>
    %23 = tpu.matmul %20, %22, %cst_12 {dimension_numbers = #tpu.dot_dimension_numbers<[1], [0], [0], [1], [0, 0, 1, 1], [], []>} : vector<64x4xbf16>, vector<4x128xbf16>, vector<64x128xf32> -> vector<64x128xf32>
    %24 = arith.addf %17, %23 : vector<64x128xf32>
    %25 = vector.extract_strided_slice %2 {offsets = [9, 0, 0], sizes = [8, 8, 4], strides = [1, 1, 1]} : vector<17x17x4xf32> to vector<8x8x4xf32>
    %26 = vector.shape_cast %25 : vector<8x8x4xf32> to vector<64x4xf32>
    %27 = arith.truncf %26 : vector<64x4xf32> to vector<64x4xbf16>
    %c3 = arith.constant 3 : index
    %c0_13 = arith.constant 0 : index
    %c0_14 = arith.constant 0 : index
    %28 = vector.load %arg2[%c3, %c0_13, %c0_14] : memref<9x4x128xbf16, #tpu.memory_space<vmem>>, vector<1x4x128xbf16>
    %29 = vector.shape_cast %28 : vector<1x4x128xbf16> to vector<4x128xbf16>
    %cst_15 = arith.constant dense<0.000000e+00> : vector<64x128xf32>
    %30 = tpu.matmul %27, %29, %cst_15 {dimension_numbers = #tpu.dot_dimension_numbers<[1], [0], [0], [1], [0, 0, 1, 1], [], []>} : vector<64x4xbf16>, vector<4x128xbf16>, vector<64x128xf32> -> vector<64x128xf32>
    %31 = arith.addf %24, %30 : vector<64x128xf32>
    %32 = vector.extract_strided_slice %2 {offsets = [9, 9, 0], sizes = [8, 8, 4], strides = [1, 1, 1]} : vector<17x17x4xf32> to vector<8x8x4xf32>
    %33 = vector.shape_cast %32 : vector<8x8x4xf32> to vector<64x4xf32>
    %34 = arith.truncf %33 : vector<64x4xf32> to vector<64x4xbf16>
    %c4 = arith.constant 4 : index
    %c0_16 = arith.constant 0 : index
    %c0_17 = arith.constant 0 : index
    %35 = vector.load %arg2[%c4, %c0_16, %c0_17] : memref<9x4x128xbf16, #tpu.memory_space<vmem>>, vector<1x4x128xbf16>
    %36 = vector.shape_cast %35 : vector<1x4x128xbf16> to vector<4x128xbf16>
    %cst_18 = arith.constant dense<0.000000e+00> : vector<64x128xf32>
    %37 = tpu.matmul %34, %36, %cst_18 {dimension_numbers = #tpu.dot_dimension_numbers<[1], [0], [0], [1], [0, 0, 1, 1], [], []>} : vector<64x4xbf16>, vector<4x128xbf16>, vector<64x128xf32> -> vector<64x128xf32>
    %38 = arith.addf %31, %37 : vector<64x128xf32>
    %39 = vector.extract_strided_slice %2 {offsets = [9, 1, 0], sizes = [8, 8, 4], strides = [1, 1, 1]} : vector<17x17x4xf32> to vector<8x8x4xf32>
    %40 = vector.shape_cast %39 : vector<8x8x4xf32> to vector<64x4xf32>
    %41 = arith.truncf %40 : vector<64x4xf32> to vector<64x4xbf16>
    %c5 = arith.constant 5 : index
    %c0_19 = arith.constant 0 : index
    %c0_20 = arith.constant 0 : index
    %42 = vector.load %arg2[%c5, %c0_19, %c0_20] : memref<9x4x128xbf16, #tpu.memory_space<vmem>>, vector<1x4x128xbf16>
    %43 = vector.shape_cast %42 : vector<1x4x128xbf16> to vector<4x128xbf16>
    %cst_21 = arith.constant dense<0.000000e+00> : vector<64x128xf32>
    %44 = tpu.matmul %41, %43, %cst_21 {dimension_numbers = #tpu.dot_dimension_numbers<[1], [0], [0], [1], [0, 0, 1, 1], [], []>} : vector<64x4xbf16>, vector<4x128xbf16>, vector<64x128xf32> -> vector<64x128xf32>
    %45 = arith.addf %38, %44 : vector<64x128xf32>
    %46 = vector.extract_strided_slice %2 {offsets = [1, 0, 0], sizes = [8, 8, 4], strides = [1, 1, 1]} : vector<17x17x4xf32> to vector<8x8x4xf32>
    %47 = vector.shape_cast %46 : vector<8x8x4xf32> to vector<64x4xf32>
    %48 = arith.truncf %47 : vector<64x4xf32> to vector<64x4xbf16>
    %c6 = arith.constant 6 : index
    %c0_22 = arith.constant 0 : index
    %c0_23 = arith.constant 0 : index
    %49 = vector.load %arg2[%c6, %c0_22, %c0_23] : memref<9x4x128xbf16, #tpu.memory_space<vmem>>, vector<1x4x128xbf16>
    %50 = vector.shape_cast %49 : vector<1x4x128xbf16> to vector<4x128xbf16>
    %cst_24 = arith.constant dense<0.000000e+00> : vector<64x128xf32>
    %51 = tpu.matmul %48, %50, %cst_24 {dimension_numbers = #tpu.dot_dimension_numbers<[1], [0], [0], [1], [0, 0, 1, 1], [], []>} : vector<64x4xbf16>, vector<4x128xbf16>, vector<64x128xf32> -> vector<64x128xf32>
    %52 = arith.addf %45, %51 : vector<64x128xf32>
    %53 = vector.extract_strided_slice %2 {offsets = [1, 9, 0], sizes = [8, 8, 4], strides = [1, 1, 1]} : vector<17x17x4xf32> to vector<8x8x4xf32>
    %54 = vector.shape_cast %53 : vector<8x8x4xf32> to vector<64x4xf32>
    %55 = arith.truncf %54 : vector<64x4xf32> to vector<64x4xbf16>
    %c7 = arith.constant 7 : index
    %c0_25 = arith.constant 0 : index
    %c0_26 = arith.constant 0 : index
    %56 = vector.load %arg2[%c7, %c0_25, %c0_26] : memref<9x4x128xbf16, #tpu.memory_space<vmem>>, vector<1x4x128xbf16>
    %57 = vector.shape_cast %56 : vector<1x4x128xbf16> to vector<4x128xbf16>
    %cst_27 = arith.constant dense<0.000000e+00> : vector<64x128xf32>
    %58 = tpu.matmul %55, %57, %cst_27 {dimension_numbers = #tpu.dot_dimension_numbers<[1], [0], [0], [1], [0, 0, 1, 1], [], []>} : vector<64x4xbf16>, vector<4x128xbf16>, vector<64x128xf32> -> vector<64x128xf32>
    %59 = arith.addf %52, %58 : vector<64x128xf32>
    %60 = vector.extract_strided_slice %2 {offsets = [1, 1, 0], sizes = [8, 8, 4], strides = [1, 1, 1]} : vector<17x17x4xf32> to vector<8x8x4xf32>
    %61 = vector.shape_cast %60 : vector<8x8x4xf32> to vector<64x4xf32>
    %62 = arith.truncf %61 : vector<64x4xf32> to vector<64x4xbf16>
    %c8 = arith.constant 8 : index
    %c0_28 = arith.constant 0 : index
    %c0_29 = arith.constant 0 : index
    %63 = vector.load %arg2[%c8, %c0_28, %c0_29] : memref<9x4x128xbf16, #tpu.memory_space<vmem>>, vector<1x4x128xbf16>
    %64 = vector.shape_cast %63 : vector<1x4x128xbf16> to vector<4x128xbf16>
    %cst_30 = arith.constant dense<0.000000e+00> : vector<64x128xf32>
    %65 = tpu.matmul %62, %64, %cst_30 {dimension_numbers = #tpu.dot_dimension_numbers<[1], [0], [0], [1], [0, 0, 1, 1], [], []>} : vector<64x4xbf16>, vector<4x128xbf16>, vector<64x128xf32> -> vector<64x128xf32>
    %66 = arith.addf %59, %65 : vector<64x128xf32>
    %c0_31 = arith.constant 0 : index
    %c0_32 = arith.constant 0 : index
    %67 = vector.load %arg3[%c0_31, %c0_32] : memref<64x128xf32, #tpu.memory_space<vmem>>, vector<64x128xf32>
    tpu.vector_store %arg3[%c0_31, %c0_32], %66 {strides = array<i32>} : memref<64x128xf32, #tpu.memory_space<vmem>>, vector<64x128xf32>,
    %cst_33 = arith.constant dense<0.000000e+00> : vector<128xf32>
    %68 = vector.multi_reduction <add>, %66, %cst_33 [0] : vector<64x128xf32> to vector<128xf32>
    %69 = vector.shape_cast %68 : vector<128xf32> to vector<1x128xf32>
    %70 = arith.mulf %66, %66 : vector<64x128xf32>
    %cst_34 = arith.constant dense<0.000000e+00> : vector<128xf32>
    %71 = vector.multi_reduction <add>, %70, %cst_34 [0] : vector<64x128xf32> to vector<128xf32>
    %72 = vector.shape_cast %71 : vector<128xf32> to vector<1x128xf32>
    %73 = vector.shape_cast %69 : vector<1x128xf32> to vector<1x128xf32>
    %74 = vector.broadcast %73 : vector<1x128xf32> to vector<8x128xf32>
    %c0_35 = arith.constant 0 : index
    %c0_36 = arith.constant 0 : index
    %c0_37 = arith.constant 0 : index
    %75 = vector.load %arg4[%c0_35, %c0_36, %c0_37] : memref<1x8x128xf32, #tpu.memory_space<vmem>>, vector<1x8x128xf32>
    %76 = vector.shape_cast %75 : vector<1x8x128xf32> to vector<8x128xf32>
    %77 = vector.shape_cast %74 : vector<8x128xf32> to vector<1x8x128xf32>
    tpu.vector_store %arg4[%c0_35, %c0_36, %c0_37], %77 {strides = array<i32>} : memref<1x8x128xf32, #tpu.memory_space<vmem>>, vector<1x8x128xf32>,
    %78 = vector.shape_cast %72 : vector<1x128xf32> to vector<1x128xf32>
    %79 = vector.broadcast %78 : vector<1x128xf32> to vector<8x128xf32>
    %c0_38 = arith.constant 0 : index
    %c0_39 = arith.constant 0 : index
    %c0_40 = arith.constant 0 : index
    %80 = vector.load %arg5[%c0_38, %c0_39, %c0_40] : memref<1x8x128xf32, #tpu.memory_space<vmem>>, vector<1x8x128xf32>
    %81 = vector.shape_cast %80 : vector<1x8x128xf32> to vector<8x128xf32>
    %82 = vector.shape_cast %79 : vector<8x128xf32> to vector<1x8x128xf32>
    tpu.vector_store %arg5[%c0_38, %c0_39, %c0_40], %82 {strides = array<i32>} : memref<1x8x128xf32, #tpu.memory_space<vmem>>, vector<1x8x128xf32>,
    return
  }
  func.func @transform_0(%arg0: i32) -> (i32, i32, i32, i32) {
    %c0_i32 = arith.constant 0 : i32
    %c0_i32_0 = arith.constant 0 : i32
    %c0_i32_1 = arith.constant 0 : i32
    %c0_i32_2 = arith.constant 0 : i32
    return %arg0, %c0_i32, %c0_i32_0, %c0_i32_1 : i32, i32, i32, i32
  }
  func.func @transform_1(%arg0: i32) -> (i32, i32, i32) {
    %c0_i32 = arith.constant 0 : i32
    %c0_i32_0 = arith.constant 0 : i32
    %c0_i32_1 = arith.constant 0 : i32
    %c0_i32_2 = arith.constant 0 : i32
    return %c0_i32, %c0_i32_0, %c0_i32_1 : i32, i32, i32
  }
  func.func @transform_2(%arg0: i32) -> (i32, i32) {
    %c0_i32 = arith.constant 0 : i32
    %c0_i32_0 = arith.constant 0 : i32
    return %arg0, %c0_i32 : i32, i32
  }
  func.func @transform_3(%arg0: i32) -> (i32, i32, i32) {
    %c0_i32 = arith.constant 0 : i32
    %c0_i32_0 = arith.constant 0 : i32
    %c0_i32_1 = arith.constant 0 : i32
    return %arg0, %c0_i32, %c0_i32_0 : i32, i32, i32
  }
  func.func @transform_4(%arg0: i32) -> (i32, i32, i32) {
    %c0_i32 = arith.constant 0 : i32
    %c0_i32_0 = arith.constant 0 : i32
    %c0_i32_1 = arith.constant 0 : i32
    return %arg0, %c0_i32, %c0_i32_0 : i32, i32, i32
  }
}

module attributes {stable_mosaic.version = 11 : i64} {
  func.func @scale_shift_kernel(%arg0: i32, %arg1: memref<64x128xf32, #tpu.memory_space<vmem>>, %arg2: memref<1x128xf32, #tpu.memory_space<vmem>>, %arg3: memref<1x128xf32, #tpu.memory_space<vmem>>, %arg4: memref<64x128xf32, #tpu.memory_space<vmem>>) attributes {dimension_semantics = [#tpu.dimension_semantics<parallel>], iteration_bounds = array<i64: 2>, scalar_prefetch = 0 : i64, scratch_operands = 0 : i64, tpu.core_type = #tpu.core_type<tc>, window_params = [{transform_indices = @transform_0, window_bounds = array<i64: 64, 128>}, {pipeline_mode = #tpu.pipeline_mode<synchronous>, transform_indices = @transform_1, window_bounds = array<i64: 1, 128>}, {pipeline_mode = #tpu.pipeline_mode<synchronous>, transform_indices = @transform_2, window_bounds = array<i64: 1, 128>}, {transform_indices = @transform_3, window_bounds = array<i64: 64, 128>}]} {
    %c0 = arith.constant 0 : index
    %c0_0 = arith.constant 0 : index
    %0 = vector.load %arg1[%c0, %c0_0] : memref<64x128xf32, #tpu.memory_space<vmem>>, vector<64x128xf32>
    %c0_1 = arith.constant 0 : index
    %c0_2 = arith.constant 0 : index
    %1 = vector.load %arg2[%c0_1, %c0_2] : memref<1x128xf32, #tpu.memory_space<vmem>>, vector<1x128xf32>
    %2 = vector.broadcast %1 : vector<1x128xf32> to vector<64x128xf32>
    %3 = arith.mulf %0, %2 : vector<64x128xf32>
    %c0_3 = arith.constant 0 : index
    %c0_4 = arith.constant 0 : index
    %4 = vector.load %arg3[%c0_3, %c0_4] : memref<1x128xf32, #tpu.memory_space<vmem>>, vector<1x128xf32>
    %5 = vector.broadcast %4 : vector<1x128xf32> to vector<64x128xf32>
    %6 = arith.addf %3, %5 : vector<64x128xf32>
    %cst = arith.constant 0.000000e+00 : f32
    %7 = vector.broadcast %cst : f32 to vector<64x128xf32>
    %8 = arith.maximumf %6, %7 : vector<64x128xf32>
    %c0_5 = arith.constant 0 : index
    %c0_6 = arith.constant 0 : index
    %9 = vector.load %arg4[%c0_5, %c0_6] : memref<64x128xf32, #tpu.memory_space<vmem>>, vector<64x128xf32>
    tpu.vector_store %arg4[%c0_5, %c0_6], %8 {strides = array<i32>} : memref<64x128xf32, #tpu.memory_space<vmem>>, vector<64x128xf32>,
    return
  }
  func.func @transform_0(%arg0: i32) -> (i32, i32) {
    %c0_i32 = arith.constant 0 : i32
    %c0_i32_0 = arith.constant 0 : i32
    return %arg0, %c0_i32 : i32, i32
  }
  func.func @transform_1(%arg0: i32) -> (i32, i32) {
    %c0_i32 = arith.constant 0 : i32
    %c0_i32_0 = arith.constant 0 : i32
    %c0_i32_1 = arith.constant 0 : i32
    return %c0_i32, %c0_i32_0 : i32, i32
  }
  func.func @transform_2(%arg0: i32) -> (i32, i32) {
    %c0_i32 = arith.constant 0 : i32
    %c0_i32_0 = arith.constant 0 : i32
    %c0_i32_1 = arith.constant 0 : i32
    return %c0_i32, %c0_i32_0 : i32, i32
  }
  func.func @transform_3(%arg0: i32) -> (i32, i32) {
    %c0_i32 = arith.constant 0 : i32
    %c0_i32_0 = arith.constant 0 : i32
    return %arg0, %c0_i32 : i32, i32
  }
}

module attributes {stable_mosaic.version = 11 : i64} {
  func.func @conv_stats_kernel(%arg0: i32, %arg1: memref<1x10x10x8xbf16, #tpu.memory_space<vmem>>, %arg2: memref<9x8x128xbf16, #tpu.memory_space<vmem>>, %arg3: memref<64x128xf32, #tpu.memory_space<vmem>>, %arg4: memref<1x8x128xf32, #tpu.memory_space<vmem>>, %arg5: memref<1x8x128xf32, #tpu.memory_space<vmem>>) attributes {dimension_semantics = [#tpu.dimension_semantics<parallel>], iteration_bounds = array<i64: 2>, scalar_prefetch = 0 : i64, scratch_operands = 0 : i64, tpu.core_type = #tpu.core_type<tc>, window_params = [{transform_indices = @transform_0, window_bounds = array<i64: 1, 10, 10, 8>}, {pipeline_mode = #tpu.pipeline_mode<synchronous>, transform_indices = @transform_1, window_bounds = array<i64: 9, 8, 128>}, {transform_indices = @transform_2, window_bounds = array<i64: 64, 128>}, {transform_indices = @transform_3, window_bounds = array<i64: 1, 8, 128>}, {transform_indices = @transform_4, window_bounds = array<i64: 1, 8, 128>}]} {
    %c0 = arith.constant 0 : index
    %c0_0 = arith.constant 0 : index
    %c0_1 = arith.constant 0 : index
    %c0_2 = arith.constant 0 : index
    %0 = vector.load %arg1[%c0, %c0_0, %c0_1, %c0_2] : memref<1x10x10x8xbf16, #tpu.memory_space<vmem>>, vector<1x10x10x8xbf16>
    %1 = vector.shape_cast %0 : vector<1x10x10x8xbf16> to vector<10x10x8xbf16>
    %2 = arith.extf %1 : vector<10x10x8xbf16> to vector<10x10x8xf32>
    %cst = arith.constant 0.000000e+00 : f32
    %3 = vector.broadcast %cst : f32 to vector<64x128xf32>
    %4 = vector.extract_strided_slice %2 {offsets = [0, 0, 0], sizes = [8, 8, 8], strides = [1, 1, 1]} : vector<10x10x8xf32> to vector<8x8x8xf32>
    %5 = vector.shape_cast %4 : vector<8x8x8xf32> to vector<64x8xf32>
    %6 = arith.truncf %5 : vector<64x8xf32> to vector<64x8xbf16>
    %c0_3 = arith.constant 0 : index
    %c0_4 = arith.constant 0 : index
    %c0_5 = arith.constant 0 : index
    %7 = vector.load %arg2[%c0_3, %c0_4, %c0_5] : memref<9x8x128xbf16, #tpu.memory_space<vmem>>, vector<1x8x128xbf16>
    %8 = vector.shape_cast %7 : vector<1x8x128xbf16> to vector<8x128xbf16>
    %cst_6 = arith.constant dense<0.000000e+00> : vector<64x128xf32>
    %9 = tpu.matmul %6, %8, %cst_6 {dimension_numbers = #tpu.dot_dimension_numbers<[1], [0], [0], [1], [0, 0, 1, 1], [], []>} : vector<64x8xbf16>, vector<8x128xbf16>, vector<64x128xf32> -> vector<64x128xf32>
    %10 = arith.addf %3, %9 : vector<64x128xf32>
    %11 = vector.extract_strided_slice %2 {offsets = [0, 1, 0], sizes = [8, 8, 8], strides = [1, 1, 1]} : vector<10x10x8xf32> to vector<8x8x8xf32>
    %12 = vector.shape_cast %11 : vector<8x8x8xf32> to vector<64x8xf32>
    %13 = arith.truncf %12 : vector<64x8xf32> to vector<64x8xbf16>
    %c1 = arith.constant 1 : index
    %c0_7 = arith.constant 0 : index
    %c0_8 = arith.constant 0 : index
    %14 = vector.load %arg2[%c1, %c0_7, %c0_8] : memref<9x8x128xbf16, #tpu.memory_space<vmem>>, vector<1x8x128xbf16>
    %15 = vector.shape_cast %14 : vector<1x8x128xbf16> to vector<8x128xbf16>
    %cst_9 = arith.constant dense<0.000000e+00> : vector<64x128xf32>
    %16 = tpu.matmul %13, %15, %cst_9 {dimension_numbers = #tpu.dot_dimension_numbers<[1], [0], [0], [1], [0, 0, 1, 1], [], []>} : vector<64x8xbf16>, vector<8x128xbf16>, vector<64x128xf32> -> vector<64x128xf32>
    %17 = arith.addf %10, %16 : vector<64x128xf32>
    %18 = vector.extract_strided_slice %2 {offsets = [0, 2, 0], sizes = [8, 8, 8], strides = [1, 1, 1]} : vector<10x10x8xf32> to vector<8x8x8xf32>
    %19 = vector.shape_cast %18 : vector<8x8x8xf32> to vector<64x8xf32>
    %20 = arith.truncf %19 : vector<64x8xf32> to vector<64x8xbf16>
    %c2 = arith.constant 2 : index
    %c0_10 = arith.constant 0 : index
    %c0_11 = arith.constant 0 : index
    %21 = vector.load %arg2[%c2, %c0_10, %c0_11] : memref<9x8x128xbf16, #tpu.memory_space<vmem>>, vector<1x8x128xbf16>
    %22 = vector.shape_cast %21 : vector<1x8x128xbf16> to vector<8x128xbf16>
    %cst_12 = arith.constant dense<0.000000e+00> : vector<64x128xf32>
    %23 = tpu.matmul %20, %22, %cst_12 {dimension_numbers = #tpu.dot_dimension_numbers<[1], [0], [0], [1], [0, 0, 1, 1], [], []>} : vector<64x8xbf16>, vector<8x128xbf16>, vector<64x128xf32> -> vector<64x128xf32>
    %24 = arith.addf %17, %23 : vector<64x128xf32>
    %25 = vector.extract_strided_slice %2 {offsets = [1, 0, 0], sizes = [8, 8, 8], strides = [1, 1, 1]} : vector<10x10x8xf32> to vector<8x8x8xf32>
    %26 = vector.shape_cast %25 : vector<8x8x8xf32> to vector<64x8xf32>
    %27 = arith.truncf %26 : vector<64x8xf32> to vector<64x8xbf16>
    %c3 = arith.constant 3 : index
    %c0_13 = arith.constant 0 : index
    %c0_14 = arith.constant 0 : index
    %28 = vector.load %arg2[%c3, %c0_13, %c0_14] : memref<9x8x128xbf16, #tpu.memory_space<vmem>>, vector<1x8x128xbf16>
    %29 = vector.shape_cast %28 : vector<1x8x128xbf16> to vector<8x128xbf16>
    %cst_15 = arith.constant dense<0.000000e+00> : vector<64x128xf32>
    %30 = tpu.matmul %27, %29, %cst_15 {dimension_numbers = #tpu.dot_dimension_numbers<[1], [0], [0], [1], [0, 0, 1, 1], [], []>} : vector<64x8xbf16>, vector<8x128xbf16>, vector<64x128xf32> -> vector<64x128xf32>
    %31 = arith.addf %24, %30 : vector<64x128xf32>
    %32 = vector.extract_strided_slice %2 {offsets = [1, 1, 0], sizes = [8, 8, 8], strides = [1, 1, 1]} : vector<10x10x8xf32> to vector<8x8x8xf32>
    %33 = vector.shape_cast %32 : vector<8x8x8xf32> to vector<64x8xf32>
    %34 = arith.truncf %33 : vector<64x8xf32> to vector<64x8xbf16>
    %c4 = arith.constant 4 : index
    %c0_16 = arith.constant 0 : index
    %c0_17 = arith.constant 0 : index
    %35 = vector.load %arg2[%c4, %c0_16, %c0_17] : memref<9x8x128xbf16, #tpu.memory_space<vmem>>, vector<1x8x128xbf16>
    %36 = vector.shape_cast %35 : vector<1x8x128xbf16> to vector<8x128xbf16>
    %cst_18 = arith.constant dense<0.000000e+00> : vector<64x128xf32>
    %37 = tpu.matmul %34, %36, %cst_18 {dimension_numbers = #tpu.dot_dimension_numbers<[1], [0], [0], [1], [0, 0, 1, 1], [], []>} : vector<64x8xbf16>, vector<8x128xbf16>, vector<64x128xf32> -> vector<64x128xf32>
    %38 = arith.addf %31, %37 : vector<64x128xf32>
    %39 = vector.extract_strided_slice %2 {offsets = [1, 2, 0], sizes = [8, 8, 8], strides = [1, 1, 1]} : vector<10x10x8xf32> to vector<8x8x8xf32>
    %40 = vector.shape_cast %39 : vector<8x8x8xf32> to vector<64x8xf32>
    %41 = arith.truncf %40 : vector<64x8xf32> to vector<64x8xbf16>
    %c5 = arith.constant 5 : index
    %c0_19 = arith.constant 0 : index
    %c0_20 = arith.constant 0 : index
    %42 = vector.load %arg2[%c5, %c0_19, %c0_20] : memref<9x8x128xbf16, #tpu.memory_space<vmem>>, vector<1x8x128xbf16>
    %43 = vector.shape_cast %42 : vector<1x8x128xbf16> to vector<8x128xbf16>
    %cst_21 = arith.constant dense<0.000000e+00> : vector<64x128xf32>
    %44 = tpu.matmul %41, %43, %cst_21 {dimension_numbers = #tpu.dot_dimension_numbers<[1], [0], [0], [1], [0, 0, 1, 1], [], []>} : vector<64x8xbf16>, vector<8x128xbf16>, vector<64x128xf32> -> vector<64x128xf32>
    %45 = arith.addf %38, %44 : vector<64x128xf32>
    %46 = vector.extract_strided_slice %2 {offsets = [2, 0, 0], sizes = [8, 8, 8], strides = [1, 1, 1]} : vector<10x10x8xf32> to vector<8x8x8xf32>
    %47 = vector.shape_cast %46 : vector<8x8x8xf32> to vector<64x8xf32>
    %48 = arith.truncf %47 : vector<64x8xf32> to vector<64x8xbf16>
    %c6 = arith.constant 6 : index
    %c0_22 = arith.constant 0 : index
    %c0_23 = arith.constant 0 : index
    %49 = vector.load %arg2[%c6, %c0_22, %c0_23] : memref<9x8x128xbf16, #tpu.memory_space<vmem>>, vector<1x8x128xbf16>
    %50 = vector.shape_cast %49 : vector<1x8x128xbf16> to vector<8x128xbf16>
    %cst_24 = arith.constant dense<0.000000e+00> : vector<64x128xf32>
    %51 = tpu.matmul %48, %50, %cst_24 {dimension_numbers = #tpu.dot_dimension_numbers<[1], [0], [0], [1], [0, 0, 1, 1], [], []>} : vector<64x8xbf16>, vector<8x128xbf16>, vector<64x128xf32> -> vector<64x128xf32>
    %52 = arith.addf %45, %51 : vector<64x128xf32>
    %53 = vector.extract_strided_slice %2 {offsets = [2, 1, 0], sizes = [8, 8, 8], strides = [1, 1, 1]} : vector<10x10x8xf32> to vector<8x8x8xf32>
    %54 = vector.shape_cast %53 : vector<8x8x8xf32> to vector<64x8xf32>
    %55 = arith.truncf %54 : vector<64x8xf32> to vector<64x8xbf16>
    %c7 = arith.constant 7 : index
    %c0_25 = arith.constant 0 : index
    %c0_26 = arith.constant 0 : index
    %56 = vector.load %arg2[%c7, %c0_25, %c0_26] : memref<9x8x128xbf16, #tpu.memory_space<vmem>>, vector<1x8x128xbf16>
    %57 = vector.shape_cast %56 : vector<1x8x128xbf16> to vector<8x128xbf16>
    %cst_27 = arith.constant dense<0.000000e+00> : vector<64x128xf32>
    %58 = tpu.matmul %55, %57, %cst_27 {dimension_numbers = #tpu.dot_dimension_numbers<[1], [0], [0], [1], [0, 0, 1, 1], [], []>} : vector<64x8xbf16>, vector<8x128xbf16>, vector<64x128xf32> -> vector<64x128xf32>
    %59 = arith.addf %52, %58 : vector<64x128xf32>
    %60 = vector.extract_strided_slice %2 {offsets = [2, 2, 0], sizes = [8, 8, 8], strides = [1, 1, 1]} : vector<10x10x8xf32> to vector<8x8x8xf32>
    %61 = vector.shape_cast %60 : vector<8x8x8xf32> to vector<64x8xf32>
    %62 = arith.truncf %61 : vector<64x8xf32> to vector<64x8xbf16>
    %c8 = arith.constant 8 : index
    %c0_28 = arith.constant 0 : index
    %c0_29 = arith.constant 0 : index
    %63 = vector.load %arg2[%c8, %c0_28, %c0_29] : memref<9x8x128xbf16, #tpu.memory_space<vmem>>, vector<1x8x128xbf16>
    %64 = vector.shape_cast %63 : vector<1x8x128xbf16> to vector<8x128xbf16>
    %cst_30 = arith.constant dense<0.000000e+00> : vector<64x128xf32>
    %65 = tpu.matmul %62, %64, %cst_30 {dimension_numbers = #tpu.dot_dimension_numbers<[1], [0], [0], [1], [0, 0, 1, 1], [], []>} : vector<64x8xbf16>, vector<8x128xbf16>, vector<64x128xf32> -> vector<64x128xf32>
    %66 = arith.addf %59, %65 : vector<64x128xf32>
    %c0_31 = arith.constant 0 : index
    %c0_32 = arith.constant 0 : index
    %67 = vector.load %arg3[%c0_31, %c0_32] : memref<64x128xf32, #tpu.memory_space<vmem>>, vector<64x128xf32>
    tpu.vector_store %arg3[%c0_31, %c0_32], %66 {strides = array<i32>} : memref<64x128xf32, #tpu.memory_space<vmem>>, vector<64x128xf32>,
    %cst_33 = arith.constant dense<0.000000e+00> : vector<128xf32>
    %68 = vector.multi_reduction <add>, %66, %cst_33 [0] : vector<64x128xf32> to vector<128xf32>
    %69 = vector.shape_cast %68 : vector<128xf32> to vector<1x128xf32>
    %70 = arith.mulf %66, %66 : vector<64x128xf32>
    %cst_34 = arith.constant dense<0.000000e+00> : vector<128xf32>
    %71 = vector.multi_reduction <add>, %70, %cst_34 [0] : vector<64x128xf32> to vector<128xf32>
    %72 = vector.shape_cast %71 : vector<128xf32> to vector<1x128xf32>
    %73 = vector.shape_cast %69 : vector<1x128xf32> to vector<1x128xf32>
    %74 = vector.broadcast %73 : vector<1x128xf32> to vector<8x128xf32>
    %c0_35 = arith.constant 0 : index
    %c0_36 = arith.constant 0 : index
    %c0_37 = arith.constant 0 : index
    %75 = vector.load %arg4[%c0_35, %c0_36, %c0_37] : memref<1x8x128xf32, #tpu.memory_space<vmem>>, vector<1x8x128xf32>
    %76 = vector.shape_cast %75 : vector<1x8x128xf32> to vector<8x128xf32>
    %77 = vector.shape_cast %74 : vector<8x128xf32> to vector<1x8x128xf32>
    tpu.vector_store %arg4[%c0_35, %c0_36, %c0_37], %77 {strides = array<i32>} : memref<1x8x128xf32, #tpu.memory_space<vmem>>, vector<1x8x128xf32>,
    %78 = vector.shape_cast %72 : vector<1x128xf32> to vector<1x128xf32>
    %79 = vector.broadcast %78 : vector<1x128xf32> to vector<8x128xf32>
    %c0_38 = arith.constant 0 : index
    %c0_39 = arith.constant 0 : index
    %c0_40 = arith.constant 0 : index
    %80 = vector.load %arg5[%c0_38, %c0_39, %c0_40] : memref<1x8x128xf32, #tpu.memory_space<vmem>>, vector<1x8x128xf32>
    %81 = vector.shape_cast %80 : vector<1x8x128xf32> to vector<8x128xf32>
    %82 = vector.shape_cast %79 : vector<8x128xf32> to vector<1x8x128xf32>
    tpu.vector_store %arg5[%c0_38, %c0_39, %c0_40], %82 {strides = array<i32>} : memref<1x8x128xf32, #tpu.memory_space<vmem>>, vector<1x8x128xf32>,
    return
  }
  func.func @transform_0(%arg0: i32) -> (i32, i32, i32, i32) {
    %c0_i32 = arith.constant 0 : i32
    %c0_i32_0 = arith.constant 0 : i32
    %c0_i32_1 = arith.constant 0 : i32
    %c0_i32_2 = arith.constant 0 : i32
    return %arg0, %c0_i32, %c0_i32_0, %c0_i32_1 : i32, i32, i32, i32
  }
  func.func @transform_1(%arg0: i32) -> (i32, i32, i32) {
    %c0_i32 = arith.constant 0 : i32
    %c0_i32_0 = arith.constant 0 : i32
    %c0_i32_1 = arith.constant 0 : i32
    %c0_i32_2 = arith.constant 0 : i32
    return %c0_i32, %c0_i32_0, %c0_i32_1 : i32, i32, i32
  }
  func.func @transform_2(%arg0: i32) -> (i32, i32) {
    %c0_i32 = arith.constant 0 : i32
    %c0_i32_0 = arith.constant 0 : i32
    return %arg0, %c0_i32 : i32, i32
  }
  func.func @transform_3(%arg0: i32) -> (i32, i32, i32) {
    %c0_i32 = arith.constant 0 : i32
    %c0_i32_0 = arith.constant 0 : i32
    %c0_i32_1 = arith.constant 0 : i32
    return %arg0, %c0_i32, %c0_i32_0 : i32, i32, i32
  }
  func.func @transform_4(%arg0: i32) -> (i32, i32, i32) {
    %c0_i32 = arith.constant 0 : i32
    %c0_i32_0 = arith.constant 0 : i32
    %c0_i32_1 = arith.constant 0 : i32
    return %arg0, %c0_i32, %c0_i32_0 : i32, i32, i32
  }
}

module attributes {stable_mosaic.version = 11 : i64} {
  func.func @scale_shift_kernel(%arg0: i32, %arg1: memref<64x128xf32, #tpu.memory_space<vmem>>, %arg2: memref<1x128xf32, #tpu.memory_space<vmem>>, %arg3: memref<1x128xf32, #tpu.memory_space<vmem>>, %arg4: memref<64x128xf32, #tpu.memory_space<vmem>>) attributes {dimension_semantics = [#tpu.dimension_semantics<parallel>], iteration_bounds = array<i64: 2>, scalar_prefetch = 0 : i64, scratch_operands = 0 : i64, tpu.core_type = #tpu.core_type<tc>, window_params = [{transform_indices = @transform_0, window_bounds = array<i64: 64, 128>}, {pipeline_mode = #tpu.pipeline_mode<synchronous>, transform_indices = @transform_1, window_bounds = array<i64: 1, 128>}, {pipeline_mode = #tpu.pipeline_mode<synchronous>, transform_indices = @transform_2, window_bounds = array<i64: 1, 128>}, {transform_indices = @transform_3, window_bounds = array<i64: 64, 128>}]} {
    %c0 = arith.constant 0 : index
    %c0_0 = arith.constant 0 : index
    %0 = vector.load %arg1[%c0, %c0_0] : memref<64x128xf32, #tpu.memory_space<vmem>>, vector<64x128xf32>
    %c0_1 = arith.constant 0 : index
    %c0_2 = arith.constant 0 : index
    %1 = vector.load %arg2[%c0_1, %c0_2] : memref<1x128xf32, #tpu.memory_space<vmem>>, vector<1x128xf32>
    %2 = vector.broadcast %1 : vector<1x128xf32> to vector<64x128xf32>
    %3 = arith.mulf %0, %2 : vector<64x128xf32>
    %c0_3 = arith.constant 0 : index
    %c0_4 = arith.constant 0 : index
    %4 = vector.load %arg3[%c0_3, %c0_4] : memref<1x128xf32, #tpu.memory_space<vmem>>, vector<1x128xf32>
    %5 = vector.broadcast %4 : vector<1x128xf32> to vector<64x128xf32>
    %6 = arith.addf %3, %5 : vector<64x128xf32>
    %c0_5 = arith.constant 0 : index
    %c0_6 = arith.constant 0 : index
    %7 = vector.load %arg4[%c0_5, %c0_6] : memref<64x128xf32, #tpu.memory_space<vmem>>, vector<64x128xf32>
    tpu.vector_store %arg4[%c0_5, %c0_6], %6 {strides = array<i32>} : memref<64x128xf32, #tpu.memory_space<vmem>>, vector<64x128xf32>,
    return
  }
  func.func @transform_0(%arg0: i32) -> (i32, i32) {
    %c0_i32 = arith.constant 0 : i32
    %c0_i32_0 = arith.constant 0 : i32
    return %arg0, %c0_i32 : i32, i32
  }
  func.func @transform_1(%arg0: i32) -> (i32, i32) {
    %c0_i32 = arith.constant 0 : i32
    %c0_i32_0 = arith.constant 0 : i32
    %c0_i32_1 = arith.constant 0 : i32
    return %c0_i32, %c0_i32_0 : i32, i32
  }
  func.func @transform_2(%arg0: i32) -> (i32, i32) {
    %c0_i32 = arith.constant 0 : i32
    %c0_i32_0 = arith.constant 0 : i32
    %c0_i32_1 = arith.constant 0 : i32
    return %c0_i32, %c0_i32_0 : i32, i32
  }
  func.func @transform_3(%arg0: i32) -> (i32, i32) {
    %c0_i32 = arith.constant 0 : i32
    %c0_i32_0 = arith.constant 0 : i32
    return %arg0, %c0_i32 : i32, i32
  }
}

</mosaic_0001>

<llo_original>
// kernel: _lambda_.7
$region0: #{_lambda_.7}
  #allocation0 [shape = 'u32[]', space=smem, size = 0x4, offset = 0x4, fixed_abs, tag = 'smem constant byte address 0x4 - core index']
  #allocation1 [shape = 'u32[144,128]{1,0:T(1,128)}', space=vmem, size = 0x12000, scoped, tag = 'internal scratch']
  %s0 = inlined_call_operand.vmem [shape: f32[128,128], index: 0, kind: input, shape index: {}]
  %s1 = inlined_call_operand.vmem [shape: f32[1,128], index: 1, kind: input, shape index: {}]
  %s2 = inlined_call_operand.vmem [shape: f32[1,128], index: 2, kind: input, shape index: {}]
  %s3 = inlined_call_operand.vmem [shape: f32[128,128], index: 3, kind: output, shape index: {}]
  %s4 = sld [smem:[#allocation0]]
  $region45: #{_lambda_.7} parent=0
    _
  %s6 = ssub.s32 1, %s4
  %s7 = scalar_select 0, %s6, %s4
  loop: start=0, step=1, limit=4
  $region2: #{_lambda_.7} parent=0 // loop_pre_header
    _
  $region3: #{_lambda_.7} parent=0 // loop_header
    %s9 = sphi 0, %s13
    %p10 = scmp.ge.s32.totalorder %s9, 4
    %s19 = sphi 0, %s21
    %s22 = sphi 0, %s19
    %s23 = sphi 0, %s22
    %s39 = sphi 0, %s23
    %s43 = sphi 0, %s43
    %s45 = sphi 0, %s43
    %s46 = sphi 0, %s45
    %s60 = sphi 0, %s46
    %s64 = sphi 0, %s64
    %s66 = sphi 0, %s64
    %s67 = sphi 0, %s66
    %s81 = sphi 0, %s67
    %s87 = sphi 0, %s89
    %s90 = sphi 0, %s87
    %s91 = sphi 0, %s90
    %s107 = sphi 0, %s91
  $region4: #{_lambda_.7} parent=0 // loop_header_branch
    %12 = sbr.rel (%p10) target = $region8
  $region5: #{_lambda_.7} parent=0 // loop_body
    %s14 = ssub.s32 %s9, 1
    %s15 = ssub.s32 %s9, 2
    %s16 = sadd.s32 %s9, 1
    %s17 = ssub.s32 %s9, %s16
    %p18 = scmp.eq.s32.totalorder %s17, 0
    %s20 = sadd.s32 %s19, 1
    %s21 = scalar_select %p18, %s19, %s20
    %p24 = pneg %p18
    %p25 = scmp.eq.s32.totalorder %s9, 1
    %p26 = por %p24, %p25
    %p27 = scmp.ne.s32.totalorder %s19, %s22
    %p28 = scmp.eq.s32.totalorder %s9, 0
    %p29 = por %p27, %p28
    %p30 = scmp.ne.s32.totalorder %s19, %s22
    %p31 = scmp.eq.s32.totalorder %s14, 1
    %p32 = por %p30, %p31
    %p33 = scmp.ne.s32.totalorder %s22, %s23
    %p34 = scmp.eq.s32.totalorder %s14, 0
    %p35 = por %p33, %p34
    %p36 = scmp.ne.s32.totalorder %s22, %s23
    %p37 = scmp.eq.s32.totalorder %s15, 1
    %p38 = por %p36, %p37
    %p40 = scmp.ne.s32.totalorder %s23, %s39
    %p41 = scmp.eq.s32.totalorder %s15, 0
    %p42 = por %p40, %p41
    %s44 = sadd.s32 %s43, 1
    %p47 = scmp.eq.s32.totalorder %s9, 1
    %p48 = scmp.ne.s32.totalorder %s43, %s45
    %p49 = scmp.eq.s32.totalorder %s9, 0
    %p50 = por %p48, %p49
    %p51 = scmp.ne.s32.totalorder %s43, %s45
    %p52 = scmp.eq.s32.totalorder %s14, 1
    %p53 = por %p51, %p52
    %p54 = scmp.ne.s32.totalorder %s45, %s46
    %p55 = scmp.eq.s32.totalorder %s14, 0
    %p56 = por %p54, %p55
    %p57 = scmp.ne.s32.totalorder %s45, %s46
    %p58 = scmp.eq.s32.totalorder %s15, 1
    %p59 = por %p57, %p58
    %p61 = scmp.ne.s32.totalorder %s46, %s60
    %p62 = scmp.eq.s32.totalorder %s15, 0
    %p63 = por %p61, %p62
    %s65 = sadd.s32 %s64, 1
    %p68 = scmp.eq.s32.totalorder %s9, 1
    %p69 = scmp.ne.s32.totalorder %s64, %s66
    %p70 = scmp.eq.s32.totalorder %s9, 0
    %p71 = por %p69, %p70
    %p72 = scmp.ne.s32.totalorder %s64, %s66
    %p73 = scmp.eq.s32.totalorder %s14, 1
    %p74 = por %p72, %p73
    %p75 = scmp.ne.s32.totalorder %s66, %s67
    %p76 = scmp.eq.s32.totalorder %s14, 0
    %p77 = por %p75, %p76
    %p78 = scmp.ne.s32.totalorder %s66, %s67
    %p79 = scmp.eq.s32.totalorder %s15, 1
    %p80 = por %p78, %p79
    %p82 = scmp.ne.s32.totalorder %s67, %s81
    %p83 = scmp.eq.s32.totalorder %s15, 0
    %p84 = por %p82, %p83
    %s85 = ssub.s32 %s9, %s16
    %p86 = scmp.eq.s32.totalorder %s85, 0
    %s88 = sadd.s32 %s87, 1
    %s89 = scalar_select %p86, %s87, %s88
    %p92 = pneg %p86
    %p93 = scmp.eq.s32.totalorder %s9, 1
    %p94 = por %p92, %p93
    %p95 = scmp.ne.s32.totalorder %s87, %s90
    %p96 = scmp.eq.s32.totalorder %s9, 0
    %p97 = por %p95, %p96
    %p98 = scmp.ne.s32.totalorder %s87, %s90
    %p99 = scmp.eq.s32.totalorder %s14, 1
    %p100 = por %p98, %p99
    %p101 = scmp.ne.s32.totalorder %s90, %s91
    %p102 = scmp.eq.s32.totalorder %s14, 0
    %p103 = por %p101, %p102
    %p104 = scmp.ne.s32.totalorder %s90, %s91
    %p105 = scmp.eq.s32.totalorder %s15, 1
    %p106 = por %p104, %p105
    %p108 = scmp.ne.s32.totalorder %s91, %s107
    %p109 = scmp.eq.s32.totalorder %s15, 0
    %p110 = por %p108, %p109
    %p111 = scmp.le.s32.totalorder 1, %s9
    %p112 = scmp.lt.s32.totalorder %s9, 3
    %p113 = pnand %p111, %p112
    %p114 = pneg %p113
    // Predicated region
    $region9: #{_lambda_.7} parent=5 // pred_check
      _
    $region10: #{_lambda_.7} parent=5 // pred_check_branch
      %116 = sbr.rel (%p113) target = $region12
    $region11: #{_lambda_.7} parent=5 // pred_region
      %s117 = ssub.s32 %s9, 1
      // Predicated region
      $region13: #{_lambda_.7} parent=11 // pred_check
        %p118 = pneg %p56
      $region14: #{_lambda_.7} parent=11 // pred_check_branch
        %120 = sbr.rel (%p118) target = $region16
      $region15: #{_lambda_.7} parent=11 // pred_region
        _
      $region16: #{_lambda_.7} parent=11 // pred_fallthru
        _
      // Predicated region
      $region17: #{_lambda_.7} parent=11 // pred_check
        %p121 = pneg %p77
      $region18: #{_lambda_.7} parent=11 // pred_check_branch
        %123 = sbr.rel (%p121) target = $region20
      $region19: #{_lambda_.7} parent=11 // pred_region
        _
      $region20: #{_lambda_.7} parent=11 // pred_fallthru
        _
    $region12: #{_lambda_.7} parent=5 // pred_fallthru
      _
    %p124 = scmp.lt.s32.totalorder %s9, 2
    // Predicated region
    $region21: #{_lambda_.7} parent=5 // pred_check
      %p125 = pneg %p124
    $region22: #{_lambda_.7} parent=5 // pred_check_branch
      %127 = sbr.rel (%p125) target = $region24
    $region23: #{_lambda_.7} parent=5 // pred_region
      // Predicated region
      $region25: #{_lambda_.7} parent=23 // pred_check
        %p128 = pneg %p29
      $region26: #{_lambda_.7} parent=23 // pred_check_branch
        %130 = sbr.rel (%p128) target = $region28
      $region27: #{_lambda_.7} parent=23 // pred_region
        %s131 = smul.u32 8, %s9
        %p132 = scmp.lt.s32.totalorder %s131, 15
        %s133 = scalar_select %p132, %s131, 15
        %s134 = smul.addr %s133, 8
        %s135 = scalar_lea.vmem %s0, %s134
        %s136 = smul.u32 8, %s9
      $region28: #{_lambda_.7} parent=23 // pred_fallthru
        _
    $region24: #{_lambda_.7} parent=5 // pred_fallthru
      _
    %p137 = scmp.le.s32.totalorder 1, %s9
    %p138 = scmp.lt.s32.totalorder %s9, 3
    %p139 = pnand %p137, %p138
    %p140 = pneg %p139
    // Predicated region
    $region29: #{_lambda_.7} parent=5 // pred_check
      _
    $region30: #{_lambda_.7} parent=5 // pred_check_branch
      %142 = sbr.rel (%p139) target = $region32
    $region31: #{_lambda_.7} parent=5 // pred_region
      %s143 = ssub.s32 %s9, 1
      %s144 = smul.u32 8, %s14
      %p145 = scmp.lt.s32.totalorder %s144, 15
      %s146 = scalar_select %p145, %s144, 15
      %s147 = smul.addr %s146, 8
      %s148 = scalar_lea.vmem %s0, %s147
      %p149 = pneg %p35
      %p150 = pneg %p32
      %p151 = pneg %p56
      %p152 = pneg %p53
      %p153 = pneg %p77
      %p154 = pneg %p74
      %p155 = pneg %p103
      %p156 = pneg %p100
      %s157 = smul.u32 8, %s14
      %p158 = scmp.lt.s32.totalorder %s157, 15
      %s159 = scalar_select %p158, %s157, 15
      %s160 = smul.addr %s159, 8
      %s161 = scalar_lea.vmem %s3, %s160
      %s162 = smul.u32 8, %s14
      %p163 = scmp.lt.s32.totalorder %s162, 15
      %s164 = scalar_select %p163, %s162, 15
      %s165 = smul.addr %s164, 8
      %s166 = scalar_lea.vmem %s0, %s165
      %s167 = smul.u32 8, %s14
      %s168 = smul.u32 8, %s14
      %p169 = scmp.lt.s32.totalorder %s168, 15
      %s170 = scalar_select %p169, %s168, 15
      %s171 = smul.addr %s170, 8
      %s172 = scalar_lea.vmem %s3, %s171
      %s173 = smul.u32 8, %s14
      %v174 = vld [vmem:[%s166] sm:$0xff]
      %v175 = vld [vmem:[%s166 + $0x8] sm:$0xff]
      %v176 = vld [vmem:[%s166 + $0x10] sm:$0xff]
      %v177 = vld [vmem:[%s166 + $0x18] sm:$0xff]
      %v178 = vld [vmem:[%s166 + $0x20] sm:$0xff]
      %v179 = vld [vmem:[%s166 + $0x28] sm:$0xff]
      %v180 = vld [vmem:[%s166 + $0x30] sm:$0xff]
      %v181 = vld [vmem:[%s166 + $0x38] sm:$0xff]
      %v182 = vld [vmem:[%s1] sm:$0x1]
      %v184 = vlaneseq
      %v185 = vshrl.u32 %v184, 7
      %v186 = vsub.s32 0, %v185
      %v187 = vrot.slane %v182, %v186
      %v189 = vmul.f32 %v174, %v187
      %v190 = vmul.f32 %v175, %v187
      %v191 = vmul.f32 %v176, %v187
      %v192 = vmul.f32 %v177, %v187
      %v193 = vmul.f32 %v178, %v187
      %v194 = vmul.f32 %v179, %v187
      %v195 = vmul.f32 %v180, %v187
      %v196 = vmul.f32 %v181, %v187
      %v197 = vld [vmem:[%s2] sm:$0x1]
      %v199 = vlaneseq
      %v200 = vshrl.u32 %v199, 7
      %v201 = vsub.s32 0, %v200
      %v202 = vrot.slane %v197, %v201
      %v204 = vadd.f32 %v189, %v202
      %v205 = vadd.f32 %v190, %v202
      %v206 = vadd.f32 %v191, %v202
      %v207 = vadd.f32 %v192, %v202
      %v208 = vadd.f32 %v193, %v202
      %v209 = vadd.f32 %v194, %v202
      %v210 = vadd.f32 %v195, %v202
      %v211 = vadd.f32 %v196, %v202
      %v212 = vmax.f32 %v204, 0.0
      %v213 = vmax.f32 %v205, 0.0
      %v214 = vmax.f32 %v206, 0.0
      %v215 = vmax.f32 %v207, 0.0
      %v216 = vmax.f32 %v208, 0.0
      %v217 = vmax.f32 %v209, 0.0
      %v218 = vmax.f32 %v210, 0.0
      %v219 = vmax.f32 %v211, 0.0
      %220 = vst [vmem:[%s172] sm:$0xff] %v212
      %221 = vst [vmem:[%s172 + $0x8] sm:$0xff] %v213
      %222 = vst [vmem:[%s172 + $0x10] sm:$0xff] %v214
      %223 = vst [vmem:[%s172 + $0x18] sm:$0xff] %v215
      %224 = vst [vmem:[%s172 + $0x20] sm:$0xff] %v216
      %225 = vst [vmem:[%s172 + $0x28] sm:$0xff] %v217
      %226 = vst [vmem:[%s172 + $0x30] sm:$0xff] %v218
      %227 = vst [vmem:[%s172 + $0x38] sm:$0xff] %v219
      %s228 = smul.u32 8, %s14
      %p229 = scmp.lt.s32.totalorder %s228, 15
      %s230 = scalar_select %p229, %s228, 15
      %s231 = smul.addr %s230, 8
      %s232 = scalar_lea.vmem %s3, %s231
      // Predicated region
      $region33: #{_lambda_.7} parent=31 // pred_check
        %p233 = pneg %p100
      $region34: #{_lambda_.7} parent=31 // pred_check_branch
        %235 = sbr.rel (%p233) target = $region36
      $region35: #{_lambda_.7} parent=31 // pred_region
        %s236 = smul.u32 8, %s14
      $region36: #{_lambda_.7} parent=31 // pred_fallthru
        _
    $region32: #{_lambda_.7} parent=5 // pred_fallthru
      _
    %p237 = scmp.le.s32.totalorder 2, %s9
    // Predicated region
    $region37: #{_lambda_.7} parent=5 // pred_check
      %p238 = pneg %p237
    $region38: #{_lambda_.7} parent=5 // pred_check_branch
      %240 = sbr.rel (%p238) target = $region40
    $region39: #{_lambda_.7} parent=5 // pred_region
      %s241 = ssub.s32 %s9, 2
      // Predicated region
      $region41: #{_lambda_.7} parent=39 // pred_check
        %p242 = pneg %p106
      $region42: #{_lambda_.7} parent=39 // pred_check_branch
        %244 = sbr.rel (%p242) target = $region44
      $region43: #{_lambda_.7} parent=39 // pred_region
        %s245 = smul.u32 8, %s15
        %p246 = scmp.lt.s32.totalorder %s245, 15
        %s247 = scalar_select %p246, %s245, 15
        %s248 = smul.addr %s247, 8
        %s249 = scalar_lea.vmem %s3, %s248
      $region44: #{_lambda_.7} parent=39 // pred_fallthru
        _
    $region40: #{_lambda_.7} parent=5 // pred_fallthru
      _
  $region6: #{_lambda_.7} parent=0 // loop_footer
    %s13 = sadd.s32 1, %s9
  $region7: #{_lambda_.7} parent=0 // loop_footer_branch
    %8 = sbr.rel target = $region3
  $region8: #{_lambda_.7} parent=0 // loop_exit
    _

// kernel: _lambda_.6
$region0: #{_lambda_.6}
  #allocation0 [shape = 'u32[]', space=smem, size = 0x4, offset = 0x4, fixed_abs, tag = 'smem constant byte address 0x4 - core index']
  #allocation1 [shape = 'u32[144,128]{1,0:T(1,128)}', space=vmem, size = 0x12000, scoped, tag = 'internal scratch']
  %s0 = inlined_call_operand.vmem [shape: bf16[2,17,17,4], index: 0, kind: input, shape index: {}]
  %s1 = inlined_call_operand.vmem [shape: bf16[9,4,128], index: 1, kind: input, shape index: {}]
  %s2 = inlined_call_operand.vmem [shape: f32[128,128], index: 2, kind: output, shape index: {0}]
  %s3 = inlined_call_operand.vmem [shape: f32[2,8,128], index: 3, kind: output, shape index: {1}]
  %s4 = inlined_call_operand.vmem [shape: f32[2,8,128], index: 4, kind: output, shape index: {2}]
  %5 = xla_tuple %s2, %s3, %s4
  %s6 = sld [smem:[#allocation0]]
  $region57: #{_lambda_.6} parent=0
    _
  %s8 = ssub.s32 1, %s6
  %s9 = scalar_select 0, %s8, %s6
  loop: start=0, step=1, limit=4
  $region2: #{_lambda_.6} parent=0 // loop_pre_header
    _
  $region3: #{_lambda_.6} parent=0 // loop_header
    %s11 = sphi 0, %s15
    %p12 = scmp.ge.s32.totalorder %s11, 4
    %s21 = sphi 0, %s23
    %s24 = sphi 0, %s21
    %s25 = sphi 0, %s24
    %s41 = sphi 0, %s25
    %s45 = sphi 0, %s45
    %s47 = sphi 0, %s45
    %s48 = sphi 0, %s47
    %s62 = sphi 0, %s48
    %s68 = sphi 0, %s70
    %s71 = sphi 0, %s68
    %s72 = sphi 0, %s71
    %s88 = sphi 0, %s72
    %s94 = sphi 0, %s96
    %s97 = sphi 0, %s94
    %s98 = sphi 0, %s97
    %s114 = sphi 0, %s98
    %s120 = sphi 0, %s122
    %s123 = sphi 0, %s120
    %s124 = sphi 0, %s123
    %s140 = sphi 0, %s124
  $region4: #{_lambda_.6} parent=0 // loop_header_branch
    %14 = sbr.rel (%p12) target = $region8
  $region5: #{_lambda_.6} parent=0 // loop_body
    %s16 = ssub.s32 %s11, 1
    %s17 = ssub.s32 %s11, 2
    %s18 = sadd.s32 %s11, 1
    %s19 = ssub.s32 %s11, %s18
    %p20 = scmp.eq.s32.totalorder %s19, 0
    %s22 = sadd.s32 %s21, 1
    %s23 = scalar_select %p20, %s21, %s22
    %p26 = pneg %p20
    %p27 = scmp.eq.s32.totalorder %s11, 1
    %p28 = por %p26, %p27
    %p29 = scmp.ne.s32.totalorder %s21, %s24
    %p30 = scmp.eq.s32.totalorder %s11, 0
    %p31 = por %p29, %p30
    %p32 = scmp.ne.s32.totalorder %s21, %s24
    %p33 = scmp.eq.s32.totalorder %s16, 1
    %p34 = por %p32, %p33
    %p35 = scmp.ne.s32.totalorder %s24, %s25
    %p36 = scmp.eq.s32.totalorder %s16, 0
    %p37 = por %p35, %p36
    %p38 = scmp.ne.s32.totalorder %s24, %s25
    %p39 = scmp.eq.s32.totalorder %s17, 1
    %p40 = por %p38, %p39
    %p42 = scmp.ne.s32.totalorder %s25, %s41
    %p43 = scmp.eq.s32.totalorder %s17, 0
    %p44 = por %p42, %p43
    %s46 = sadd.s32 %s45, 1
    %p49 = scmp.eq.s32.totalorder %s11, 1
    %p50 = scmp.ne.s32.totalorder %s45, %s47
    %p51 = scmp.eq.s32.totalorder %s11, 0
    %p52 = por %p50, %p51
    %p53 = scmp.ne.s32.totalorder %s45, %s47
    %p54 = scmp.eq.s32.totalorder %s16, 1
    %p55 = por %p53, %p54
    %p56 = scmp.ne.s32.totalorder %s47, %s48
    %p57 = scmp.eq.s32.totalorder %s16, 0
    %p58 = por %p56, %p57
    %p59 = scmp.ne.s32.totalorder %s47, %s48
    %p60 = scmp.eq.s32.totalorder %s17, 1
    %p61 = por %p59, %p60
    %p63 = scmp.ne.s32.totalorder %s48, %s62
    %p64 = scmp.eq.s32.totalorder %s17, 0
    %p65 = por %p63, %p64
    %s66 = ssub.s32 %s11, %s18
    %p67 = scmp.eq.s32.totalorder %s66, 0
    %s69 = sadd.s32 %s68, 1
    %s70 = scalar_select %p67, %s68, %s69
    %p73 = pneg %p67
    %p74 = scmp.eq.s32.totalorder %s11, 1
    %p75 = por %p73, %p74
    %p76 = scmp.ne.s32.totalorder %s68, %s71
    %p77 = scmp.eq.s32.totalorder %s11, 0
    %p78 = por %p76, %p77
    %p79 = scmp.ne.s32.totalorder %s68, %s71
    %p80 = scmp.eq.s32.totalorder %s16, 1
    %p81 = por %p79, %p80
    %p82 = scmp.ne.s32.totalorder %s71, %s72
    %p83 = scmp.eq.s32.totalorder %s16, 0
    %p84 = por %p82, %p83
    %p85 = scmp.ne.s32.totalorder %s71, %s72
    %p86 = scmp.eq.s32.totalorder %s17, 1
    %p87 = por %p85, %p86
    %p89 = scmp.ne.s32.totalorder %s72, %s88
    %p90 = scmp.eq.s32.totalorder %s17, 0
    %p91 = por %p89, %p90
    %s92 = ssub.s32 %s11, %s18
    %p93 = scmp.eq.s32.totalorder %s92, 0
    %s95 = sadd.s32 %s94, 1
    %s96 = scalar_select %p93, %s94, %s95
    %p99 = pneg %p93
    %p100 = scmp.eq.s32.totalorder %s11, 1
    %p101 = por %p99, %p100
    %p102 = scmp.ne.s32.totalorder %s94, %s97
    %p103 = scmp.eq.s32.totalorder %s11, 0
    %p104 = por %p102, %p103
    %p105 = scmp.ne.s32.totalorder %s94, %s97
    %p106 = scmp.eq.s32.totalorder %s16, 1
    %p107 = por %p105, %p106
    %p108 = scmp.ne.s32.totalorder %s97, %s98
    %p109 = scmp.eq.s32.totalorder %s16, 0
    %p110 = por %p108, %p109
    %p111 = scmp.ne.s32.totalorder %s97, %s98
    %p112 = scmp.eq.s32.totalorder %s17, 1
    %p113 = por %p111, %p112
    %p115 = scmp.ne.s32.totalorder %s98, %s114
    %p116 = scmp.eq.s32.totalorder %s17, 0
    %p117 = por %p115, %p116
    %s118 = ssub.s32 %s11, %s18
    %p119 = scmp.eq.s32.totalorder %s118, 0
    %s121 = sadd.s32 %s120, 1
    %s122 = scalar_select %p119, %s120, %s121
    %p125 = pneg %p119
    %p126 = scmp.eq.s32.totalorder %s11, 1
    %p127 = por %p125, %p126
    %p128 = scmp.ne.s32.totalorder %s120, %s123
    %p129 = scmp.eq.s32.totalorder %s11, 0
    %p130 = por %p128, %p129
    %p131 = scmp.ne.s32.totalorder %s120, %s123
    %p132 = scmp.eq.s32.totalorder %s16, 1
    %p133 = por %p131, %p132
    %p134 = scmp.ne.s32.totalorder %s123, %s124
    %p135 = scmp.eq.s32.totalorder %s16, 0
    %p136 = por %p134, %p135
    %p137 = scmp.ne.s32.totalorder %s123, %s124
    %p138 = scmp.eq.s32.totalorder %s17, 1
    %p139 = por %p137, %p138
    %p141 = scmp.ne.s32.totalorder %s124, %s140
    %p142 = scmp.eq.s32.totalorder %s17, 0
    %p143 = por %p141, %p142
    %p144 = scmp.le.s32.totalorder 1, %s11
    %p145 = scmp.lt.s32.totalorder %s11, 3
    %p146 = pnand %p144, %p145
    %p147 = pneg %p146
    // Predicated region
    $region9: #{_lambda_.6} parent=5 // pred_check
      _
    $region10: #{_lambda_.6} parent=5 // pred_check_branch
      %149 = sbr.rel (%p146) target = $region12
    $region11: #{_lambda_.6} parent=5 // pred_region
      %s150 = ssub.s32 %s11, 1
      // Predicated region
      $region13: #{_lambda_.6} parent=11 // pred_check
        %p151 = pneg %p58
      $region14: #{_lambda_.6} parent=11 // pred_check_branch
        %153 = sbr.rel (%p151) target = $region16
      $region15: #{_lambda_.6} parent=11 // pred_region
        _
      $region16: #{_lambda_.6} parent=11 // pred_fallthru
        _
    $region12: #{_lambda_.6} parent=5 // pred_fallthru
      _
    %p154 = scmp.lt.s32.totalorder %s11, 2
    // Predicated region
    $region17: #{_lambda_.6} parent=5 // pred_check
      %p155 = pneg %p154
    $region18: #{_lambda_.6} parent=5 // pred_check_branch
      %157 = sbr.rel (%p155) target = $region20
    $region19: #{_lambda_.6} parent=5 // pred_region
      // Predicated region
      $region21: #{_lambda_.6} parent=19 // pred_check
        %p158 = pneg %p31
      $region22: #{_lambda_.6} parent=19 // pred_check_branch
        %160 = sbr.rel (%p158) target = $region24
      $region23: #{_lambda_.6} parent=19 // pred_region
        %p161 = scmp.lt.s32.totalorder %s11, 1
        %s162 = scalar_select %p161, %s11, 1
        %s163 = smul.addr %s162, 51
        %s164 = smul.addr %s163, 4
        %s165 = scalar_lea.vmem %s0, %s164
      $region24: #{_lambda_.6} parent=19 // pred_fallthru
        _
    $region20: #{_lambda_.6} parent=5 // pred_fallthru
      _
    %p166 = scmp.le.s32.totalorder 1, %s11
    %p167 = scmp.lt.s32.totalorder %s11, 3
    %p168 = pnand %p166, %p167
    %p169 = pneg %p168
    // Predicated region
    $region25: #{_lambda_.6} parent=5 // pred_check
      _
    $region26: #{_lambda_.6} parent=5 // pred_check_branch
      %171 = sbr.rel (%p168) target = $region28
    $region27: #{_lambda_.6} parent=5 // pred_region
      %s172 = ssub.s32 %s11, 1
      %p173 = scmp.lt.s32.totalorder %s16, 1
      %s174 = scalar_select %p173, %s16, 1
      %s175 = smul.addr %s174, 51
      %s176 = smul.addr %s175, 4
      %s177 = scalar_lea.vmem %s0, %s176
      %p178 = pneg %p37
      %p179 = pneg %p34
      %p180 = pneg %p58
      %p181 = pneg %p55
      %p182 = pneg %p84
      %p183 = pneg %p81
      %s184 = smul.u32 8, %s16
      %p185 = scmp.lt.s32.totalorder %s184, 15
      %s186 = scalar_select %p185, %s184, 15
      %s187 = smul.addr %s186, 8
      %s188 = scalar_lea.vmem %s2, %s187
      %p189 = pneg %p110
      %p190 = pneg %p107
      %p191 = scmp.lt.s32.totalorder %s16, 1
      %s192 = scalar_select %p191, %s16, 1
      %s193 = smul.addr %s192, 8
      %s194 = scalar_lea.vmem %s3, %s193
      %p195 = pneg %p136
      %p196 = pneg %p133
      %p197 = scmp.lt.s32.totalorder %s16, 1
      %s198 = scalar_select %p197, %s16, 1
      %s199 = smul.addr %s198, 8
      %s200 = scalar_lea.vmem %s4, %s199
      %p201 = scmp.lt.s32.totalorder %s16, 1
      %s202 = scalar_select %p201, %s16, 1
      %s203 = smul.addr %s202, 51
      %s204 = smul.addr %s203, 4
      %s205 = scalar_lea.vmem %s0, %s204
      %s206 = smul.u32 8, %s16
      %p207 = scmp.lt.s32.totalorder %s206, 15
      %s208 = scalar_select %p207, %s206, 15
      %s209 = smul.addr %s208, 8
      %s210 = scalar_lea.vmem %s2, %s209
      %s211 = smul.u32 8, %s16
      %p212 = scmp.lt.s32.totalorder %s16, 1
      %s213 = scalar_select %p212, %s16, 1
      %s214 = smul.addr %s213, 8
      %s215 = scalar_lea.vmem %s3, %s214
      %p216 = scmp.lt.s32.totalorder %s16, 1
      %s217 = scalar_select %p216, %s16, 1
      %s218 = smul.addr %s217, 8
      %s219 = scalar_lea.vmem %s4, %s218
      %v221 = vld [vmem:[%s205] sm:$0xf]
      %v222 = vld [vmem:[%s205 + $0x4] sm:$0xf]
      %v223 = vld [vmem:[%s205 + $0x8] sm:$0x1]
      %v224 = vld [vmem:[%s205 + $0xc] sm:$0xf]
      %v225 = vld [vmem:[%s205 + $0x10] sm:$0xf]
      %v226 = vld [vmem:[%s205 + $0x14] sm:$0x1]
      %v227 = vld [vmem:[%s205 + $0x18] sm:$0xf]
      %v228 = vld [vmem:[%s205 + $0x1c] sm:$0xf]
      %v229 = vld [vmem:[%s205 + $0x20] sm:$0x1]
      %v230 = vld [vmem:[%s205 + $0x24] sm:$0xf]
      %v231 = vld [vmem:[%s205 + $0x28] sm:$0xf]
      %v232 = vld [vmem:[%s205 + $0x2c] sm:$0x1]
      %v233 = vld [vmem:[%s205 + $0x30] sm:$0xf]
      %v234 = vld [vmem:[%s205 + $0x34] sm:$0xf]
      %v235 = vld [vmem:[%s205 + $0x38] sm:$0x1]
      %v236 = vld [vmem:[%s205 + $0x3c] sm:$0xf]
      %v237 = vld [vmem:[%s205 + $0x40] sm:$0xf]
      %v238 = vld [vmem:[%s205 + $0x44] sm:$0x1]
      %v239 = vld [vmem:[%s205 + $0x48] sm:$0xf]
      %v240 = vld [vmem:[%s205 + $0x4c] sm:$0xf]
      %v241 = vld [vmem:[%s205 + $0x50] sm:$0x1]
      %v242 = vld [vmem:[%s205 + $0x54] sm:$0xf]
      %v243 = vld [vmem:[%s205 + $0x58] sm:$0xf]
      %v244 = vld [vmem:[%s205 + $0x5c] sm:$0x1]
      %v245 = vld [vmem:[%s205 + $0x60] sm:$0xf]
      %v246 = vld [vmem:[%s205 + $0x64] sm:$0xf]
      %v247 = vld [vmem:[%s205 + $0x68] sm:$0x1]
      %v248 = vld [vmem:[%s205 + $0x6c] sm:$0xf]
      %v249 = vld [vmem:[%s205 + $0x70] sm:$0xf]
      %v250 = vld [vmem:[%s205 + $0x74] sm:$0x1]
      %v251 = vld [vmem:[%s205 + $0x78] sm:$0xf]
      %v252 = vld [vmem:[%s205 + $0x7c] sm:$0xf]
      %v253 = vld [vmem:[%s205 + $0x80] sm:$0x1]
      %v254 = vld [vmem:[%s205 + $0x84] sm:$0xf]
      %v255 = vld [vmem:[%s205 + $0x88] sm:$0xf]
      %v256 = vld [vmem:[%s205 + $0x8c] sm:$0x1]
      %v257 = vld [vmem:[%s205 + $0x90] sm:$0xf]
      %v258 = vld [vmem:[%s205 + $0x94] sm:$0xf]
      %v259 = vld [vmem:[%s205 + $0x98] sm:$0x1]
      %v260 = vld [vmem:[%s205 + $0x9c] sm:$0xf]
      %v261 = vld [vmem:[%s205 + $0xa0] sm:$0xf]
      %v262 = vld [vmem:[%s205 + $0xa4] sm:$0x1]
      %v263 = vld [vmem:[%s205 + $0xa8] sm:$0xf]
      %v264 = vld [vmem:[%s205 + $0xac] sm:$0xf]
      %v265 = vld [vmem:[%s205 + $0xb0] sm:$0x1]
      %v266 = vld [vmem:[%s205 + $0xb4] sm:$0xf]
      %v267 = vld [vmem:[%s205 + $0xb8] sm:$0xf]
      %v268 = vld [vmem:[%s205 + $0xbc] sm:$0x1]
      %v269 = vld [vmem:[%s205 + $0xc0] sm:$0xf]
      %v270 = vld [vmem:[%s205 + $0xc4] sm:$0xf]
      %v271 = vld [vmem:[%s205 + $0xc8] sm:$0x1]
      %v272 = vunpack.c.l.bf16 %v221
      %v273 = vunpack.c.l.bf16 %v222
      %v274 = vunpack.c.l.bf16 %v223
      %v275 = vunpack.c.l.bf16 %v224
      %v276 = vunpack.c.l.bf16 %v225
      %v277 = vunpack.c.l.bf16 %v226
      %v278 = vunpack.c.l.bf16 %v227
      %v279 = vunpack.c.l.bf16 %v228
      %v280 = vunpack.c.l.bf16 %v229
      %v281 = vunpack.c.l.bf16 %v230
      %v282 = vunpack.c.l.bf16 %v231
      %v283 = vunpack.c.l.bf16 %v232
      %v284 = vunpack.c.l.bf16 %v233
      %v285 = vunpack.c.l.bf16 %v234
      %v286 = vunpack.c.l.bf16 %v235
      %v287 = vunpack.c.l.bf16 %v236
      %v288 = vunpack.c.l.bf16 %v237
      %v289 = vunpack.c.l.bf16 %v238
      %v290 = vunpack.c.l.bf16 %v239
      %v291 = vunpack.c.l.bf16 %v240
      %v292 = vunpack.c.l.bf16 %v241
      %v293 = vunpack.c.l.bf16 %v242
      %v294 = vunpack.c.l.bf16 %v243
      %v295 = vunpack.c.l.bf16 %v244
      %v296 = vunpack.c.l.bf16 %v245
      %v297 = vunpack.c.l.bf16 %v246
      %v298 = vunpack.c.l.bf16 %v247
      %v299 = vunpack.c.l.bf16 %v248
      %v300 = vunpack.c.l.bf16 %v249
      %v301 = vunpack.c.l.bf16 %v250
      %v302 = vunpack.c.l.bf16 %v251
      %v303 = vunpack.c.l.bf16 %v252
      %v304 = vunpack.c.l.bf16 %v253
      %v305 = vunpack.c.l.bf16 %v254
      %v306 = vunpack.c.l.bf16 %v255
      %v307 = vunpack.c.l.bf16 %v256
      %v308 = vunpack.c.l.bf16 %v257
      %v309 = vunpack.c.l.bf16 %v258
      %v310 = vunpack.c.l.bf16 %v259
      %v311 = vunpack.c.l.bf16 %v260
      %v312 = vunpack.c.l.bf16 %v261
      %v313 = vunpack.c.l.bf16 %v262
      %v314 = vunpack.c.l.bf16 %v263
      %v315 = vunpack.c.l.bf16 %v264
      %v316 = vunpack.c.l.bf16 %v265
      %v317 = vunpack.c.l.bf16 %v266
      %v318 = vunpack.c.l.bf16 %v267
      %v319 = vunpack.c.l.bf16 %v268
      %v320 = vunpack.c.l.bf16 %v269
      %v321 = vunpack.c.l.bf16 %v270
      %v322 = vunpack.c.l.bf16 %v271
      %v323 = vpack.c.bf16 %v275, %v272
      %v324 = vpack.c.bf16 %v281, %v278
      %v325 = vpack.c.bf16 %v287, %v284
      %v326 = vpack.c.bf16 %v293, %v290
      %v327 = vld [vmem:[%s1] sm:$0x3]
      %vm344 = vcmask 1046528
      %v345 = vrot.slane %v273, 1
      %v346 = vrot.slane %v274, 1
      %v347 = vsel %vm344, %v345, %v346
      %v348 = vrot.slane %v276, 1
      %v349 = vrot.slane %v277, 1
      %v350 = vsel %vm344, %v348, %v349
      %v351 = vrot.slane %v279, 1
      %v352 = vrot.slane %v280, 1
      %v353 = vsel %vm344, %v351, %v352
      %v354 = vrot.slane %v282, 1
      %v355 = vrot.slane %v283, 1
      %v356 = vsel %vm344, %v354, %v355
      %v357 = vrot.slane %v285, 1
      %v358 = vrot.slane %v286, 1
      %v359 = vsel %vm344, %v357, %v358
      %v360 = vrot.slane %v288, 1
      %v361 = vrot.slane %v289, 1
      %v362 = vsel %vm344, %v360, %v361
      %v363 = vrot.slane %v291, 1
      %v364 = vrot.slane %v292, 1
      %v365 = vsel %vm344, %v363, %v364
      %v366 = vrot.slane %v294, 1
      %v367 = vrot.slane %v295, 1
      %v368 = vsel %vm344, %v366, %v367
      %v377 = vpack.c.bf16 %v350, %v347
      %v378 = vpack.c.bf16 %v356, %v353
      %v379 = vpack.c.bf16 %v362, %v359
      %v380 = vpack.c.bf16 %v368, %v365
      %s381 = scalar_lea.vmem %s1, 2
      %v382 = vld [vmem:[%s381] sm:$0x3]
      %vm383 = vcmask 31744
      %v385 = vsel %vm383, %v377, 0
      %v388 = vsel %vm383, %v378, 0
      %v391 = vsel %vm383, %v379, 0
      %v394 = vsel %vm383, %v380, 0
      %vm396 = vcmask 1041408
      %v398 = vsel %vm396, %v382, 0
      %400 = vmatprep.subr.bf16.mxu0 0
      %401 = vmatpush1.bf16.msra.mxu0 %v398
      %402 = vmatprep.subr.bf16.mxu0 0
      %403 = vmatpush1.bf16.msra.mxu0 0
      %404 = vmatprep.subr.bf16.mxu0 0
      %405 = vmatpush1.bf16.msra.mxu0 0
      %406 = vmatprep.subr.bf16.mxu0 0
      %407 = vmatpush1.bf16.msra.mxu0 0
      %408 = vmatprep.subr.bf16.mxu0 0
      %409 = vmatpush1.bf16.msra.mxu0 0
      %410 = vmatprep.subr.bf16.mxu0 0
      %411 = vmatpush1.bf16.msra.mxu0 0
      %412 = vmatprep.subr.bf16.mxu0 0
      %413 = vmatpush1.bf16.msra.mxu0 0
      %414 = vmatprep.subr.bf16.mxu0 0
      %415 = vmatpush1.bf16.msra.mxu0 0
      %416 = vmatprep.subr.bf16.mxu0 0
      %417 = vmatpush1.bf16.msra.mxu0 0
      %418 = vmatprep.subr.bf16.mxu0 0
      %419 = vmatpush1.bf16.msra.mxu0 0
      %420 = vmatprep.subr.bf16.mxu0 0
      %421 = vmatpush1.bf16.msra.mxu0 0
      %422 = vmatprep.subr.bf16.mxu0 0
      %423 = vmatpush1.bf16.msra.mxu0 0
      %424 = vmatprep.subr.bf16.mxu0 0
      %425 = vmatpush1.bf16.msra.mxu0 0
      %426 = vmatprep.subr.bf16.mxu0 0
      %427 = vmatpush1.bf16.msra.mxu0 0
      %428 = vmatprep.subr.bf16.mxu0 0
      %429 = vmatpush1.bf16.msra.mxu0 0
      %430 = vmatprep.subr.bf16.mxu0 0
      %431 = vmatpush1.bf16.msra.mxu0 0
      %432 = vmatprep.mubr.bf16.mxu0 0
      %433 = vmatmul.mubr.bf16.gmra.mrb[0].mxu0 %v385
      %v434 = vpop.f32.mrb[0].mxu0
      %v435 = vadd.f32 0.0, %v434
      %v436 = vpop.f32.mrb[0].mxu0
      %v437 = vpop.f32.mrb[0].mxu0
      %v438 = vadd.f32 0.0, %v437
      %v439 = vpop.f32.mrb[0].mxu0
      %440 = vmatprep.mubr.bf16.mxu0 0
      %441 = vmatmul.mubr.bf16.gmra.mrb[0].mxu0 %v388
      %v442 = vpop.f32.mrb[0].mxu0
      %v443 = vadd.f32 0.0, %v442
      %v444 = vpop.f32.mrb[0].mxu0
      %v445 = vpop.f32.mrb[0].mxu0
      %v446 = vadd.f32 0.0, %v445
      %v447 = vpop.f32.mrb[0].mxu0
      %448 = vmatprep.mubr.bf16.mxu0 0
      %449 = vmatmul.mubr.bf16.gmra.mrb[0].mxu0 %v391
      %v450 = vpop.f32.mrb[0].mxu0
      %v451 = vadd.f32 0.0, %v450
      %v452 = vpop.f32.mrb[0].mxu0
      %v453 = vpop.f32.mrb[0].mxu0
      %v454 = vadd.f32 0.0, %v453
      %v455 = vpop.f32.mrb[0].mxu0
      %456 = vmatprep.mubr.bf16.mxu0 0
      %457 = vmatmul.mubr.bf16.gmra.mrb[0].mxu0 %v394
      %v458 = vpop.f32.mrb[0].mxu0
      %v459 = vadd.f32 0.0, %v458
      %v460 = vpop.f32.mrb[0].mxu0
      %v461 = vpop.f32.mrb[0].mxu0
      %v462 = vadd.f32 0.0, %v461
      %v463 = vpop.f32.mrb[0].mxu0
      %464 = vdwg.mxu0
      %v466 = vsel %vm383, %v323, 0
      %v469 = vsel %vm383, %v324, 0
      %v472 = vsel %vm383, %v325, 0
      %v475 = vsel %vm383, %v326, 0
      %v478 = vsel %vm396, %v327, 0
      %480 = vmatprep.subr.bf16.mxu0 0
      %481 = vmatpush1.bf16.msra.mxu0 %v478
      %482 = vmatprep.subr.bf16.mxu0 0
      %483 = vmatpush1.bf16.msra.mxu0 0
      %484 = vmatprep.subr.bf16.mxu0 0
      %485 = vmatpush1.bf16.msra.mxu0 0
      %486 = vmatprep.subr.bf16.mxu0 0
      %487 = vmatpush1.bf16.msra.mxu0 0
      %488 = vmatprep.subr.bf16.mxu0 0
      %489 = vmatpush1.bf16.msra.mxu0 0
      %490 = vmatprep.subr.bf16.mxu0 0
      %491 = vmatpush1.bf16.msra.mxu0 0
      %492 = vmatprep.subr.bf16.mxu0 0
      %493 = vmatpush1.bf16.msra.mxu0 0
      %494 = vmatprep.subr.bf16.mxu0 0
      %495 = vmatpush1.bf16.msra.mxu0 0
      %496 = vmatprep.subr.bf16.mxu0 0
      %497 = vmatpush1.bf16.msra.mxu0 0
      %498 = vmatprep.subr.bf16.mxu0 0
      %499 = vmatpush1.bf16.msra.mxu0 0
      %500 = vmatprep.subr.bf16.mxu0 0
      %501 = vmatpush1.bf16.msra.mxu0 0
      %502 = vmatprep.subr.bf16.mxu0 0
      %503 = vmatpush1.bf16.msra.mxu0 0
      %504 = vmatprep.subr.bf16.mxu0 0
      %505 = vmatpush1.bf16.msra.mxu0 0
      %506 = vmatprep.subr.bf16.mxu0 0
      %507 = vmatpush1.bf16.msra.mxu0 0
      %508 = vmatprep.subr.bf16.mxu0 0
      %509 = vmatpush1.bf16.msra.mxu0 0
      %510 = vmatprep.subr.bf16.mxu0 0
      %511 = vmatpush1.bf16.msra.mxu0 0
      %512 = vmatprep.mubr.bf16.mxu0 0
      %513 = vmatmul.mubr.bf16.gmra.mrb[0].mxu0 %v466
      %v514 = vpop.f32.mrb[0].mxu0
      %v515 = vadd.f32 %v435, %v514
      %v516 = vpop.f32.mrb[0].mxu0
      %v517 = vpop.f32.mrb[0].mxu0
      %v518 = vadd.f32 %v438, %v517
      %v519 = vpop.f32.mrb[0].mxu0
      %520 = vmatprep.mubr.bf16.mxu0 0
      %521 = vmatmul.mubr.bf16.gmra.mrb[0].mxu0 %v469
      %v522 = vpop.f32.mrb[0].mxu0
      %v523 = vadd.f32 %v443, %v522
      %v524 = vpop.f32.mrb[0].mxu0
      %v525 = vpop.f32.mrb[0].mxu0
      %v526 = vadd.f32 %v446, %v525
      %v527 = vpop.f32.mrb[0].mxu0
      %528 = vmatprep.mubr.bf16.mxu0 0
      %529 = vmatmul.mubr.bf16.gmra.mrb[0].mxu0 %v472
      %v530 = vpop.f32.mrb[0].mxu0
      %v531 = vadd.f32 %v451, %v530
      %v532 = vpop.f32.mrb[0].mxu0
      %v533 = vpop.f32.mrb[0].mxu0
      %v534 = vadd.f32 %v454, %v533
      %v535 = vpop.f32.mrb[0].mxu0
      %536 = vmatprep.mubr.bf16.mxu0 0
      %537 = vmatmul.mubr.bf16.gmra.mrb[0].mxu0 %v475
      %v538 = vpop.f32.mrb[0].mxu0
      %v539 = vadd.f32 %v459, %v538
      %v540 = vpop.f32.mrb[0].mxu0
      %v541 = vpop.f32.mrb[0].mxu0
      %v542 = vadd.f32 %v462, %v541
      %v543 = vpop.f32.mrb[0].mxu0
      %544 = vdwg.mxu0
      %v553 = vrot.slane %v272, 1
      %v554 = vsel %vm344, %v553, %v345
      %v555 = vrot.slane %v275, 1
      %v556 = vsel %vm344, %v555, %v348
      %v557 = vrot.slane %v278, 1
      %v558 = vsel %vm344, %v557, %v351
      %v559 = vrot.slane %v281, 1
      %v560 = vsel %vm344, %v559, %v354
      %v561 = vrot.slane %v284, 1
      %v562 = vsel %vm344, %v561, %v357
      %v563 = vrot.slane %v287, 1
      %v564 = vsel %vm344, %v563, %v360
      %v565 = vrot.slane %v290, 1
      %v566 = vsel %vm344, %v565, %v363
      %v567 = vrot.slane %v293, 1
      %v568 = vsel %vm344, %v567, %v366
      %v577 = vpack.c.bf16 %v556, %v554
      %v578 = vpack.c.bf16 %v560, %v558
      %v579 = vpack.c.bf16 %v564, %v562
      %v580 = vpack.c.bf16 %v568, %v566
      %s581 = scalar_lea.vmem %s1, 4
      %v582 = vld [vmem:[%s581] sm:$0x3]
      %v584 = vsel %vm383, %v577, 0
      %v587 = vsel %vm383, %v578, 0
      %v590 = vsel %vm383, %v579, 0
      %v593 = vsel %vm383, %v580, 0
      %v596 = vsel %vm396, %v582, 0
      %598 = vmatprep.subr.bf16.mxu0 0
      %599 = vmatpush1.bf16.msra.mxu0 %v596
      %600 = vmatprep.subr.bf16.mxu0 0
      %601 = vmatpush1.bf16.msra.mxu0 0
      %602 = vmatprep.subr.bf16.mxu0 0
      %603 = vmatpush1.bf16.msra.mxu0 0
      %604 = vmatprep.subr.bf16.mxu0 0
      %605 = vmatpush1.bf16.msra.mxu0 0
      %606 = vmatprep.subr.bf16.mxu0 0
      %607 = vmatpush1.bf16.msra.mxu0 0
      %608 = vmatprep.subr.bf16.mxu0 0
      %609 = vmatpush1.bf16.msra.mxu0 0
      %610 = vmatprep.subr.bf16.mxu0 0
      %611 = vmatpush1.bf16.msra.mxu0 0
      %612 = vmatprep.subr.bf16.mxu0 0
      %613 = vmatpush1.bf16.msra.mxu0 0
      %614 = vmatprep.subr.bf16.mxu0 0
      %615 = vmatpush1.bf16.msra.mxu0 0
      %616 = vmatprep.subr.bf16.mxu0 0
      %617 = vmatpush1.bf16.msra.mxu0 0
      %618 = vmatprep.subr.bf16.mxu0 0
      %619 = vmatpush1.bf16.msra.mxu0 0
      %620 = vmatprep.subr.bf16.mxu0 0
      %621 = vmatpush1.bf16.msra.mxu0 0
      %622 = vmatprep.subr.bf16.mxu0 0
      %623 = vmatpush1.bf16.msra.mxu0 0
      %624 = vmatprep.subr.bf16.mxu0 0
      %625 = vmatpush1.bf16.msra.mxu0 0
      %626 = vmatprep.subr.bf16.mxu0 0
      %627 = vmatpush1.bf16.msra.mxu0 0
      %628 = vmatprep.subr.bf16.mxu0 0
      %629 = vmatpush1.bf16.msra.mxu0 0
      %630 = vmatprep.mubr.bf16.mxu0 0
      %631 = vmatmul.mubr.bf16.gmra.mrb[0].mxu0 %v584
      %v632 = vpop.f32.mrb[0].mxu0
      %v633 = vadd.f32 0.0, %v632
      %v634 = vpop.f32.mrb[0].mxu0
      %v635 = vpop.f32.mrb[0].mxu0
      %v636 = vadd.f32 0.0, %v635
      %v637 = vpop.f32.mrb[0].mxu0
      %638 = vmatprep.mubr.bf16.mxu0 0
      %639 = vmatmul.mubr.bf16.gmra.mrb[0].mxu0 %v587
      %v640 = vpop.f32.mrb[0].mxu0
      %v641 = vadd.f32 0.0, %v640
      %v642 = vpop.f32.mrb[0].mxu0
      %v643 = vpop.f32.mrb[0].mxu0
      %v644 = vadd.f32 0.0, %v643
      %v645 = vpop.f32.mrb[0].mxu0
      %646 = vmatprep.mubr.bf16.mxu0 0
      %647 = vmatmul.mubr.bf16.gmra.mrb[0].mxu0 %v590
      %v648 = vpop.f32.mrb[0].mxu0
      %v649 = vadd.f32 0.0, %v648
      %v650 = vpop.f32.mrb[0].mxu0
      %v651 = vpop.f32.mrb[0].mxu0
      %v652 = vadd.f32 0.0, %v651
      %v653 = vpop.f32.mrb[0].mxu0
      %654 = vmatprep.mubr.bf16.mxu0 0
      %655 = vmatmul.mubr.bf16.gmra.mrb[0].mxu0 %v593
      %v656 = vpop.f32.mrb[0].mxu0
      %v657 = vadd.f32 0.0, %v656
      %v658 = vpop.f32.mrb[0].mxu0
      %v659 = vpop.f32.mrb[0].mxu0
      %v660 = vadd.f32 0.0, %v659
      %v661 = vpop.f32.mrb[0].mxu0
      %662 = vdwg.mxu0
      %v663 = vadd.f32 %v515, %v633
      %v664 = vadd.f32 %v518, %v636
      %v665 = vadd.f32 %v523, %v641
      %v666 = vadd.f32 %v526, %v644
      %v667 = vadd.f32 %v531, %v649
      %v668 = vadd.f32 %v534, %v652
      %v669 = vadd.f32 %v539, %v657
      %v670 = vadd.f32 %v542, %v660
      %v671 = vpack.c.bf16 %v302, %v299
      %v672 = vpack.c.bf16 %v308, %v305
      %v673 = vpack.c.bf16 %v314, %v311
      %v674 = vpack.c.bf16 %v320, %v317
      %s675 = scalar_lea.vmem %s1, 6
      %v676 = vld [vmem:[%s675] sm:$0x3]
      %v678 = vsel %vm383, %v671, 0
      %v681 = vsel %vm383, %v672, 0
      %v684 = vsel %vm383, %v673, 0
      %v687 = vsel %vm383, %v674, 0
      %v690 = vsel %vm396, %v676, 0
      %692 = vmatprep.subr.bf16.mxu0 0
      %693 = vmatpush1.bf16.msra.mxu0 %v690
      %694 = vmatprep.subr.bf16.mxu0 0
      %695 = vmatpush1.bf16.msra.mxu0 0
      %696 = vmatprep.subr.bf16.mxu0 0
      %697 = vmatpush1.bf16.msra.mxu0 0
      %698 = vmatprep.subr.bf16.mxu0 0
      %699 = vmatpush1.bf16.msra.mxu0 0
      %700 = vmatprep.subr.bf16.mxu0 0
      %701 = vmatpush1.bf16.msra.mxu0 0
      %702 = vmatprep.subr.bf16.mxu0 0
      %703 = vmatpush1.bf16.msra.mxu0 0
      %704 = vmatprep.subr.bf16.mxu0 0
      %705 = vmatpush1.bf16.msra.mxu0 0
      %706 = vmatprep.subr.bf16.mxu0 0
      %707 = vmatpush1.bf16.msra.mxu0 0
      %708 = vmatprep.subr.bf16.mxu0 0
      %709 = vmatpush1.bf16.msra.mxu0 0
      %710 = vmatprep.subr.bf16.mxu0 0
      %711 = vmatpush1.bf16.msra.mxu0 0
      %712 = vmatprep.subr.bf16.mxu0 0
      %713 = vmatpush1.bf16.msra.mxu0 0
      %714 = vmatprep.subr.bf16.mxu0 0
      %715 = vmatpush1.bf16.msra.mxu0 0
      %716 = vmatprep.subr.bf16.mxu0 0
      %717 = vmatpush1.bf16.msra.mxu0 0
      %718 = vmatprep.subr.bf16.mxu0 0
      %719 = vmatpush1.bf16.msra.mxu0 0
      %720 = vmatprep.subr.bf16.mxu0 0
      %721 = vmatpush1.bf16.msra.mxu0 0
      %722 = vmatprep.subr.bf16.mxu0 0
      %723 = vmatpush1.bf16.msra.mxu0 0
      %724 = vmatprep.mubr.bf16.mxu0 0
      %725 = vmatmul.mubr.bf16.gmra.mrb[0].mxu0 %v678
      %v726 = vpop.f32.mrb[0].mxu0
      %v727 = vadd.f32 0.0, %v726
      %v728 = vpop.f32.mrb[0].mxu0
      %v729 = vpop.f32.mrb[0].mxu0
      %v730 = vadd.f32 0.0, %v729
      %v731 = vpop.f32.mrb[0].mxu0
      %732 = vmatprep.mubr.bf16.mxu0 0
      %733 = vmatmul.mubr.bf16.gmra.mrb[0].mxu0 %v681
      %v734 = vpop.f32.mrb[0].mxu0
      %v735 = vadd.f32 0.0, %v734
      %v736 = vpop.f32.mrb[0].mxu0
      %v737 = vpop.f32.mrb[0].mxu0
      %v738 = vadd.f32 0.0, %v737
      %v739 = vpop.f32.mrb[0].mxu0
      %740 = vmatprep.mubr.bf16.mxu0 0
      %741 = vmatmul.mubr.bf16.gmra.mrb[0].mxu0 %v684
      %v742 = vpop.f32.mrb[0].mxu0
      %v743 = vadd.f32 0.0, %v742
      %v744 = vpop.f32.mrb[0].mxu0
      %v745 = vpop.f32.mrb[0].mxu0
      %v746 = vadd.f32 0.0, %v745
      %v747 = vpop.f32.mrb[0].mxu0
      %748 = vmatprep.mubr.bf16.mxu0 0
      %749 = vmatmul.mubr.bf16.gmra.mrb[0].mxu0 %v687
      %v750 = vpop.f32.mrb[0].mxu0
      %v751 = vadd.f32 0.0, %v750
      %v752 = vpop.f32.mrb[0].mxu0
      %v753 = vpop.f32.mrb[0].mxu0
      %v754 = vadd.f32 0.0, %v753
      %v755 = vpop.f32.mrb[0].mxu0
      %756 = vdwg.mxu0
      %v757 = vadd.f32 %v663, %v727
      %v758 = vadd.f32 %v664, %v730
      %v759 = vadd.f32 %v665, %v735
      %v760 = vadd.f32 %v666, %v738
      %v761 = vadd.f32 %v667, %v743
      %v762 = vadd.f32 %v668, %v746
      %v763 = vadd.f32 %v669, %v751
      %v764 = vadd.f32 %v670, %v754
      %v781 = vrot.slane %v300, 1
      %v782 = vrot.slane %v301, 1
      %v783 = vsel %vm344, %v781, %v782
      %v784 = vrot.slane %v303, 1
      %v785 = vrot.slane %v304, 1
      %v786 = vsel %vm344, %v784, %v785
      %v787 = vrot.slane %v306, 1
      %v788 = vrot.slane %v307, 1
      %v789 = vsel %vm344, %v787, %v788
      %v790 = vrot.slane %v309, 1
      %v791 = vrot.slane %v310, 1
      %v792 = vsel %vm344, %v790, %v791
      %v793 = vrot.slane %v312, 1
      %v794 = vrot.slane %v313, 1
      %v795 = vsel %vm344, %v793, %v794
      %v796 = vrot.slane %v315, 1
      %v797 = vrot.slane %v316, 1
      %v798 = vsel %vm344, %v796, %v797
      %v799 = vrot.slane %v318, 1
      %v800 = vrot.slane %v319, 1
      %v801 = vsel %vm344, %v799, %v800
      %v802 = vrot.slane %v321, 1
      %v803 = vrot.slane %v322, 1
      %v804 = vsel %vm344, %v802, %v803
      %v813 = vpack.c.bf16 %v786, %v783
      %v814 = vpack.c.bf16 %v792, %v789
      %v815 = vpack.c.bf16 %v798, %v795
      %v816 = vpack.c.bf16 %v804, %v801
      %s817 = scalar_lea.vmem %s1, 8
      %v818 = vld [vmem:[%s817] sm:$0x3]
      %v820 = vsel %vm383, %v813, 0
      %v823 = vsel %vm383, %v814, 0
      %v826 = vsel %vm383, %v815, 0
      %v829 = vsel %vm383, %v816, 0
      %v832 = vsel %vm396, %v818, 0
      %834 = vmatprep.subr.bf16.mxu0 0
      %835 = vmatpush1.bf16.msra.mxu0 %v832
      %836 = vmatprep.subr.bf16.mxu0 0
      %837 = vmatpush1.bf16.msra.mxu0 0
      %838 = vmatprep.subr.bf16.mxu0 0
      %839 = vmatpush1.bf16.msra.mxu0 0
      %840 = vmatprep.subr.bf16.mxu0 0
      %841 = vmatpush1.bf16.msra.mxu0 0
      %842 = vmatprep.subr.bf16.mxu0 0
      %843 = vmatpush1.bf16.msra.mxu0 0
      %844 = vmatprep.subr.bf16.mxu0 0
      %845 = vmatpush1.bf16.msra.mxu0 0
      %846 = vmatprep.subr.bf16.mxu0 0
      %847 = vmatpush1.bf16.msra.mxu0 0
      %848 = vmatprep.subr.bf16.mxu0 0
      %849 = vmatpush1.bf16.msra.mxu0 0
      %850 = vmatprep.subr.bf16.mxu0 0
      %851 = vmatpush1.bf16.msra.mxu0 0
      %852 = vmatprep.subr.bf16.mxu0 0
      %853 = vmatpush1.bf16.msra.mxu0 0
      %854 = vmatprep.subr.bf16.mxu0 0
      %855 = vmatpush1.bf16.msra.mxu0 0
      %856 = vmatprep.subr.bf16.mxu0 0
      %857 = vmatpush1.bf16.msra.mxu0 0
      %858 = vmatprep.subr.bf16.mxu0 0
      %859 = vmatpush1.bf16.msra.mxu0 0
      %860 = vmatprep.subr.bf16.mxu0 0
      %861 = vmatpush1.bf16.msra.mxu0 0
      %862 = vmatprep.subr.bf16.mxu0 0
      %863 = vmatpush1.bf16.msra.mxu0 0
      %864 = vmatprep.subr.bf16.mxu0 0
      %865 = vmatpush1.bf16.msra.mxu0 0
      %866 = vmatprep.mubr.bf16.mxu0 0
      %867 = vmatmul.mubr.bf16.gmra.mrb[0].mxu0 %v820
      %v868 = vpop.f32.mrb[0].mxu0
      %v869 = vadd.f32 0.0, %v868
      %v870 = vpop.f32.mrb[0].mxu0
      %v871 = vpop.f32.mrb[0].mxu0
      %v872 = vadd.f32 0.0, %v871
      %v873 = vpop.f32.mrb[0].mxu0
      %874 = vmatprep.mubr.bf16.mxu0 0
      %875 = vmatmul.mubr.bf16.gmra.mrb[0].mxu0 %v823
      %v876 = vpop.f32.mrb[0].mxu0
      %v877 = vadd.f32 0.0, %v876
      %v878 = vpop.f32.mrb[0].mxu0
      %v879 = vpop.f32.mrb[0].mxu0
      %v880 = vadd.f32 0.0, %v879
      %v881 = vpop.f32.mrb[0].mxu0
      %882 = vmatprep.mubr.bf16.mxu0 0
      %883 = vmatmul.mubr.bf16.gmra.mrb[0].mxu0 %v826
      %v884 = vpop.f32.mrb[0].mxu0
      %v885 = vadd.f32 0.0, %v884
      %v886 = vpop.f32.mrb[0].mxu0
      %v887 = vpop.f32.mrb[0].mxu0
      %v888 = vadd.f32 0.0, %v887
      %v889 = vpop.f32.mrb[0].mxu0
      %890 = vmatprep.mubr.bf16.mxu0 0
      %891 = vmatmul.mubr.bf16.gmra.mrb[0].mxu0 %v829
      %v892 = vpop.f32.mrb[0].mxu0
      %v893 = vadd.f32 0.0, %v892
      %v894 = vpop.f32.mrb[0].mxu0
      %v895 = vpop.f32.mrb[0].mxu0
      %v896 = vadd.f32 0.0, %v895
      %v897 = vpop.f32.mrb[0].mxu0
      %898 = vdwg.mxu0
      %v899 = vadd.f32 %v757, %v869
      %v900 = vadd.f32 %v758, %v872
      %v901 = vadd.f32 %v759, %v877
      %v902 = vadd.f32 %v760, %v880
      %v903 = vadd.f32 %v761, %v885
      %v904 = vadd.f32 %v762, %v888
      %v905 = vadd.f32 %v763, %v893
      %v906 = vadd.f32 %v764, %v896
      %v915 = vrot.slane %v299, 1
      %v916 = vsel %vm344, %v915, %v781
      %v917 = vrot.slane %v302, 1
      %v918 = vsel %vm344, %v917, %v784
      %v919 = vrot.slane %v305, 1
      %v920 = vsel %vm344, %v919, %v787
      %v921 = vrot.slane %v308, 1
      %v922 = vsel %vm344, %v921, %v790
      %v923 = vrot.slane %v311, 1
      %v924 = vsel %vm344, %v923, %v793
      %v925 = vrot.slane %v314, 1
      %v926 = vsel %vm344, %v925, %v796
      %v927 = vrot.slane %v317, 1
      %v928 = vsel %vm344, %v927, %v799
      %v929 = vrot.slane %v320, 1
      %v930 = vsel %vm344, %v929, %v802
      %v939 = vpack.c.bf16 %v918, %v916
      %v940 = vpack.c.bf16 %v922, %v920
      %v941 = vpack.c.bf16 %v926, %v924
      %v942 = vpack.c.bf16 %v930, %v928
      %s943 = scalar_lea.vmem %s1, 10
      %v944 = vld [vmem:[%s943] sm:$0x3]
      %v946 = vsel %vm383, %v939, 0
      %v949 = vsel %vm383, %v940, 0
      %v952 = vsel %vm383, %v941, 0
      %v955 = vsel %vm383, %v942, 0
      %v958 = vsel %vm396, %v944, 0
      %960 = vmatprep.subr.bf16.mxu0 0
      %961 = vmatpush1.bf16.msra.mxu0 %v958
      %962 = vmatprep.subr.bf16.mxu0 0
      %963 = vmatpush1.bf16.msra.mxu0 0
      %964 = vmatprep.subr.bf16.mxu0 0
      %965 = vmatpush1.bf16.msra.mxu0 0
      %966 = vmatprep.subr.bf16.mxu0 0
      %967 = vmatpush1.bf16.msra.mxu0 0
      %968 = vmatprep.subr.bf16.mxu0 0
      %969 = vmatpush1.bf16.msra.mxu0 0
      %970 = vmatprep.subr.bf16.mxu0 0
      %971 = vmatpush1.bf16.msra.mxu0 0
      %972 = vmatprep.subr.bf16.mxu0 0
      %973 = vmatpush1.bf16.msra.mxu0 0
      %974 = vmatprep.subr.bf16.mxu0 0
      %975 = vmatpush1.bf16.msra.mxu0 0
      %976 = vmatprep.subr.bf16.mxu0 0
      %977 = vmatpush1.bf16.msra.mxu0 0
      %978 = vmatprep.subr.bf16.mxu0 0
      %979 = vmatpush1.bf16.msra.mxu0 0
      %980 = vmatprep.subr.bf16.mxu0 0
      %981 = vmatpush1.bf16.msra.mxu0 0
      %982 = vmatprep.subr.bf16.mxu0 0
      %983 = vmatpush1.bf16.msra.mxu0 0
      %984 = vmatprep.subr.bf16.mxu0 0
      %985 = vmatpush1.bf16.msra.mxu0 0
      %986 = vmatprep.subr.bf16.mxu0 0
      %987 = vmatpush1.bf16.msra.mxu0 0
      %988 = vmatprep.subr.bf16.mxu0 0
      %989 = vmatpush1.bf16.msra.mxu0 0
      %990 = vmatprep.subr.bf16.mxu0 0
      %991 = vmatpush1.bf16.msra.mxu0 0
      %992 = vmatprep.mubr.bf16.mxu0 0
      %993 = vmatmul.mubr.bf16.gmra.mrb[0].mxu0 %v946
      %v994 = vpop.f32.mrb[0].mxu0
      %v995 = vadd.f32 0.0, %v994
      %v996 = vpop.f32.mrb[0].mxu0
      %v997 = vpop.f32.mrb[0].mxu0
      %v998 = vadd.f32 0.0, %v997
      %v999 = vpop.f32.mrb[0].mxu0
      %1000 = vmatprep.mubr.bf16.mxu0 0
      %1001 = vmatmul.mubr.bf16.gmra.mrb[0].mxu0 %v949
      %v1002 = vpop.f32.mrb[0].mxu0
      %v1003 = vadd.f32 0.0, %v1002
      %v1004 = vpop.f32.mrb[0].mxu0
      %v1005 = vpop.f32.mrb[0].mxu0
      %v1006 = vadd.f32 0.0, %v1005
      %v1007 = vpop.f32.mrb[0].mxu0
      %1008 = vmatprep.mubr.bf16.mxu0 0
      %1009 = vmatmul.mubr.bf16.gmra.mrb[0].mxu0 %v952
      %v1010 = vpop.f32.mrb[0].mxu0
      %v1011 = vadd.f32 0.0, %v1010
      %v1012 = vpop.f32.mrb[0].mxu0
      %v1013 = vpop.f32.mrb[0].mxu0
      %v1014 = vadd.f32 0.0, %v1013
      %v1015 = vpop.f32.mrb[0].mxu0
      %1016 = vmatprep.mubr.bf16.mxu0 0
      %1017 = vmatmul.mubr.bf16.gmra.mrb[0].mxu0 %v955
      %v1018 = vpop.f32.mrb[0].mxu0
      %v1019 = vadd.f32 0.0, %v1018
      %v1020 = vpop.f32.mrb[0].mxu0
      %v1021 = vpop.f32.mrb[0].mxu0
      %v1022 = vadd.f32 0.0, %v1021
      %v1023 = vpop.f32.mrb[0].mxu0
      %1024 = vdwg.mxu0
      %v1025 = vadd.f32 %v899, %v995
      %v1026 = vadd.f32 %v900, %v998
      %v1027 = vadd.f32 %v901, %v1003
      %v1028 = vadd.f32 %v902, %v1006
      %v1029 = vadd.f32 %v903, %v1011
      %v1030 = vadd.f32 %v904, %v1014
      %v1031 = vadd.f32 %v905, %v1019
      %v1032 = vadd.f32 %v906, %v1022
      %v1033 = vpack.c.bf16 %v278, %v275
      %v1034 = vpack.c.bf16 %v284, %v281
      %v1035 = vpack.c.bf16 %v290, %v287
      %v1036 = vpack.c.bf16 %v296, %v293
      %s1037 = scalar_lea.vmem %s1, 12
      %v1038 = vld [vmem:[%s1037] sm:$0x3]
      %v1040 = vsel %vm383, %v1033, 0
      %v1043 = vsel %vm383, %v1034, 0
      %v1046 = vsel %vm383, %v1035, 0
      %v1049 = vsel %vm383, %v1036, 0
      %v1052 = vsel %vm396, %v1038, 0
      %1054 = vmatprep.subr.bf16.mxu0 0
      %1055 = vmatpush1.bf16.msra.mxu0 %v1052
      %1056 = vmatprep.subr.bf16.mxu0 0
      %1057 = vmatpush1.bf16.msra.mxu0 0
      %1058 = vmatprep.subr.bf16.mxu0 0
      %1059 = vmatpush1.bf16.msra.mxu0 0
      %1060 = vmatprep.subr.bf16.mxu0 0
      %1061 = vmatpush1.bf16.msra.mxu0 0
      %1062 = vmatprep.subr.bf16.mxu0 0
      %1063 = vmatpush1.bf16.msra.mxu0 0
      %1064 = vmatprep.subr.bf16.mxu0 0
      %1065 = vmatpush1.bf16.msra.mxu0 0
      %1066 = vmatprep.subr.bf16.mxu0 0
      %1067 = vmatpush1.bf16.msra.mxu0 0
      %1068 = vmatprep.subr.bf16.mxu0 0
      %1069 = vmatpush1.bf16.msra.mxu0 0
      %1070 = vmatprep.subr.bf16.mxu0 0
      %1071 = vmatpush1.bf16.msra.mxu0 0
      %1072 = vmatprep.subr.bf16.mxu0 0
      %1073 = vmatpush1.bf16.msra.mxu0 0
      %1074 = vmatprep.subr.bf16.mxu0 0
      %1075 = vmatpush1.bf16.msra.mxu0 0
      %1076 = vmatprep.subr.bf16.mxu0 0
      %1077 = vmatpush1.bf16.msra.mxu0 0
      %1078 = vmatprep.subr.bf16.mxu0 0
      %1079 = vmatpush1.bf16.msra.mxu0 0
      %1080 = vmatprep.subr.bf16.mxu0 0
      %1081 = vmatpush1.bf16.msra.mxu0 0
      %1082 = vmatprep.subr.bf16.mxu0 0
      %1083 = vmatpush1.bf16.msra.mxu0 0
      %1084 = vmatprep.subr.bf16.mxu0 0
      %1085 = vmatpush1.bf16.msra.mxu0 0
      %1086 = vmatprep.mubr.bf16.mxu0 0
      %1087 = vmatmul.mubr.bf16.gmra.mrb[0].mxu0 %v1040
      %v1088 = vpop.f32.mrb[0].mxu0
      %v1089 = vadd.f32 0.0, %v1088
      %v1090 = vpop.f32.mrb[0].mxu0
      %v1091 = vpop.f32.mrb[0].mxu0
      %v1092 = vadd.f32 0.0, %v1091
      %v1093 = vpop.f32.mrb[0].mxu0
      %1094 = vmatprep.mubr.bf16.mxu0 0
      %1095 = vmatmul.mubr.bf16.gmra.mrb[0].mxu0 %v1043
      %v1096 = vpop.f32.mrb[0].mxu0
      %v1097 = vadd.f32 0.0, %v1096
      %v1098 = vpop.f32.mrb[0].mxu0
      %v1099 = vpop.f32.mrb[0].mxu0
      %v1100 = vadd.f32 0.0, %v1099
      %v1101 = vpop.f32.mrb[0].mxu0
      %1102 = vmatprep.mubr.bf16.mxu0 0
      %1103 = vmatmul.mubr.bf16.gmra.mrb[0].mxu0 %v1046
      %v1104 = vpop.f32.mrb[0].mxu0
      %v1105 = vadd.f32 0.0, %v1104
      %v1106 = vpop.f32.mrb[0].mxu0
      %v1107 = vpop.f32.mrb[0].mxu0
      %v1108 = vadd.f32 0.0, %v1107
      %v1109 = vpop.f32.mrb[0].mxu0
      %1110 = vmatprep.mubr.bf16.mxu0 0
      %1111 = vmatmul.mubr.bf16.gmra.mrb[0].mxu0 %v1049
      %v1112 = vpop.f32.mrb[0].mxu0
      %v1113 = vadd.f32 0.0, %v1112
      %v1114 = vpop.f32.mrb[0].mxu0
      %v1115 = vpop.f32.mrb[0].mxu0
      %v1116 = vadd.f32 0.0, %v1115
      %v1117 = vpop.f32.mrb[0].mxu0
      %1118 = vdwg.mxu0
      %v1119 = vadd.f32 %v1025, %v1089
      %v1120 = vadd.f32 %v1026, %v1092
      %v1121 = vadd.f32 %v1027, %v1097
      %v1122 = vadd.f32 %v1028, %v1100
      %v1123 = vadd.f32 %v1029, %v1105
      %v1124 = vadd.f32 %v1030, %v1108
      %v1125 = vadd.f32 %v1031, %v1113
      %v1126 = vadd.f32 %v1032, %v1116
      %v1129 = vrot.slane %v297, 1
      %v1130 = vrot.slane %v298, 1
      %v1131 = vsel %vm344, %v1129, %v1130
      %v1133 = vpack.c.bf16 %v353, %v350
      %v1134 = vpack.c.bf16 %v359, %v356
      %v1135 = vpack.c.bf16 %v365, %v362
      %v1136 = vpack.c.bf16 %v1131, %v368
      %s1137 = scalar_lea.vmem %s1, 14
      %v1138 = vld [vmem:[%s1137] sm:$0x3]
      %v1140 = vsel %vm383, %v1133, 0
      %v1143 = vsel %vm383, %v1134, 0
      %v1146 = vsel %vm383, %v1135, 0
      %v1149 = vsel %vm383, %v1136, 0
      %v1152 = vsel %vm396, %v1138, 0
      %1154 = vmatprep.subr.bf16.mxu0 0
      %1155 = vmatpush1.bf16.msra.mxu0 %v1152
      %1156 = vmatprep.subr.bf16.mxu0 0
      %1157 = vmatpush1.bf16.msra.mxu0 0
      %1158 = vmatprep.subr.bf16.mxu0 0
      %1159 = vmatpush1.bf16.msra.mxu0 0
      %1160 = vmatprep.subr.bf16.mxu0 0
      %1161 = vmatpush1.bf16.msra.mxu0 0
      %1162 = vmatprep.subr.bf16.mxu0 0
      %1163 = vmatpush1.bf16.msra.mxu0 0
      %1164 = vmatprep.subr.bf16.mxu0 0
      %1165 = vmatpush1.bf16.msra.mxu0 0
      %1166 = vmatprep.subr.bf16.mxu0 0
      %1167 = vmatpush1.bf16.msra.mxu0 0
      %1168 = vmatprep.subr.bf16.mxu0 0
      %1169 = vmatpush1.bf16.msra.mxu0 0
      %1170 = vmatprep.subr.bf16.mxu0 0
      %1171 = vmatpush1.bf16.msra.mxu0 0
      %1172 = vmatprep.subr.bf16.mxu0 0
      %1173 = vmatpush1.bf16.msra.mxu0 0
      %1174 = vmatprep.subr.bf16.mxu0 0
      %1175 = vmatpush1.bf16.msra.mxu0 0
      %1176 = vmatprep.subr.bf16.mxu0 0
      %1177 = vmatpush1.bf16.msra.mxu0 0
      %1178 = vmatprep.subr.bf16.mxu0 0
      %1179 = vmatpush1.bf16.msra.mxu0 0
      %1180 = vmatprep.subr.bf16.mxu0 0
      %1181 = vmatpush1.bf16.msra.mxu0 0
      %1182 = vmatprep.subr.bf16.mxu0 0
      %1183 = vmatpush1.bf16.msra.mxu0 0
      %1184 = vmatprep.subr.bf16.mxu0 0
      %1185 = vmatpush1.bf16.msra.mxu0 0
      %1186 = vmatprep.mubr.bf16.mxu0 0
      %1187 = vmatmul.mubr.bf16.gmra.mrb[0].mxu0 %v1140
      %v1188 = vpop.f32.mrb[0].mxu0
      %v1189 = vadd.f32 0.0, %v1188
      %v1190 = vpop.f32.mrb[0].mxu0
      %v1191 = vpop.f32.mrb[0].mxu0
      %v1192 = vadd.f32 0.0, %v1191
      %v1193 = vpop.f32.mrb[0].mxu0
      %1194 = vmatprep.mubr.bf16.mxu0 0
      %1195 = vmatmul.mubr.bf16.gmra.mrb[0].mxu0 %v1143
      %v1196 = vpop.f32.mrb[0].mxu0
      %v1197 = vadd.f32 0.0, %v1196
      %v1198 = vpop.f32.mrb[0].mxu0
      %v1199 = vpop.f32.mrb[0].mxu0
      %v1200 = vadd.f32 0.0, %v1199
      %v1201 = vpop.f32.mrb[0].mxu0
      %1202 = vmatprep.mubr.bf16.mxu0 0
      %1203 = vmatmul.mubr.bf16.gmra.mrb[0].mxu0 %v1146
      %v1204 = vpop.f32.mrb[0].mxu0
      %v1205 = vadd.f32 0.0, %v1204
      %v1206 = vpop.f32.mrb[0].mxu0
      %v1207 = vpop.f32.mrb[0].mxu0
      %v1208 = vadd.f32 0.0, %v1207
      %v1209 = vpop.f32.mrb[0].mxu0
      %1210 = vmatprep.mubr.bf16.mxu0 0
      %1211 = vmatmul.mubr.bf16.gmra.mrb[0].mxu0 %v1149
      %v1212 = vpop.f32.mrb[0].mxu0
      %v1213 = vadd.f32 0.0, %v1212
      %v1214 = vpop.f32.mrb[0].mxu0
      %v1215 = vpop.f32.mrb[0].mxu0
      %v1216 = vadd.f32 0.0, %v1215
      %v1217 = vpop.f32.mrb[0].mxu0
      %1218 = vdwg.mxu0
      %v1219 = vadd.f32 %v1119, %v1189
      %v1220 = vadd.f32 %v1120, %v1192
      %v1221 = vadd.f32 %v1121, %v1197
      %v1222 = vadd.f32 %v1122, %v1200
      %v1223 = vadd.f32 %v1123, %v1205
      %v1224 = vadd.f32 %v1124, %v1208
      %v1225 = vadd.f32 %v1125, %v1213
      %v1226 = vadd.f32 %v1126, %v1216
      %v1228 = vrot.slane %v296, 1
      %v1229 = vsel %vm344, %v1228, %v1129
      %v1231 = vpack.c.bf16 %v558, %v556
      %v1232 = vpack.c.bf16 %v562, %v560
      %v1233 = vpack.c.bf16 %v566, %v564
      %v1234 = vpack.c.bf16 %v1229, %v568
      %s1235 = scalar_lea.vmem %s1, 16
      %v1236 = vld [vmem:[%s1235] sm:$0x3]
      %v1238 = vsel %vm383, %v1231, 0
      %v1241 = vsel %vm383, %v1232, 0
      %v1244 = vsel %vm383, %v1233, 0
      %v1247 = vsel %vm383, %v1234, 0
      %v1250 = vsel %vm396, %v1236, 0
      %1252 = vmatprep.subr.bf16.mxu0 0
      %1253 = vmatpush1.bf16.msra.mxu0 %v1250
      %1254 = vmatprep.subr.bf16.mxu0 0
      %1255 = vmatpush1.bf16.msra.mxu0 0
      %1256 = vmatprep.subr.bf16.mxu0 0
      %1257 = vmatpush1.bf16.msra.mxu0 0
      %1258 = vmatprep.subr.bf16.mxu0 0
      %1259 = vmatpush1.bf16.msra.mxu0 0
      %1260 = vmatprep.subr.bf16.mxu0 0
      %1261 = vmatpush1.bf16.msra.mxu0 0
      %1262 = vmatprep.subr.bf16.mxu0 0
      %1263 = vmatpush1.bf16.msra.mxu0 0
      %1264 = vmatprep.subr.bf16.mxu0 0
      %1265 = vmatpush1.bf16.msra.mxu0 0
      %1266 = vmatprep.subr.bf16.mxu0 0
      %1267 = vmatpush1.bf16.msra.mxu0 0
      %1268 = vmatprep.subr.bf16.mxu0 0
      %1269 = vmatpush1.bf16.msra.mxu0 0
      %1270 = vmatprep.subr.bf16.mxu0 0
      %1271 = vmatpush1.bf16.msra.mxu0 0
      %1272 = vmatprep.subr.bf16.mxu0 0
      %1273 = vmatpush1.bf16.msra.mxu0 0
      %1274 = vmatprep.subr.bf16.mxu0 0
      %1275 = vmatpush1.bf16.msra.mxu0 0
      %1276 = vmatprep.subr.bf16.mxu0 0
      %1277 = vmatpush1.bf16.msra.mxu0 0
      %1278 = vmatprep.subr.bf16.mxu0 0
      %1279 = vmatpush1.bf16.msra.mxu0 0
      %1280 = vmatprep.subr.bf16.mxu0 0
      %1281 = vmatpush1.bf16.msra.mxu0 0
      %1282 = vmatprep.subr.bf16.mxu0 0
      %1283 = vmatpush1.bf16.msra.mxu0 0
      %1284 = vmatprep.mubr.bf16.mxu0 0
      %1285 = vmatmul.mubr.bf16.gmra.mrb[0].mxu0 %v1238
      %v1286 = vpop.f32.mrb[0].mxu0
      %v1287 = vadd.f32 0.0, %v1286
      %v1288 = vpop.f32.mrb[0].mxu0
      %v1289 = vpop.f32.mrb[0].mxu0
      %v1290 = vadd.f32 0.0, %v1289
      %v1291 = vpop.f32.mrb[0].mxu0
      %1292 = vmatprep.mubr.bf16.mxu0 0
      %1293 = vmatmul.mubr.bf16.gmra.mrb[0].mxu0 %v1241
      %v1294 = vpop.f32.mrb[0].mxu0
      %v1295 = vadd.f32 0.0, %v1294
      %v1296 = vpop.f32.mrb[0].mxu0
      %v1297 = vpop.f32.mrb[0].mxu0
      %v1298 = vadd.f32 0.0, %v1297
      %v1299 = vpop.f32.mrb[0].mxu0
      %1300 = vmatprep.mubr.bf16.mxu0 0
      %1301 = vmatmul.mubr.bf16.gmra.mrb[0].mxu0 %v1244
      %v1302 = vpop.f32.mrb[0].mxu0
      %v1303 = vadd.f32 0.0, %v1302
      %v1304 = vpop.f32.mrb[0].mxu0
      %v1305 = vpop.f32.mrb[0].mxu0
      %v1306 = vadd.f32 0.0, %v1305
      %v1307 = vpop.f32.mrb[0].mxu0
      %1308 = vmatprep.mubr.bf16.mxu0 0
      %1309 = vmatmul.mubr.bf16.gmra.mrb[0].mxu0 %v1247
      %v1310 = vpop.f32.mrb[0].mxu0
      %v1311 = vadd.f32 0.0, %v1310
      %v1312 = vpop.f32.mrb[0].mxu0
      %v1313 = vpop.f32.mrb[0].mxu0
      %v1314 = vadd.f32 0.0, %v1313
      %v1315 = vpop.f32.mrb[0].mxu0
      %1316 = vdwg.mxu0
      %v1317 = vadd.f32 %v1219, %v1287
      %v1318 = vadd.f32 %v1220, %v1290
      %v1319 = vadd.f32 %v1221, %v1295
      %v1320 = vadd.f32 %v1222, %v1298
      %v1321 = vadd.f32 %v1223, %v1303
      %v1322 = vadd.f32 %v1224, %v1306
      %v1323 = vadd.f32 %v1225, %v1311
      %v1324 = vadd.f32 %v1226, %v1314
      %1325 = vst [vmem:[%s210] sm:$0xff] %v1317
      %1326 = vst [vmem:[%s210 + $0x8] sm:$0xff] %v1318
      %1327 = vst [vmem:[%s210 + $0x10] sm:$0xff] %v1319
      %1328 = vst [vmem:[%s210 + $0x18] sm:$0xff] %v1320
      %1329 = vst [vmem:[%s210 + $0x20] sm:$0xff] %v1321
      %1330 = vst [vmem:[%s210 + $0x28] sm:$0xff] %v1322
      %1331 = vst [vmem:[%s210 + $0x30] sm:$0xff] %v1323
      %1332 = vst [vmem:[%s210 + $0x38] sm:$0xff] %v1324
      %v1333 = vadd.f32 %v1317, %v1318
      %v1334 = vadd.f32 %v1333, %v1319
      %v1335 = vadd.f32 %v1334, %v1320
      %v1336 = vadd.f32 %v1335, %v1321
      %v1337 = vadd.f32 %v1336, %v1322
      %v1338 = vadd.f32 %v1337, %v1323
      %v1339 = vadd.f32 %v1338, %v1324
      %v1340 = vrot.slane %v1339, 4
      %v1341 = vadd.f32 %v1339, %v1340
      %v1342 = vrot.slane %v1341, 2
      %v1343 = vadd.f32 %v1341, %v1342
      %v1344 = vrot.slane %v1343, 1
      %v1345 = vadd.f32 %v1343, %v1344
      %v1346 = vmul.f32 %v1317, %v1317
      %v1347 = vmul.f32 %v1318, %v1318
      %v1348 = vmul.f32 %v1319, %v1319
      %v1349 = vmul.f32 %v1320, %v1320
      %v1350 = vmul.f32 %v1321, %v1321
      %v1351 = vmul.f32 %v1322, %v1322
      %v1352 = vmul.f32 %v1323, %v1323
      %v1353 = vmul.f32 %v1324, %v1324
      %v1354 = vadd.f32 %v1346, %v1347
      %v1355 = vadd.f32 %v1354, %v1348
      %v1356 = vadd.f32 %v1355, %v1349
      %v1357 = vadd.f32 %v1356, %v1350
      %v1358 = vadd.f32 %v1357, %v1351
      %v1359 = vadd.f32 %v1358, %v1352
      %v1360 = vadd.f32 %v1359, %v1353
      %v1361 = vrot.slane %v1360, 4
      %v1362 = vadd.f32 %v1360, %v1361
      %v1363 = vrot.slane %v1362, 2
      %v1364 = vadd.f32 %v1362, %v1363
      %v1365 = vrot.slane %v1364, 1
      %v1366 = vadd.f32 %v1364, %v1365
      %1367 = vst [vmem:[%s215] sm:$0xff] %v1345
      %1368 = vst [vmem:[%s219] sm:$0xff] %v1366
      %s1369 = smul.u32 8, %s16
      %p1370 = scmp.lt.s32.totalorder %s1369, 15
      %s1371 = scalar_select %p1370, %s1369, 15
      %s1372 = smul.addr %s1371, 8
      %s1373 = scalar_lea.vmem %s2, %s1372
      %p1374 = scmp.lt.s32.totalorder %s16, 1
      %s1375 = scalar_select %p1374, %s16, 1
      %s1376 = smul.addr %s1375, 8
      %s1377 = scalar_lea.vmem %s3, %s1376
      %p1378 = scmp.lt.s32.totalorder %s16, 1
      %s1379 = scalar_select %p1378, %s16, 1
      %s1380 = smul.addr %s1379, 8
      %s1381 = scalar_lea.vmem %s4, %s1380
      // Predicated region
      $region29: #{_lambda_.6} parent=27 // pred_check
        %p1382 = pneg %p81
      $region30: #{_lambda_.6} parent=27 // pred_check_branch
        %1384 = sbr.rel (%p1382) target = $region32
      $region31: #{_lambda_.6} parent=27 // pred_region
        %s1385 = smul.u32 8, %s16
      $region32: #{_lambda_.6} parent=27 // pred_fallthru
        _
      // Predicated region
      $region33: #{_lambda_.6} parent=27 // pred_check
        %p1386 = pneg %p107
      $region34: #{_lambda_.6} parent=27 // pred_check_branch
        %1388 = sbr.rel (%p1386) target = $region36
      $region35: #{_lambda_.6} parent=27 // pred_region
        _
      $region36: #{_lambda_.6} parent=27 // pred_fallthru
        _
      // Predicated region
      $region37: #{_lambda_.6} parent=27 // pred_check
        %p1389 = pneg %p133
      $region38: #{_lambda_.6} parent=27 // pred_check_branch
        %1391 = sbr.rel (%p1389) target = $region40
      $region39: #{_lambda_.6} parent=27 // pred_region
        _
      $region40: #{_lambda_.6} parent=27 // pred_fallthru
        _
    $region28: #{_lambda_.6} parent=5 // pred_fallthru
      _
    %p1392 = scmp.le.s32.totalorder 2, %s11
    // Predicated region
    $region41: #{_lambda_.6} parent=5 // pred_check
      %p1393 = pneg %p1392
    $region42: #{_lambda_.6} parent=5 // pred_check_branch
      %1395 = sbr.rel (%p1393) target = $region44
    $region43: #{_lambda_.6} parent=5 // pred_region
      %s1396 = ssub.s32 %s11, 2
      // Predicated region
      $region45: #{_lambda_.6} parent=43 // pred_check
        %p1397 = pneg %p87
      $region46: #{_lambda_.6} parent=43 // pred_check_branch
        %1399 = sbr.rel (%p1397) target = $region48
      $region47: #{_lambda_.6} parent=43 // pred_region
        %s1400 = smul.u32 8, %s17
        %p1401 = scmp.lt.s32.totalorder %s1400, 15
        %s1402 = scalar_select %p1401, %s1400, 15
        %s1403 = smul.addr %s1402, 8
        %s1404 = scalar_lea.vmem %s2, %s1403
      $region48: #{_lambda_.6} parent=43 // pred_fallthru
        _
      // Predicated region
      $region49: #{_lambda_.6} parent=43 // pred_check
        %p1405 = pneg %p113
      $region50: #{_lambda_.6} parent=43 // pred_check_branch
        %1407 = sbr.rel (%p1405) target = $region52
      $region51: #{_lambda_.6} parent=43 // pred_region
        %p1408 = scmp.lt.s32.totalorder %s17, 1
        %s1409 = scalar_select %p1408, %s17, 1
        %s1410 = smul.addr %s1409, 8
        %s1411 = scalar_lea.vmem %s3, %s1410
      $region52: #{_lambda_.6} parent=43 // pred_fallthru
        _
      // Predicated region
      $region53: #{_lambda_.6} parent=43 // pred_check
        %p1412 = pneg %p139
      $region54: #{_lambda_.6} parent=43 // pred_check_branch
        %1414 = sbr.rel (%p1412) target = $region56
      $region55: #{_lambda_.6} parent=43 // pred_region
        %p1415 = scmp.lt.s32.totalorder %s17, 1
        %s1416 = scalar_select %p1415, %s17, 1
        %s1417 = smul.addr %s1416, 8
        %s1418 = scalar_lea.vmem %s4, %s1417
      $region56: #{_lambda_.6} parent=43 // pred_fallthru
        _
    $region44: #{_lambda_.6} parent=5 // pred_fallthru
      _
  $region6: #{_lambda_.6} parent=0 // loop_footer
    %s15 = sadd.s32 1, %s11
  $region7: #{_lambda_.6} parent=0 // loop_footer_branch
    %10 = sbr.rel target = $region3
  $region8: #{_lambda_.6} parent=0 // loop_exit
    _

// kernel: _lambda_.11
$region0: #{_lambda_.11}
  #allocation0 [shape = 'u32[]', space=smem, size = 0x4, offset = 0x4, fixed_abs, tag = 'smem constant byte address 0x4 - core index']
  #allocation1 [shape = 'u32[144,128]{1,0:T(1,128)}', space=vmem, size = 0x12000, scoped, tag = 'internal scratch']
  %s0 = inlined_call_operand.vmem [shape: f32[128,128], index: 0, kind: input, shape index: {}]
  %s1 = inlined_call_operand.vmem [shape: f32[1,128], index: 1, kind: input, shape index: {}]
  %s2 = inlined_call_operand.vmem [shape: f32[1,128], index: 2, kind: input, shape index: {}]
  %s3 = inlined_call_operand.vmem [shape: f32[128,128], index: 3, kind: output, shape index: {}]
  %s4 = sld [smem:[#allocation0]]
  $region45: #{_lambda_.11} parent=0
    _
  %s6 = ssub.s32 1, %s4
  %s7 = scalar_select 0, %s6, %s4
  loop: start=0, step=1, limit=4
  $region2: #{_lambda_.11} parent=0 // loop_pre_header
    _
  $region3: #{_lambda_.11} parent=0 // loop_header
    %s9 = sphi 0, %s13
    %p10 = scmp.ge.s32.totalorder %s9, 4
    %s19 = sphi 0, %s21
    %s22 = sphi 0, %s19
    %s23 = sphi 0, %s22
    %s39 = sphi 0, %s23
    %s43 = sphi 0, %s43
    %s45 = sphi 0, %s43
    %s46 = sphi 0, %s45
    %s60 = sphi 0, %s46
    %s64 = sphi 0, %s64
    %s66 = sphi 0, %s64
    %s67 = sphi 0, %s66
    %s81 = sphi 0, %s67
    %s87 = sphi 0, %s89
    %s90 = sphi 0, %s87
    %s91 = sphi 0, %s90
    %s107 = sphi 0, %s91
  $region4: #{_lambda_.11} parent=0 // loop_header_branch
    %12 = sbr.rel (%p10) target = $region8
  $region5: #{_lambda_.11} parent=0 // loop_body
    %s14 = ssub.s32 %s9, 1
    %s15 = ssub.s32 %s9, 2
    %s16 = sadd.s32 %s9, 1
    %s17 = ssub.s32 %s9, %s16
    %p18 = scmp.eq.s32.totalorder %s17, 0
    %s20 = sadd.s32 %s19, 1
    %s21 = scalar_select %p18, %s19, %s20
    %p24 = pneg %p18
    %p25 = scmp.eq.s32.totalorder %s9, 1
    %p26 = por %p24, %p25
    %p27 = scmp.ne.s32.totalorder %s19, %s22
    %p28 = scmp.eq.s32.totalorder %s9, 0
    %p29 = por %p27, %p28
    %p30 = scmp.ne.s32.totalorder %s19, %s22
    %p31 = scmp.eq.s32.totalorder %s14, 1
    %p32 = por %p30, %p31
    %p33 = scmp.ne.s32.totalorder %s22, %s23
    %p34 = scmp.eq.s32.totalorder %s14, 0
    %p35 = por %p33, %p34
    %p36 = scmp.ne.s32.totalorder %s22, %s23
    %p37 = scmp.eq.s32.totalorder %s15, 1
    %p38 = por %p36, %p37
    %p40 = scmp.ne.s32.totalorder %s23, %s39
    %p41 = scmp.eq.s32.totalorder %s15, 0
    %p42 = por %p40, %p41
    %s44 = sadd.s32 %s43, 1
    %p47 = scmp.eq.s32.totalorder %s9, 1
    %p48 = scmp.ne.s32.totalorder %s43, %s45
    %p49 = scmp.eq.s32.totalorder %s9, 0
    %p50 = por %p48, %p49
    %p51 = scmp.ne.s32.totalorder %s43, %s45
    %p52 = scmp.eq.s32.totalorder %s14, 1
    %p53 = por %p51, %p52
    %p54 = scmp.ne.s32.totalorder %s45, %s46
    %p55 = scmp.eq.s32.totalorder %s14, 0
    %p56 = por %p54, %p55
    %p57 = scmp.ne.s32.totalorder %s45, %s46
    %p58 = scmp.eq.s32.totalorder %s15, 1
    %p59 = por %p57, %p58
    %p61 = scmp.ne.s32.totalorder %s46, %s60
    %p62 = scmp.eq.s32.totalorder %s15, 0
    %p63 = por %p61, %p62
    %s65 = sadd.s32 %s64, 1
    %p68 = scmp.eq.s32.totalorder %s9, 1
    %p69 = scmp.ne.s32.totalorder %s64, %s66
    %p70 = scmp.eq.s32.totalorder %s9, 0
    %p71 = por %p69, %p70
    %p72 = scmp.ne.s32.totalorder %s64, %s66
    %p73 = scmp.eq.s32.totalorder %s14, 1
    %p74 = por %p72, %p73
    %p75 = scmp.ne.s32.totalorder %s66, %s67
    %p76 = scmp.eq.s32.totalorder %s14, 0
    %p77 = por %p75, %p76
    %p78 = scmp.ne.s32.totalorder %s66, %s67
    %p79 = scmp.eq.s32.totalorder %s15, 1
    %p80 = por %p78, %p79
    %p82 = scmp.ne.s32.totalorder %s67, %s81
    %p83 = scmp.eq.s32.totalorder %s15, 0
    %p84 = por %p82, %p83
    %s85 = ssub.s32 %s9, %s16
    %p86 = scmp.eq.s32.totalorder %s85, 0
    %s88 = sadd.s32 %s87, 1
    %s89 = scalar_select %p86, %s87, %s88
    %p92 = pneg %p86
    %p93 = scmp.eq.s32.totalorder %s9, 1
    %p94 = por %p92, %p93
    %p95 = scmp.ne.s32.totalorder %s87, %s90
    %p96 = scmp.eq.s32.totalorder %s9, 0
    %p97 = por %p95, %p96
    %p98 = scmp.ne.s32.totalorder %s87, %s90
    %p99 = scmp.eq.s32.totalorder %s14, 1
    %p100 = por %p98, %p99
    %p101 = scmp.ne.s32.totalorder %s90, %s91
    %p102 = scmp.eq.s32.totalorder %s14, 0
    %p103 = por %p101, %p102
    %p104 = scmp.ne.s32.totalorder %s90, %s91
    %p105 = scmp.eq.s32.totalorder %s15, 1
    %p106 = por %p104, %p105
    %p108 = scmp.ne.s32.totalorder %s91, %s107
    %p109 = scmp.eq.s32.totalorder %s15, 0
    %p110 = por %p108, %p109
    %p111 = scmp.le.s32.totalorder 1, %s9
    %p112 = scmp.lt.s32.totalorder %s9, 3
    %p113 = pnand %p111, %p112
    %p114 = pneg %p113
    // Predicated region
    $region9: #{_lambda_.11} parent=5 // pred_check
      _
    $region10: #{_lambda_.11} parent=5 // pred_check_branch
      %116 = sbr.rel (%p113) target = $region12
    $region11: #{_lambda_.11} parent=5 // pred_region
      %s117 = ssub.s32 %s9, 1
      // Predicated region
      $region13: #{_lambda_.11} parent=11 // pred_check
        %p118 = pneg %p56
      $region14: #{_lambda_.11} parent=11 // pred_check_branch
        %120 = sbr.rel (%p118) target = $region16
      $region15: #{_lambda_.11} parent=11 // pred_region
        _
      $region16: #{_lambda_.11} parent=11 // pred_fallthru
        _
      // Predicated region
      $region17: #{_lambda_.11} parent=11 // pred_check
        %p121 = pneg %p77
      $region18: #{_lambda_.11} parent=11 // pred_check_branch
        %123 = sbr.rel (%p121) target = $region20
      $region19: #{_lambda_.11} parent=11 // pred_region
        _
      $region20: #{_lambda_.11} parent=11 // pred_fallthru
        _
    $region12: #{_lambda_.11} parent=5 // pred_fallthru
      _
    %p124 = scmp.lt.s32.totalorder %s9, 2
    // Predicated region
    $region21: #{_lambda_.11} parent=5 // pred_check
      %p125 = pneg %p124
    $region22: #{_lambda_.11} parent=5 // pred_check_branch
      %127 = sbr.rel (%p125) target = $region24
    $region23: #{_lambda_.11} parent=5 // pred_region
      // Predicated region
      $region25: #{_lambda_.11} parent=23 // pred_check
        %p128 = pneg %p29
      $region26: #{_lambda_.11} parent=23 // pred_check_branch
        %130 = sbr.rel (%p128) target = $region28
      $region27: #{_lambda_.11} parent=23 // pred_region
        %s131 = smul.u32 8, %s9
        %p132 = scmp.lt.s32.totalorder %s131, 15
        %s133 = scalar_select %p132, %s131, 15
        %s134 = smul.addr %s133, 8
        %s135 = scalar_lea.vmem %s0, %s134
        %s136 = smul.u32 8, %s9
      $region28: #{_lambda_.11} parent=23 // pred_fallthru
        _
    $region24: #{_lambda_.11} parent=5 // pred_fallthru
      _
    %p137 = scmp.le.s32.totalorder 1, %s9
    %p138 = scmp.lt.s32.totalorder %s9, 3
    %p139 = pnand %p137, %p138
    %p140 = pneg %p139
    // Predicated region
    $region29: #{_lambda_.11} parent=5 // pred_check
      _
    $region30: #{_lambda_.11} parent=5 // pred_check_branch
      %142 = sbr.rel (%p139) target = $region32
    $region31: #{_lambda_.11} parent=5 // pred_region
      %s143 = ssub.s32 %s9, 1
      %s144 = smul.u32 8, %s14
      %p145 = scmp.lt.s32.totalorder %s144, 15
      %s146 = scalar_select %p145, %s144, 15
      %s147 = smul.addr %s146, 8
      %s148 = scalar_lea.vmem %s0, %s147
      %p149 = pneg %p35
      %p150 = pneg %p32
      %p151 = pneg %p56
      %p152 = pneg %p53
      %p153 = pneg %p77
      %p154 = pneg %p74
      %p155 = pneg %p103
      %p156 = pneg %p100
      %s157 = smul.u32 8, %s14
      %p158 = scmp.lt.s32.totalorder %s157, 15
      %s159 = scalar_select %p158, %s157, 15
      %s160 = smul.addr %s159, 8
      %s161 = scalar_lea.vmem %s3, %s160
      %s162 = smul.u32 8, %s14
      %p163 = scmp.lt.s32.totalorder %s162, 15
      %s164 = scalar_select %p163, %s162, 15
      %s165 = smul.addr %s164, 8
      %s166 = scalar_lea.vmem %s0, %s165
      %s167 = smul.u32 8, %s14
      %s168 = smul.u32 8, %s14
      %p169 = scmp.lt.s32.totalorder %s168, 15
      %s170 = scalar_select %p169, %s168, 15
      %s171 = smul.addr %s170, 8
      %s172 = scalar_lea.vmem %s3, %s171
      %s173 = smul.u32 8, %s14
      %v174 = vld [vmem:[%s166] sm:$0xff]
      %v175 = vld [vmem:[%s166 + $0x8] sm:$0xff]
      %v176 = vld [vmem:[%s166 + $0x10] sm:$0xff]
      %v177 = vld [vmem:[%s166 + $0x18] sm:$0xff]
      %v178 = vld [vmem:[%s166 + $0x20] sm:$0xff]
      %v179 = vld [vmem:[%s166 + $0x28] sm:$0xff]
      %v180 = vld [vmem:[%s166 + $0x30] sm:$0xff]
      %v181 = vld [vmem:[%s166 + $0x38] sm:$0xff]
      %v182 = vld [vmem:[%s1] sm:$0x1]
      %v184 = vlaneseq
      %v185 = vshrl.u32 %v184, 7
      %v186 = vsub.s32 0, %v185
      %v187 = vrot.slane %v182, %v186
      %v189 = vmul.f32 %v174, %v187
      %v190 = vmul.f32 %v175, %v187
      %v191 = vmul.f32 %v176, %v187
      %v192 = vmul.f32 %v177, %v187
      %v193 = vmul.f32 %v178, %v187
      %v194 = vmul.f32 %v179, %v187
      %v195 = vmul.f32 %v180, %v187
      %v196 = vmul.f32 %v181, %v187
      %v197 = vld [vmem:[%s2] sm:$0x1]
      %v199 = vlaneseq
      %v200 = vshrl.u32 %v199, 7
      %v201 = vsub.s32 0, %v200
      %v202 = vrot.slane %v197, %v201
      %v204 = vadd.f32 %v189, %v202
      %v205 = vadd.f32 %v190, %v202
      %v206 = vadd.f32 %v191, %v202
      %v207 = vadd.f32 %v192, %v202
      %v208 = vadd.f32 %v193, %v202
      %v209 = vadd.f32 %v194, %v202
      %v210 = vadd.f32 %v195, %v202
      %v211 = vadd.f32 %v196, %v202
      %212 = vst [vmem:[%s172] sm:$0xff] %v204
      %213 = vst [vmem:[%s172 + $0x8] sm:$0xff] %v205
      %214 = vst [vmem:[%s172 + $0x10] sm:$0xff] %v206
      %215 = vst [vmem:[%s172 + $0x18] sm:$0xff] %v207
      %216 = vst [vmem:[%s172 + $0x20] sm:$0xff] %v208
      %217 = vst [vmem:[%s172 + $0x28] sm:$0xff] %v209
      %218 = vst [vmem:[%s172 + $0x30] sm:$0xff] %v210
      %219 = vst [vmem:[%s172 + $0x38] sm:$0xff] %v211
      %s220 = smul.u32 8, %s14
      %p221 = scmp.lt.s32.totalorder %s220, 15
      %s222 = scalar_select %p221, %s220, 15
      %s223 = smul.addr %s222, 8
      %s224 = scalar_lea.vmem %s3, %s223
      // Predicated region
      $region33: #{_lambda_.11} parent=31 // pred_check
        %p225 = pneg %p100
      $region34: #{_lambda_.11} parent=31 // pred_check_branch
        %227 = sbr.rel (%p225) target = $region36
      $region35: #{_lambda_.11} parent=31 // pred_region
        %s228 = smul.u32 8, %s14
      $region36: #{_lambda_.11} parent=31 // pred_fallthru
        _
    $region32: #{_lambda_.11} parent=5 // pred_fallthru
      _
    %p229 = scmp.le.s32.totalorder 2, %s9
    // Predicated region
    $region37: #{_lambda_.11} parent=5 // pred_check
      %p230 = pneg %p229
    $region38: #{_lambda_.11} parent=5 // pred_check_branch
      %232 = sbr.rel (%p230) target = $region40
    $region39: #{_lambda_.11} parent=5 // pred_region
      %s233 = ssub.s32 %s9, 2
      // Predicated region
      $region41: #{_lambda_.11} parent=39 // pred_check
        %p234 = pneg %p106
      $region42: #{_lambda_.11} parent=39 // pred_check_branch
        %236 = sbr.rel (%p234) target = $region44
      $region43: #{_lambda_.11} parent=39 // pred_region
        %s237 = smul.u32 8, %s15
        %p238 = scmp.lt.s32.totalorder %s237, 15
        %s239 = scalar_select %p238, %s237, 15
        %s240 = smul.addr %s239, 8
        %s241 = scalar_lea.vmem %s3, %s240
      $region44: #{_lambda_.11} parent=39 // pred_fallthru
        _
    $region40: #{_lambda_.11} parent=5 // pred_fallthru
      _
  $region6: #{_lambda_.11} parent=0 // loop_footer
    %s13 = sadd.s32 1, %s9
  $region7: #{_lambda_.11} parent=0 // loop_footer_branch
    %8 = sbr.rel target = $region3
  $region8: #{_lambda_.11} parent=0 // loop_exit
    _

// kernel: _lambda_.8
$region0: #{_lambda_.8}
  #allocation0 [shape = 'u32[]', space=smem, size = 0x4, offset = 0x4, fixed_abs, tag = 'smem constant byte address 0x4 - core index']
  #allocation1 [shape = 'u32[144,128]{1,0:T(1,128)}', space=vmem, size = 0x12000, scoped, tag = 'internal scratch']
  %s0 = inlined_call_operand.vmem [shape: bf16[2,10,10,8], index: 0, kind: input, shape index: {}]
  %s1 = inlined_call_operand.vmem [shape: bf16[9,8,128], index: 1, kind: input, shape index: {}]
  %s2 = inlined_call_operand.vmem [shape: f32[128,128], index: 2, kind: output, shape index: {0}]
  %s3 = inlined_call_operand.vmem [shape: f32[2,8,128], index: 3, kind: output, shape index: {1}]
  %s4 = inlined_call_operand.vmem [shape: f32[2,8,128], index: 4, kind: output, shape index: {2}]
  %5 = xla_tuple %s2, %s3, %s4
  %s6 = sld [smem:[#allocation0]]
  $region57: #{_lambda_.8} parent=0
    _
  %s8 = ssub.s32 1, %s6
  %s9 = scalar_select 0, %s8, %s6
  loop: start=0, step=1, limit=4
  $region2: #{_lambda_.8} parent=0 // loop_pre_header
    _
  $region3: #{_lambda_.8} parent=0 // loop_header
    %s11 = sphi 0, %s15
    %p12 = scmp.ge.s32.totalorder %s11, 4
    %s21 = sphi 0, %s23
    %s24 = sphi 0, %s21
    %s25 = sphi 0, %s24
    %s41 = sphi 0, %s25
    %s45 = sphi 0, %s45
    %s47 = sphi 0, %s45
    %s48 = sphi 0, %s47
    %s62 = sphi 0, %s48
    %s68 = sphi 0, %s70
    %s71 = sphi 0, %s68
    %s72 = sphi 0, %s71
    %s88 = sphi 0, %s72
    %s94 = sphi 0, %s96
    %s97 = sphi 0, %s94
    %s98 = sphi 0, %s97
    %s114 = sphi 0, %s98
    %s120 = sphi 0, %s122
    %s123 = sphi 0, %s120
    %s124 = sphi 0, %s123
    %s140 = sphi 0, %s124
  $region4: #{_lambda_.8} parent=0 // loop_header_branch
    %14 = sbr.rel (%p12) target = $region8
  $region5: #{_lambda_.8} parent=0 // loop_body
    %s16 = ssub.s32 %s11, 1
    %s17 = ssub.s32 %s11, 2
    %s18 = sadd.s32 %s11, 1
    %s19 = ssub.s32 %s11, %s18
    %p20 = scmp.eq.s32.totalorder %s19, 0
    %s22 = sadd.s32 %s21, 1
    %s23 = scalar_select %p20, %s21, %s22
    %p26 = pneg %p20
    %p27 = scmp.eq.s32.totalorder %s11, 1
    %p28 = por %p26, %p27
    %p29 = scmp.ne.s32.totalorder %s21, %s24
    %p30 = scmp.eq.s32.totalorder %s11, 0
    %p31 = por %p29, %p30
    %p32 = scmp.ne.s32.totalorder %s21, %s24
    %p33 = scmp.eq.s32.totalorder %s16, 1
    %p34 = por %p32, %p33
    %p35 = scmp.ne.s32.totalorder %s24, %s25
    %p36 = scmp.eq.s32.totalorder %s16, 0
    %p37 = por %p35, %p36
    %p38 = scmp.ne.s32.totalorder %s24, %s25
    %p39 = scmp.eq.s32.totalorder %s17, 1
    %p40 = por %p38, %p39
    %p42 = scmp.ne.s32.totalorder %s25, %s41
    %p43 = scmp.eq.s32.totalorder %s17, 0
    %p44 = por %p42, %p43
    %s46 = sadd.s32 %s45, 1
    %p49 = scmp.eq.s32.totalorder %s11, 1
    %p50 = scmp.ne.s32.totalorder %s45, %s47
    %p51 = scmp.eq.s32.totalorder %s11, 0
    %p52 = por %p50, %p51
    %p53 = scmp.ne.s32.totalorder %s45, %s47
    %p54 = scmp.eq.s32.totalorder %s16, 1
    %p55 = por %p53, %p54
    %p56 = scmp.ne.s32.totalorder %s47, %s48
    %p57 = scmp.eq.s32.totalorder %s16, 0
    %p58 = por %p56, %p57
    %p59 = scmp.ne.s32.totalorder %s47, %s48
    %p60 = scmp.eq.s32.totalorder %s17, 1
    %p61 = por %p59, %p60
    %p63 = scmp.ne.s32.totalorder %s48, %s62
    %p64 = scmp.eq.s32.totalorder %s17, 0
    %p65 = por %p63, %p64
    %s66 = ssub.s32 %s11, %s18
    %p67 = scmp.eq.s32.totalorder %s66, 0
    %s69 = sadd.s32 %s68, 1
    %s70 = scalar_select %p67, %s68, %s69
    %p73 = pneg %p67
    %p74 = scmp.eq.s32.totalorder %s11, 1
    %p75 = por %p73, %p74
    %p76 = scmp.ne.s32.totalorder %s68, %s71
    %p77 = scmp.eq.s32.totalorder %s11, 0
    %p78 = por %p76, %p77
    %p79 = scmp.ne.s32.totalorder %s68, %s71
    %p80 = scmp.eq.s32.totalorder %s16, 1
    %p81 = por %p79, %p80
    %p82 = scmp.ne.s32.totalorder %s71, %s72
    %p83 = scmp.eq.s32.totalorder %s16, 0
    %p84 = por %p82, %p83
    %p85 = scmp.ne.s32.totalorder %s71, %s72
    %p86 = scmp.eq.s32.totalorder %s17, 1
    %p87 = por %p85, %p86
    %p89 = scmp.ne.s32.totalorder %s72, %s88
    %p90 = scmp.eq.s32.totalorder %s17, 0
    %p91 = por %p89, %p90
    %s92 = ssub.s32 %s11, %s18
    %p93 = scmp.eq.s32.totalorder %s92, 0
    %s95 = sadd.s32 %s94, 1
    %s96 = scalar_select %p93, %s94, %s95
    %p99 = pneg %p93
    %p100 = scmp.eq.s32.totalorder %s11, 1
    %p101 = por %p99, %p100
    %p102 = scmp.ne.s32.totalorder %s94, %s97
    %p103 = scmp.eq.s32.totalorder %s11, 0
    %p104 = por %p102, %p103
    %p105 = scmp.ne.s32.totalorder %s94, %s97
    %p106 = scmp.eq.s32.totalorder %s16, 1
    %p107 = por %p105, %p106
    %p108 = scmp.ne.s32.totalorder %s97, %s98
    %p109 = scmp.eq.s32.totalorder %s16, 0
    %p110 = por %p108, %p109
    %p111 = scmp.ne.s32.totalorder %s97, %s98
    %p112 = scmp.eq.s32.totalorder %s17, 1
    %p113 = por %p111, %p112
    %p115 = scmp.ne.s32.totalorder %s98, %s114
    %p116 = scmp.eq.s32.totalorder %s17, 0
    %p117 = por %p115, %p116
    %s118 = ssub.s32 %s11, %s18
    %p119 = scmp.eq.s32.totalorder %s118, 0
    %s121 = sadd.s32 %s120, 1
    %s122 = scalar_select %p119, %s120, %s121
    %p125 = pneg %p119
    %p126 = scmp.eq.s32.totalorder %s11, 1
    %p127 = por %p125, %p126
    %p128 = scmp.ne.s32.totalorder %s120, %s123
    %p129 = scmp.eq.s32.totalorder %s11, 0
    %p130 = por %p128, %p129
    %p131 = scmp.ne.s32.totalorder %s120, %s123
    %p132 = scmp.eq.s32.totalorder %s16, 1
    %p133 = por %p131, %p132
    %p134 = scmp.ne.s32.totalorder %s123, %s124
    %p135 = scmp.eq.s32.totalorder %s16, 0
    %p136 = por %p134, %p135
    %p137 = scmp.ne.s32.totalorder %s123, %s124
    %p138 = scmp.eq.s32.totalorder %s17, 1
    %p139 = por %p137, %p138
    %p141 = scmp.ne.s32.totalorder %s124, %s140
    %p142 = scmp.eq.s32.totalorder %s17, 0
    %p143 = por %p141, %p142
    %p144 = scmp.le.s32.totalorder 1, %s11
    %p145 = scmp.lt.s32.totalorder %s11, 3
    %p146 = pnand %p144, %p145
    %p147 = pneg %p146
    // Predicated region
    $region9: #{_lambda_.8} parent=5 // pred_check
      _
    $region10: #{_lambda_.8} parent=5 // pred_check_branch
      %149 = sbr.rel (%p146) target = $region12
    $region11: #{_lambda_.8} parent=5 // pred_region
      %s150 = ssub.s32 %s11, 1
      // Predicated region
      $region13: #{_lambda_.8} parent=11 // pred_check
        %p151 = pneg %p58
      $region14: #{_lambda_.8} parent=11 // pred_check_branch
        %153 = sbr.rel (%p151) target = $region16
      $region15: #{_lambda_.8} parent=11 // pred_region
        _
      $region16: #{_lambda_.8} parent=11 // pred_fallthru
        _
    $region12: #{_lambda_.8} parent=5 // pred_fallthru
      _
    %p154 = scmp.lt.s32.totalorder %s11, 2
    // Predicated region
    $region17: #{_lambda_.8} parent=5 // pred_check
      %p155 = pneg %p154
    $region18: #{_lambda_.8} parent=5 // pred_check_branch
      %157 = sbr.rel (%p155) target = $region20
    $region19: #{_lambda_.8} parent=5 // pred_region
      // Predicated region
      $region21: #{_lambda_.8} parent=19 // pred_check
        %p158 = pneg %p31
      $region22: #{_lambda_.8} parent=19 // pred_check_branch
        %160 = sbr.rel (%p158) target = $region24
      $region23: #{_lambda_.8} parent=19 // pred_region
        %p161 = scmp.lt.s32.totalorder %s11, 1
        %s162 = scalar_select %p161, %s11, 1
        %s163 = smul.addr %s162, 20
        %s164 = smul.addr %s163, 4
        %s165 = scalar_lea.vmem %s0, %s164
      $region24: #{_lambda_.8} parent=19 // pred_fallthru
        _
    $region20: #{_lambda_.8} parent=5 // pred_fallthru
      _
    %p166 = scmp.le.s32.totalorder 1, %s11
    %p167 = scmp.lt.s32.totalorder %s11, 3
    %p168 = pnand %p166, %p167
    %p169 = pneg %p168
    // Predicated region
    $region25: #{_lambda_.8} parent=5 // pred_check
      _
    $region26: #{_lambda_.8} parent=5 // pred_check_branch
      %171 = sbr.rel (%p168) target = $region28
    $region27: #{_lambda_.8} parent=5 // pred_region
      %s172 = ssub.s32 %s11, 1
      %p173 = scmp.lt.s32.totalorder %s16, 1
      %s174 = scalar_select %p173, %s16, 1
      %s175 = smul.addr %s174, 20
      %s176 = smul.addr %s175, 4
      %s177 = scalar_lea.vmem %s0, %s176
      %p178 = pneg %p37
      %p179 = pneg %p34
      %p180 = pneg %p58
      %p181 = pneg %p55
      %p182 = pneg %p84
      %p183 = pneg %p81
      %s184 = smul.u32 8, %s16
      %p185 = scmp.lt.s32.totalorder %s184, 15
      %s186 = scalar_select %p185, %s184, 15
      %s187 = smul.addr %s186, 8
      %s188 = scalar_lea.vmem %s2, %s187
      %p189 = pneg %p110
      %p190 = pneg %p107
      %p191 = scmp.lt.s32.totalorder %s16, 1
      %s192 = scalar_select %p191, %s16, 1
      %s193 = smul.addr %s192, 8
      %s194 = scalar_lea.vmem %s3, %s193
      %p195 = pneg %p136
      %p196 = pneg %p133
      %p197 = scmp.lt.s32.totalorder %s16, 1
      %s198 = scalar_select %p197, %s16, 1
      %s199 = smul.addr %s198, 8
      %s200 = scalar_lea.vmem %s4, %s199
      %p201 = scmp.lt.s32.totalorder %s16, 1
      %s202 = scalar_select %p201, %s16, 1
      %s203 = smul.addr %s202, 20
      %s204 = smul.addr %s203, 4
      %s205 = scalar_lea.vmem %s0, %s204
      %s206 = smul.u32 8, %s16
      %p207 = scmp.lt.s32.totalorder %s206, 15
      %s208 = scalar_select %p207, %s206, 15
      %s209 = smul.addr %s208, 8
      %s210 = scalar_lea.vmem %s2, %s209
      %s211 = smul.u32 8, %s16
      %p212 = scmp.lt.s32.totalorder %s16, 1
      %s213 = scalar_select %p212, %s16, 1
      %s214 = smul.addr %s213, 8
      %s215 = scalar_lea.vmem %s3, %s214
      %p216 = scmp.lt.s32.totalorder %s16, 1
      %s217 = scalar_select %p216, %s16, 1
      %s218 = smul.addr %s217, 8
      %s219 = scalar_lea.vmem %s4, %s218
      %v221 = vld [vmem:[%s205] sm:$0xf]
      %v222 = vld [vmem:[%s205 + $0x4] sm:$0x1]
      %v223 = vld [vmem:[%s205 + $0x8] sm:$0xf]
      %v224 = vld [vmem:[%s205 + $0xc] sm:$0x1]
      %v225 = vld [vmem:[%s205 + $0x10] sm:$0xf]
      %v226 = vld [vmem:[%s205 + $0x14] sm:$0x1]
      %v227 = vld [vmem:[%s205 + $0x18] sm:$0xf]
      %v228 = vld [vmem:[%s205 + $0x1c] sm:$0x1]
      %v229 = vld [vmem:[%s205 + $0x20] sm:$0xf]
      %v230 = vld [vmem:[%s205 + $0x24] sm:$0x1]
      %v231 = vld [vmem:[%s205 + $0x28] sm:$0xf]
      %v232 = vld [vmem:[%s205 + $0x2c] sm:$0x1]
      %v233 = vld [vmem:[%s205 + $0x30] sm:$0xf]
      %v234 = vld [vmem:[%s205 + $0x34] sm:$0x1]
      %v235 = vld [vmem:[%s205 + $0x38] sm:$0xf]
      %v236 = vld [vmem:[%s205 + $0x3c] sm:$0x1]
      %v237 = vld [vmem:[%s205 + $0x40] sm:$0xf]
      %v238 = vld [vmem:[%s205 + $0x44] sm:$0x1]
      %v239 = vld [vmem:[%s205 + $0x48] sm:$0xf]
      %v240 = vld [vmem:[%s205 + $0x4c] sm:$0x1]
      %v241 = vunpack.c.l.bf16 %v221
      %v242 = vunpack.c.l.bf16 %v222
      %v243 = vunpack.c.l.bf16 %v223
      %v244 = vunpack.c.l.bf16 %v224
      %v245 = vunpack.c.l.bf16 %v225
      %v246 = vunpack.c.l.bf16 %v226
      %v247 = vunpack.c.l.bf16 %v227
      %v248 = vunpack.c.l.bf16 %v228
      %v249 = vunpack.c.l.bf16 %v229
      %v250 = vunpack.c.l.bf16 %v230
      %v251 = vunpack.c.l.bf16 %v231
      %v252 = vunpack.c.l.bf16 %v232
      %v253 = vunpack.c.l.bf16 %v233
      %v254 = vunpack.c.l.bf16 %v234
      %v255 = vunpack.c.l.bf16 %v235
      %v256 = vunpack.c.l.bf16 %v236
      %v257 = vunpack.c.l.bf16 %v237
      %v258 = vunpack.c.l.bf16 %v238
      %v259 = vunpack.c.l.bf16 %v239
      %v260 = vunpack.c.l.bf16 %v240
      %v261 = vpack.c.bf16 %v243, %v241
      %v262 = vpack.c.bf16 %v247, %v245
      %v263 = vpack.c.bf16 %v251, %v249
      %v264 = vpack.c.bf16 %v255, %v253
      %v265 = vld [vmem:[%s1] sm:$0xf]
      %vm282 = vcmask 1046528
      %v283 = vrot.slane %v241, 1
      %v284 = vrot.slane %v242, 1
      %v285 = vsel %vm282, %v283, %v284
      %v286 = vrot.slane %v243, 1
      %v287 = vrot.slane %v244, 1
      %v288 = vsel %vm282, %v286, %v287
      %v289 = vrot.slane %v245, 1
      %v290 = vrot.slane %v246, 1
      %v291 = vsel %vm282, %v289, %v290
      %v292 = vrot.slane %v247, 1
      %v293 = vrot.slane %v248, 1
      %v294 = vsel %vm282, %v292, %v293
      %v295 = vrot.slane %v249, 1
      %v296 = vrot.slane %v250, 1
      %v297 = vsel %vm282, %v295, %v296
      %v298 = vrot.slane %v251, 1
      %v299 = vrot.slane %v252, 1
      %v300 = vsel %vm282, %v298, %v299
      %v301 = vrot.slane %v253, 1
      %v302 = vrot.slane %v254, 1
      %v303 = vsel %vm282, %v301, %v302
      %v304 = vrot.slane %v255, 1
      %v305 = vrot.slane %v256, 1
      %v306 = vsel %vm282, %v304, %v305
      %v315 = vpack.c.bf16 %v288, %v285
      %v316 = vpack.c.bf16 %v294, %v291
      %v317 = vpack.c.bf16 %v300, %v297
      %v318 = vpack.c.bf16 %v306, %v303
      %s319 = scalar_lea.vmem %s1, 4
      %v320 = vld [vmem:[%s319] sm:$0xf]
      %vm321 = vcmask 64512
      %v323 = vsel %vm321, %v315, 0
      %v326 = vsel %vm321, %v316, 0
      %v329 = vsel %vm321, %v317, 0
      %v332 = vsel %vm321, %v318, 0
      %vm334 = vcmask 1043456
      %v336 = vsel %vm334, %v320, 0
      %338 = vmatprep.subr.bf16.mxu0 0
      %339 = vmatpush1.bf16.msra.mxu0 %v336
      %340 = vmatprep.subr.bf16.mxu0 0
      %341 = vmatpush1.bf16.msra.mxu0 0
      %342 = vmatprep.subr.bf16.mxu0 0
      %343 = vmatpush1.bf16.msra.mxu0 0
      %344 = vmatprep.subr.bf16.mxu0 0
      %345 = vmatpush1.bf16.msra.mxu0 0
      %346 = vmatprep.subr.bf16.mxu0 0
      %347 = vmatpush1.bf16.msra.mxu0 0
      %348 = vmatprep.subr.bf16.mxu0 0
      %349 = vmatpush1.bf16.msra.mxu0 0
      %350 = vmatprep.subr.bf16.mxu0 0
      %351 = vmatpush1.bf16.msra.mxu0 0
      %352 = vmatprep.subr.bf16.mxu0 0
      %353 = vmatpush1.bf16.msra.mxu0 0
      %354 = vmatprep.subr.bf16.mxu0 0
      %355 = vmatpush1.bf16.msra.mxu0 0
      %356 = vmatprep.subr.bf16.mxu0 0
      %357 = vmatpush1.bf16.msra.mxu0 0
      %358 = vmatprep.subr.bf16.mxu0 0
      %359 = vmatpush1.bf16.msra.mxu0 0
      %360 = vmatprep.subr.bf16.mxu0 0
      %361 = vmatpush1.bf16.msra.mxu0 0
      %362 = vmatprep.subr.bf16.mxu0 0
      %363 = vmatpush1.bf16.msra.mxu0 0
      %364 = vmatprep.subr.bf16.mxu0 0
      %365 = vmatpush1.bf16.msra.mxu0 0
      %366 = vmatprep.subr.bf16.mxu0 0
      %367 = vmatpush1.bf16.msra.mxu0 0
      %368 = vmatprep.subr.bf16.mxu0 0
      %369 = vmatpush1.bf16.msra.mxu0 0
      %370 = vmatprep.mubr.bf16.mxu0 0
      %371 = vmatmul.mubr.bf16.gmra.mrb[0].mxu0 %v323
      %v372 = vpop.f32.mrb[0].mxu0
      %v373 = vadd.f32 0.0, %v372
      %v374 = vpop.f32.mrb[0].mxu0
      %v375 = vpop.f32.mrb[0].mxu0
      %v376 = vadd.f32 0.0, %v375
      %v377 = vpop.f32.mrb[0].mxu0
      %378 = vmatprep.mubr.bf16.mxu0 0
      %379 = vmatmul.mubr.bf16.gmra.mrb[0].mxu0 %v326
      %v380 = vpop.f32.mrb[0].mxu0
      %v381 = vadd.f32 0.0, %v380
      %v382 = vpop.f32.mrb[0].mxu0
      %v383 = vpop.f32.mrb[0].mxu0
      %v384 = vadd.f32 0.0, %v383
      %v385 = vpop.f32.mrb[0].mxu0
      %386 = vmatprep.mubr.bf16.mxu0 0
      %387 = vmatmul.mubr.bf16.gmra.mrb[0].mxu0 %v329
      %v388 = vpop.f32.mrb[0].mxu0
      %v389 = vadd.f32 0.0, %v388
      %v390 = vpop.f32.mrb[0].mxu0
      %v391 = vpop.f32.mrb[0].mxu0
      %v392 = vadd.f32 0.0, %v391
      %v393 = vpop.f32.mrb[0].mxu0
      %394 = vmatprep.mubr.bf16.mxu0 0
      %395 = vmatmul.mubr.bf16.gmra.mrb[0].mxu0 %v332
      %v396 = vpop.f32.mrb[0].mxu0
      %v397 = vadd.f32 0.0, %v396
      %v398 = vpop.f32.mrb[0].mxu0
      %v399 = vpop.f32.mrb[0].mxu0
      %v400 = vadd.f32 0.0, %v399
      %v401 = vpop.f32.mrb[0].mxu0
      %402 = vdwg.mxu0
      %v404 = vsel %vm321, %v261, 0
      %v407 = vsel %vm321, %v262, 0
      %v410 = vsel %vm321, %v263, 0
      %v413 = vsel %vm321, %v264, 0
      %v416 = vsel %vm334, %v265, 0
      %418 = vmatprep.subr.bf16.mxu0 0
      %419 = vmatpush1.bf16.msra.mxu0 %v416
      %420 = vmatprep.subr.bf16.mxu0 0
      %421 = vmatpush1.bf16.msra.mxu0 0
      %422 = vmatprep.subr.bf16.mxu0 0
      %423 = vmatpush1.bf16.msra.mxu0 0
      %424 = vmatprep.subr.bf16.mxu0 0
      %425 = vmatpush1.bf16.msra.mxu0 0
      %426 = vmatprep.subr.bf16.mxu0 0
      %427 = vmatpush1.bf16.msra.mxu0 0
      %428 = vmatprep.subr.bf16.mxu0 0
      %429 = vmatpush1.bf16.msra.mxu0 0
      %430 = vmatprep.subr.bf16.mxu0 0
      %431 = vmatpush1.bf16.msra.mxu0 0
      %432 = vmatprep.subr.bf16.mxu0 0
      %433 = vmatpush1.bf16.msra.mxu0 0
      %434 = vmatprep.subr.bf16.mxu0 0
      %435 = vmatpush1.bf16.msra.mxu0 0
      %436 = vmatprep.subr.bf16.mxu0 0
      %437 = vmatpush1.bf16.msra.mxu0 0
      %438 = vmatprep.subr.bf16.mxu0 0
      %439 = vmatpush1.bf16.msra.mxu0 0
      %440 = vmatprep.subr.bf16.mxu0 0
      %441 = vmatpush1.bf16.msra.mxu0 0
      %442 = vmatprep.subr.bf16.mxu0 0
      %443 = vmatpush1.bf16.msra.mxu0 0
      %444 = vmatprep.subr.bf16.mxu0 0
      %445 = vmatpush1.bf16.msra.mxu0 0
      %446 = vmatprep.subr.bf16.mxu0 0
      %447 = vmatpush1.bf16.msra.mxu0 0
      %448 = vmatprep.subr.bf16.mxu0 0
      %449 = vmatpush1.bf16.msra.mxu0 0
      %450 = vmatprep.mubr.bf16.mxu0 0
      %451 = vmatmul.mubr.bf16.gmra.mrb[0].mxu0 %v404
      %v452 = vpop.f32.mrb[0].mxu0
      %v453 = vadd.f32 %v373, %v452
      %v454 = vpop.f32.mrb[0].mxu0
      %v455 = vpop.f32.mrb[0].mxu0
      %v456 = vadd.f32 %v376, %v455
      %v457 = vpop.f32.mrb[0].mxu0
      %458 = vmatprep.mubr.bf16.mxu0 0
      %459 = vmatmul.mubr.bf16.gmra.mrb[0].mxu0 %v407
      %v460 = vpop.f32.mrb[0].mxu0
      %v461 = vadd.f32 %v381, %v460
      %v462 = vpop.f32.mrb[0].mxu0
      %v463 = vpop.f32.mrb[0].mxu0
      %v464 = vadd.f32 %v384, %v463
      %v465 = vpop.f32.mrb[0].mxu0
      %466 = vmatprep.mubr.bf16.mxu0 0
      %467 = vmatmul.mubr.bf16.gmra.mrb[0].mxu0 %v410
      %v468 = vpop.f32.mrb[0].mxu0
      %v469 = vadd.f32 %v389, %v468
      %v470 = vpop.f32.mrb[0].mxu0
      %v471 = vpop.f32.mrb[0].mxu0
      %v472 = vadd.f32 %v392, %v471
      %v473 = vpop.f32.mrb[0].mxu0
      %474 = vmatprep.mubr.bf16.mxu0 0
      %475 = vmatmul.mubr.bf16.gmra.mrb[0].mxu0 %v413
      %v476 = vpop.f32.mrb[0].mxu0
      %v477 = vadd.f32 %v397, %v476
      %v478 = vpop.f32.mrb[0].mxu0
      %v479 = vpop.f32.mrb[0].mxu0
      %v480 = vadd.f32 %v400, %v479
      %v481 = vpop.f32.mrb[0].mxu0
      %482 = vdwg.mxu0
      %vm483 = vcmask 1045504
      %v484 = vrot.slane %v241, 2
      %v485 = vrot.slane %v242, 2
      %v486 = vsel %vm483, %v484, %v485
      %v487 = vrot.slane %v243, 2
      %v488 = vrot.slane %v244, 2
      %v489 = vsel %vm483, %v487, %v488
      %v490 = vrot.slane %v245, 2
      %v491 = vrot.slane %v246, 2
      %v492 = vsel %vm483, %v490, %v491
      %v493 = vrot.slane %v247, 2
      %v494 = vrot.slane %v248, 2
      %v495 = vsel %vm483, %v493, %v494
      %v496 = vrot.slane %v249, 2
      %v497 = vrot.slane %v250, 2
      %v498 = vsel %vm483, %v496, %v497
      %v499 = vrot.slane %v251, 2
      %v500 = vrot.slane %v252, 2
      %v501 = vsel %vm483, %v499, %v500
      %v502 = vrot.slane %v253, 2
      %v503 = vrot.slane %v254, 2
      %v504 = vsel %vm483, %v502, %v503
      %v505 = vrot.slane %v255, 2
      %v506 = vrot.slane %v256, 2
      %v507 = vsel %vm483, %v505, %v506
      %v516 = vpack.c.bf16 %v489, %v486
      %v517 = vpack.c.bf16 %v495, %v492
      %v518 = vpack.c.bf16 %v501, %v498
      %v519 = vpack.c.bf16 %v507, %v504
      %s520 = scalar_lea.vmem %s1, 8
      %v521 = vld [vmem:[%s520] sm:$0xf]
      %v523 = vsel %vm321, %v516, 0
      %v526 = vsel %vm321, %v517, 0
      %v529 = vsel %vm321, %v518, 0
      %v532 = vsel %vm321, %v519, 0
      %v535 = vsel %vm334, %v521, 0
      %537 = vmatprep.subr.bf16.mxu0 0
      %538 = vmatpush1.bf16.msra.mxu0 %v535
      %539 = vmatprep.subr.bf16.mxu0 0
      %540 = vmatpush1.bf16.msra.mxu0 0
      %541 = vmatprep.subr.bf16.mxu0 0
      %542 = vmatpush1.bf16.msra.mxu0 0
      %543 = vmatprep.subr.bf16.mxu0 0
      %544 = vmatpush1.bf16.msra.mxu0 0
      %545 = vmatprep.subr.bf16.mxu0 0
      %546 = vmatpush1.bf16.msra.mxu0 0
      %547 = vmatprep.subr.bf16.mxu0 0
      %548 = vmatpush1.bf16.msra.mxu0 0
      %549 = vmatprep.subr.bf16.mxu0 0
      %550 = vmatpush1.bf16.msra.mxu0 0
      %551 = vmatprep.subr.bf16.mxu0 0
      %552 = vmatpush1.bf16.msra.mxu0 0
      %553 = vmatprep.subr.bf16.mxu0 0
      %554 = vmatpush1.bf16.msra.mxu0 0
      %555 = vmatprep.subr.bf16.mxu0 0
      %556 = vmatpush1.bf16.msra.mxu0 0
      %557 = vmatprep.subr.bf16.mxu0 0
      %558 = vmatpush1.bf16.msra.mxu0 0
      %559 = vmatprep.subr.bf16.mxu0 0
      %560 = vmatpush1.bf16.msra.mxu0 0
      %561 = vmatprep.subr.bf16.mxu0 0
      %562 = vmatpush1.bf16.msra.mxu0 0
      %563 = vmatprep.subr.bf16.mxu0 0
      %564 = vmatpush1.bf16.msra.mxu0 0
      %565 = vmatprep.subr.bf16.mxu0 0
      %566 = vmatpush1.bf16.msra.mxu0 0
      %567 = vmatprep.subr.bf16.mxu0 0
      %568 = vmatpush1.bf16.msra.mxu0 0
      %569 = vmatprep.mubr.bf16.mxu0 0
      %570 = vmatmul.mubr.bf16.gmra.mrb[0].mxu0 %v523
      %v571 = vpop.f32.mrb[0].mxu0
      %v572 = vadd.f32 0.0, %v571
      %v573 = vpop.f32.mrb[0].mxu0
      %v574 = vpop.f32.mrb[0].mxu0
      %v575 = vadd.f32 0.0, %v574
      %v576 = vpop.f32.mrb[0].mxu0
      %577 = vmatprep.mubr.bf16.mxu0 0
      %578 = vmatmul.mubr.bf16.gmra.mrb[0].mxu0 %v526
      %v579 = vpop.f32.mrb[0].mxu0
      %v580 = vadd.f32 0.0, %v579
      %v581 = vpop.f32.mrb[0].mxu0
      %v582 = vpop.f32.mrb[0].mxu0
      %v583 = vadd.f32 0.0, %v582
      %v584 = vpop.f32.mrb[0].mxu0
      %585 = vmatprep.mubr.bf16.mxu0 0
      %586 = vmatmul.mubr.bf16.gmra.mrb[0].mxu0 %v529
      %v587 = vpop.f32.mrb[0].mxu0
      %v588 = vadd.f32 0.0, %v587
      %v589 = vpop.f32.mrb[0].mxu0
      %v590 = vpop.f32.mrb[0].mxu0
      %v591 = vadd.f32 0.0, %v590
      %v592 = vpop.f32.mrb[0].mxu0
      %593 = vmatprep.mubr.bf16.mxu0 0
      %594 = vmatmul.mubr.bf16.gmra.mrb[0].mxu0 %v532
      %v595 = vpop.f32.mrb[0].mxu0
      %v596 = vadd.f32 0.0, %v595
      %v597 = vpop.f32.mrb[0].mxu0
      %v598 = vpop.f32.mrb[0].mxu0
      %v599 = vadd.f32 0.0, %v598
      %v600 = vpop.f32.mrb[0].mxu0
      %601 = vdwg.mxu0
      %v602 = vadd.f32 %v453, %v572
      %v603 = vadd.f32 %v456, %v575
      %v604 = vadd.f32 %v461, %v580
      %v605 = vadd.f32 %v464, %v583
      %v606 = vadd.f32 %v469, %v588
      %v607 = vadd.f32 %v472, %v591
      %v608 = vadd.f32 %v477, %v596
      %v609 = vadd.f32 %v480, %v599
      %v610 = vpack.c.bf16 %v245, %v243
      %v611 = vpack.c.bf16 %v249, %v247
      %v612 = vpack.c.bf16 %v253, %v251
      %v613 = vpack.c.bf16 %v257, %v255
      %s614 = scalar_lea.vmem %s1, 12
      %v615 = vld [vmem:[%s614] sm:$0xf]
      %v617 = vsel %vm321, %v610, 0
      %v620 = vsel %vm321, %v611, 0
      %v623 = vsel %vm321, %v612, 0
      %v626 = vsel %vm321, %v613, 0
      %v629 = vsel %vm334, %v615, 0
      %631 = vmatprep.subr.bf16.mxu0 0
      %632 = vmatpush1.bf16.msra.mxu0 %v629
      %633 = vmatprep.subr.bf16.mxu0 0
      %634 = vmatpush1.bf16.msra.mxu0 0
      %635 = vmatprep.subr.bf16.mxu0 0
      %636 = vmatpush1.bf16.msra.mxu0 0
      %637 = vmatprep.subr.bf16.mxu0 0
      %638 = vmatpush1.bf16.msra.mxu0 0
      %639 = vmatprep.subr.bf16.mxu0 0
      %640 = vmatpush1.bf16.msra.mxu0 0
      %641 = vmatprep.subr.bf16.mxu0 0
      %642 = vmatpush1.bf16.msra.mxu0 0
      %643 = vmatprep.subr.bf16.mxu0 0
      %644 = vmatpush1.bf16.msra.mxu0 0
      %645 = vmatprep.subr.bf16.mxu0 0
      %646 = vmatpush1.bf16.msra.mxu0 0
      %647 = vmatprep.subr.bf16.mxu0 0
      %648 = vmatpush1.bf16.msra.mxu0 0
      %649 = vmatprep.subr.bf16.mxu0 0
      %650 = vmatpush1.bf16.msra.mxu0 0
      %651 = vmatprep.subr.bf16.mxu0 0
      %652 = vmatpush1.bf16.msra.mxu0 0
      %653 = vmatprep.subr.bf16.mxu0 0
      %654 = vmatpush1.bf16.msra.mxu0 0
      %655 = vmatprep.subr.bf16.mxu0 0
      %656 = vmatpush1.bf16.msra.mxu0 0
      %657 = vmatprep.subr.bf16.mxu0 0
      %658 = vmatpush1.bf16.msra.mxu0 0
      %659 = vmatprep.subr.bf16.mxu0 0
      %660 = vmatpush1.bf16.msra.mxu0 0
      %661 = vmatprep.subr.bf16.mxu0 0
      %662 = vmatpush1.bf16.msra.mxu0 0
      %663 = vmatprep.mubr.bf16.mxu0 0
      %664 = vmatmul.mubr.bf16.gmra.mrb[0].mxu0 %v617
      %v665 = vpop.f32.mrb[0].mxu0
      %v666 = vadd.f32 0.0, %v665
      %v667 = vpop.f32.mrb[0].mxu0
      %v668 = vpop.f32.mrb[0].mxu0
      %v669 = vadd.f32 0.0, %v668
      %v670 = vpop.f32.mrb[0].mxu0
      %671 = vmatprep.mubr.bf16.mxu0 0
      %672 = vmatmul.mubr.bf16.gmra.mrb[0].mxu0 %v620
      %v673 = vpop.f32.mrb[0].mxu0
      %v674 = vadd.f32 0.0, %v673
      %v675 = vpop.f32.mrb[0].mxu0
      %v676 = vpop.f32.mrb[0].mxu0
      %v677 = vadd.f32 0.0, %v676
      %v678 = vpop.f32.mrb[0].mxu0
      %679 = vmatprep.mubr.bf16.mxu0 0
      %680 = vmatmul.mubr.bf16.gmra.mrb[0].mxu0 %v623
      %v681 = vpop.f32.mrb[0].mxu0
      %v682 = vadd.f32 0.0, %v681
      %v683 = vpop.f32.mrb[0].mxu0
      %v684 = vpop.f32.mrb[0].mxu0
      %v685 = vadd.f32 0.0, %v684
      %v686 = vpop.f32.mrb[0].mxu0
      %687 = vmatprep.mubr.bf16.mxu0 0
      %688 = vmatmul.mubr.bf16.gmra.mrb[0].mxu0 %v626
      %v689 = vpop.f32.mrb[0].mxu0
      %v690 = vadd.f32 0.0, %v689
      %v691 = vpop.f32.mrb[0].mxu0
      %v692 = vpop.f32.mrb[0].mxu0
      %v693 = vadd.f32 0.0, %v692
      %v694 = vpop.f32.mrb[0].mxu0
      %695 = vdwg.mxu0
      %v696 = vadd.f32 %v602, %v666
      %v697 = vadd.f32 %v603, %v669
      %v698 = vadd.f32 %v604, %v674
      %v699 = vadd.f32 %v605, %v677
      %v700 = vadd.f32 %v606, %v682
      %v701 = vadd.f32 %v607, %v685
      %v702 = vadd.f32 %v608, %v690
      %v703 = vadd.f32 %v609, %v693
      %v706 = vrot.slane %v257, 1
      %v707 = vrot.slane %v258, 1
      %v708 = vsel %vm282, %v706, %v707
      %v710 = vpack.c.bf16 %v291, %v288
      %v711 = vpack.c.bf16 %v297, %v294
      %v712 = vpack.c.bf16 %v303, %v300
      %v713 = vpack.c.bf16 %v708, %v306
      %s714 = scalar_lea.vmem %s1, 16
      %v715 = vld [vmem:[%s714] sm:$0xf]
      %v717 = vsel %vm321, %v710, 0
      %v720 = vsel %vm321, %v711, 0
      %v723 = vsel %vm321, %v712, 0
      %v726 = vsel %vm321, %v713, 0
      %v729 = vsel %vm334, %v715, 0
      %731 = vmatprep.subr.bf16.mxu0 0
      %732 = vmatpush1.bf16.msra.mxu0 %v729
      %733 = vmatprep.subr.bf16.mxu0 0
      %734 = vmatpush1.bf16.msra.mxu0 0
      %735 = vmatprep.subr.bf16.mxu0 0
      %736 = vmatpush1.bf16.msra.mxu0 0
      %737 = vmatprep.subr.bf16.mxu0 0
      %738 = vmatpush1.bf16.msra.mxu0 0
      %739 = vmatprep.subr.bf16.mxu0 0
      %740 = vmatpush1.bf16.msra.mxu0 0
      %741 = vmatprep.subr.bf16.mxu0 0
      %742 = vmatpush1.bf16.msra.mxu0 0
      %743 = vmatprep.subr.bf16.mxu0 0
      %744 = vmatpush1.bf16.msra.mxu0 0
      %745 = vmatprep.subr.bf16.mxu0 0
      %746 = vmatpush1.bf16.msra.mxu0 0
      %747 = vmatprep.subr.bf16.mxu0 0
      %748 = vmatpush1.bf16.msra.mxu0 0
      %749 = vmatprep.subr.bf16.mxu0 0
      %750 = vmatpush1.bf16.msra.mxu0 0
      %751 = vmatprep.subr.bf16.mxu0 0
      %752 = vmatpush1.bf16.msra.mxu0 0
      %753 = vmatprep.subr.bf16.mxu0 0
      %754 = vmatpush1.bf16.msra.mxu0 0
      %755 = vmatprep.subr.bf16.mxu0 0
      %756 = vmatpush1.bf16.msra.mxu0 0
      %757 = vmatprep.subr.bf16.mxu0 0
      %758 = vmatpush1.bf16.msra.mxu0 0
      %759 = vmatprep.subr.bf16.mxu0 0
      %760 = vmatpush1.bf16.msra.mxu0 0
      %761 = vmatprep.subr.bf16.mxu0 0
      %762 = vmatpush1.bf16.msra.mxu0 0
      %763 = vmatprep.mubr.bf16.mxu0 0
      %764 = vmatmul.mubr.bf16.gmra.mrb[0].mxu0 %v717
      %v765 = vpop.f32.mrb[0].mxu0
      %v766 = vadd.f32 0.0, %v765
      %v767 = vpop.f32.mrb[0].mxu0
      %v768 = vpop.f32.mrb[0].mxu0
      %v769 = vadd.f32 0.0, %v768
      %v770 = vpop.f32.mrb[0].mxu0
      %771 = vmatprep.mubr.bf16.mxu0 0
      %772 = vmatmul.mubr.bf16.gmra.mrb[0].mxu0 %v720
      %v773 = vpop.f32.mrb[0].mxu0
      %v774 = vadd.f32 0.0, %v773
      %v775 = vpop.f32.mrb[0].mxu0
      %v776 = vpop.f32.mrb[0].mxu0
      %v777 = vadd.f32 0.0, %v776
      %v778 = vpop.f32.mrb[0].mxu0
      %779 = vmatprep.mubr.bf16.mxu0 0
      %780 = vmatmul.mubr.bf16.gmra.mrb[0].mxu0 %v723
      %v781 = vpop.f32.mrb[0].mxu0
      %v782 = vadd.f32 0.0, %v781
      %v783 = vpop.f32.mrb[0].mxu0
      %v784 = vpop.f32.mrb[0].mxu0
      %v785 = vadd.f32 0.0, %v784
      %v786 = vpop.f32.mrb[0].mxu0
      %787 = vmatprep.mubr.bf16.mxu0 0
      %788 = vmatmul.mubr.bf16.gmra.mrb[0].mxu0 %v726
      %v789 = vpop.f32.mrb[0].mxu0
      %v790 = vadd.f32 0.0, %v789
      %v791 = vpop.f32.mrb[0].mxu0
      %v792 = vpop.f32.mrb[0].mxu0
      %v793 = vadd.f32 0.0, %v792
      %v794 = vpop.f32.mrb[0].mxu0
      %795 = vdwg.mxu0
      %v796 = vadd.f32 %v696, %v766
      %v797 = vadd.f32 %v697, %v769
      %v798 = vadd.f32 %v698, %v774
      %v799 = vadd.f32 %v699, %v777
      %v800 = vadd.f32 %v700, %v782
      %v801 = vadd.f32 %v701, %v785
      %v802 = vadd.f32 %v702, %v790
      %v803 = vadd.f32 %v703, %v793
      %v804 = vrot.slane %v257, 2
      %v805 = vrot.slane %v258, 2
      %v806 = vsel %vm483, %v804, %v805
      %v808 = vpack.c.bf16 %v492, %v489
      %v809 = vpack.c.bf16 %v498, %v495
      %v810 = vpack.c.bf16 %v504, %v501
      %v811 = vpack.c.bf16 %v806, %v507
      %s812 = scalar_lea.vmem %s1, 20
      %v813 = vld [vmem:[%s812] sm:$0xf]
      %v815 = vsel %vm321, %v808, 0
      %v818 = vsel %vm321, %v809, 0
      %v821 = vsel %vm321, %v810, 0
      %v824 = vsel %vm321, %v811, 0
      %v827 = vsel %vm334, %v813, 0
      %829 = vmatprep.subr.bf16.mxu0 0
      %830 = vmatpush1.bf16.msra.mxu0 %v827
      %831 = vmatprep.subr.bf16.mxu0 0
      %832 = vmatpush1.bf16.msra.mxu0 0
      %833 = vmatprep.subr.bf16.mxu0 0
      %834 = vmatpush1.bf16.msra.mxu0 0
      %835 = vmatprep.subr.bf16.mxu0 0
      %836 = vmatpush1.bf16.msra.mxu0 0
      %837 = vmatprep.subr.bf16.mxu0 0
      %838 = vmatpush1.bf16.msra.mxu0 0
      %839 = vmatprep.subr.bf16.mxu0 0
      %840 = vmatpush1.bf16.msra.mxu0 0
      %841 = vmatprep.subr.bf16.mxu0 0
      %842 = vmatpush1.bf16.msra.mxu0 0
      %843 = vmatprep.subr.bf16.mxu0 0
      %844 = vmatpush1.bf16.msra.mxu0 0
      %845 = vmatprep.subr.bf16.mxu0 0
      %846 = vmatpush1.bf16.msra.mxu0 0
      %847 = vmatprep.subr.bf16.mxu0 0
      %848 = vmatpush1.bf16.msra.mxu0 0
      %849 = vmatprep.subr.bf16.mxu0 0
      %850 = vmatpush1.bf16.msra.mxu0 0
      %851 = vmatprep.subr.bf16.mxu0 0
      %852 = vmatpush1.bf16.msra.mxu0 0
      %853 = vmatprep.subr.bf16.mxu0 0
      %854 = vmatpush1.bf16.msra.mxu0 0
      %855 = vmatprep.subr.bf16.mxu0 0
      %856 = vmatpush1.bf16.msra.mxu0 0
      %857 = vmatprep.subr.bf16.mxu0 0
      %858 = vmatpush1.bf16.msra.mxu0 0
      %859 = vmatprep.subr.bf16.mxu0 0
      %860 = vmatpush1.bf16.msra.mxu0 0
      %861 = vmatprep.mubr.bf16.mxu0 0
      %862 = vmatmul.mubr.bf16.gmra.mrb[0].mxu0 %v815
      %v863 = vpop.f32.mrb[0].mxu0
      %v864 = vadd.f32 0.0, %v863
      %v865 = vpop.f32.mrb[0].mxu0
      %v866 = vpop.f32.mrb[0].mxu0
      %v867 = vadd.f32 0.0, %v866
      %v868 = vpop.f32.mrb[0].mxu0
      %869 = vmatprep.mubr.bf16.mxu0 0
      %870 = vmatmul.mubr.bf16.gmra.mrb[0].mxu0 %v818
      %v871 = vpop.f32.mrb[0].mxu0
      %v872 = vadd.f32 0.0, %v871
      %v873 = vpop.f32.mrb[0].mxu0
      %v874 = vpop.f32.mrb[0].mxu0
      %v875 = vadd.f32 0.0, %v874
      %v876 = vpop.f32.mrb[0].mxu0
      %877 = vmatprep.mubr.bf16.mxu0 0
      %878 = vmatmul.mubr.bf16.gmra.mrb[0].mxu0 %v821
      %v879 = vpop.f32.mrb[0].mxu0
      %v880 = vadd.f32 0.0, %v879
      %v881 = vpop.f32.mrb[0].mxu0
      %v882 = vpop.f32.mrb[0].mxu0
      %v883 = vadd.f32 0.0, %v882
      %v884 = vpop.f32.mrb[0].mxu0
      %885 = vmatprep.mubr.bf16.mxu0 0
      %886 = vmatmul.mubr.bf16.gmra.mrb[0].mxu0 %v824
      %v887 = vpop.f32.mrb[0].mxu0
      %v888 = vadd.f32 0.0, %v887
      %v889 = vpop.f32.mrb[0].mxu0
      %v890 = vpop.f32.mrb[0].mxu0
      %v891 = vadd.f32 0.0, %v890
      %v892 = vpop.f32.mrb[0].mxu0
      %893 = vdwg.mxu0
      %v894 = vadd.f32 %v796, %v864
      %v895 = vadd.f32 %v797, %v867
      %v896 = vadd.f32 %v798, %v872
      %v897 = vadd.f32 %v799, %v875
      %v898 = vadd.f32 %v800, %v880
      %v899 = vadd.f32 %v801, %v883
      %v900 = vadd.f32 %v802, %v888
      %v901 = vadd.f32 %v803, %v891
      %v902 = vpack.c.bf16 %v259, %v257
      %s903 = scalar_lea.vmem %s1, 24
      %v904 = vld [vmem:[%s903] sm:$0xf]
      %v906 = vsel %vm321, %v902, 0
      %v909 = vsel %vm334, %v904, 0
      %911 = vmatprep.subr.bf16.mxu0 0
      %912 = vmatpush1.bf16.msra.mxu0 %v909
      %913 = vmatprep.subr.bf16.mxu0 0
      %914 = vmatpush1.bf16.msra.mxu0 0
      %915 = vmatprep.subr.bf16.mxu0 0
      %916 = vmatpush1.bf16.msra.mxu0 0
      %917 = vmatprep.subr.bf16.mxu0 0
      %918 = vmatpush1.bf16.msra.mxu0 0
      %919 = vmatprep.subr.bf16.mxu0 0
      %920 = vmatpush1.bf16.msra.mxu0 0
      %921 = vmatprep.subr.bf16.mxu0 0
      %922 = vmatpush1.bf16.msra.mxu0 0
      %923 = vmatprep.subr.bf16.mxu0 0
      %924 = vmatpush1.bf16.msra.mxu0 0
      %925 = vmatprep.subr.bf16.mxu0 0
      %926 = vmatpush1.bf16.msra.mxu0 0
      %927 = vmatprep.subr.bf16.mxu0 0
      %928 = vmatpush1.bf16.msra.mxu0 0
      %929 = vmatprep.subr.bf16.mxu0 0
      %930 = vmatpush1.bf16.msra.mxu0 0
      %931 = vmatprep.subr.bf16.mxu0 0
      %932 = vmatpush1.bf16.msra.mxu0 0
      %933 = vmatprep.subr.bf16.mxu0 0
      %934 = vmatpush1.bf16.msra.mxu0 0
      %935 = vmatprep.subr.bf16.mxu0 0
      %936 = vmatpush1.bf16.msra.mxu0 0
      %937 = vmatprep.subr.bf16.mxu0 0
      %938 = vmatpush1.bf16.msra.mxu0 0
      %939 = vmatprep.subr.bf16.mxu0 0
      %940 = vmatpush1.bf16.msra.mxu0 0
      %941 = vmatprep.subr.bf16.mxu0 0
      %942 = vmatpush1.bf16.msra.mxu0 0
      %943 = vmatprep.mubr.bf16.mxu0 0
      %944 = vmatmul.mubr.bf16.gmra.mrb[0].mxu0 %v407
      %v945 = vpop.f32.mrb[0].mxu0
      %v946 = vadd.f32 0.0, %v945
      %v947 = vpop.f32.mrb[0].mxu0
      %v948 = vpop.f32.mrb[0].mxu0
      %v949 = vadd.f32 0.0, %v948
      %v950 = vpop.f32.mrb[0].mxu0
      %951 = vmatprep.mubr.bf16.mxu0 0
      %952 = vmatmul.mubr.bf16.gmra.mrb[0].mxu0 %v410
      %v953 = vpop.f32.mrb[0].mxu0
      %v954 = vadd.f32 0.0, %v953
      %v955 = vpop.f32.mrb[0].mxu0
      %v956 = vpop.f32.mrb[0].mxu0
      %v957 = vadd.f32 0.0, %v956
      %v958 = vpop.f32.mrb[0].mxu0
      %959 = vmatprep.mubr.bf16.mxu0 0
      %960 = vmatmul.mubr.bf16.gmra.mrb[0].mxu0 %v413
      %v961 = vpop.f32.mrb[0].mxu0
      %v962 = vadd.f32 0.0, %v961
      %v963 = vpop.f32.mrb[0].mxu0
      %v964 = vpop.f32.mrb[0].mxu0
      %v965 = vadd.f32 0.0, %v964
      %v966 = vpop.f32.mrb[0].mxu0
      %967 = vmatprep.mubr.bf16.mxu0 0
      %968 = vmatmul.mubr.bf16.gmra.mrb[0].mxu0 %v906
      %v969 = vpop.f32.mrb[0].mxu0
      %v970 = vadd.f32 0.0, %v969
      %v971 = vpop.f32.mrb[0].mxu0
      %v972 = vpop.f32.mrb[0].mxu0
      %v973 = vadd.f32 0.0, %v972
      %v974 = vpop.f32.mrb[0].mxu0
      %975 = vdwg.mxu0
      %v976 = vadd.f32 %v894, %v946
      %v977 = vadd.f32 %v895, %v949
      %v978 = vadd.f32 %v896, %v954
      %v979 = vadd.f32 %v897, %v957
      %v980 = vadd.f32 %v898, %v962
      %v981 = vadd.f32 %v899, %v965
      %v982 = vadd.f32 %v900, %v970
      %v983 = vadd.f32 %v901, %v973
      %v986 = vrot.slane %v259, 1
      %v987 = vrot.slane %v260, 1
      %v988 = vsel %vm282, %v986, %v987
      %v990 = vpack.c.bf16 %v988, %v708
      %s991 = scalar_lea.vmem %s1, 28
      %v992 = vld [vmem:[%s991] sm:$0xf]
      %v994 = vsel %vm321, %v990, 0
      %v997 = vsel %vm334, %v992, 0
      %999 = vmatprep.subr.bf16.mxu0 0
      %1000 = vmatpush1.bf16.msra.mxu0 %v997
      %1001 = vmatprep.subr.bf16.mxu0 0
      %1002 = vmatpush1.bf16.msra.mxu0 0
      %1003 = vmatprep.subr.bf16.mxu0 0
      %1004 = vmatpush1.bf16.msra.mxu0 0
      %1005 = vmatprep.subr.bf16.mxu0 0
      %1006 = vmatpush1.bf16.msra.mxu0 0
      %1007 = vmatprep.subr.bf16.mxu0 0
      %1008 = vmatpush1.bf16.msra.mxu0 0
      %1009 = vmatprep.subr.bf16.mxu0 0
      %1010 = vmatpush1.bf16.msra.mxu0 0
      %1011 = vmatprep.subr.bf16.mxu0 0
      %1012 = vmatpush1.bf16.msra.mxu0 0
      %1013 = vmatprep.subr.bf16.mxu0 0
      %1014 = vmatpush1.bf16.msra.mxu0 0
      %1015 = vmatprep.subr.bf16.mxu0 0
      %1016 = vmatpush1.bf16.msra.mxu0 0
      %1017 = vmatprep.subr.bf16.mxu0 0
      %1018 = vmatpush1.bf16.msra.mxu0 0
      %1019 = vmatprep.subr.bf16.mxu0 0
      %1020 = vmatpush1.bf16.msra.mxu0 0
      %1021 = vmatprep.subr.bf16.mxu0 0
      %1022 = vmatpush1.bf16.msra.mxu0 0
      %1023 = vmatprep.subr.bf16.mxu0 0
      %1024 = vmatpush1.bf16.msra.mxu0 0
      %1025 = vmatprep.subr.bf16.mxu0 0
      %1026 = vmatpush1.bf16.msra.mxu0 0
      %1027 = vmatprep.subr.bf16.mxu0 0
      %1028 = vmatpush1.bf16.msra.mxu0 0
      %1029 = vmatprep.subr.bf16.mxu0 0
      %1030 = vmatpush1.bf16.msra.mxu0 0
      %1031 = vmatprep.mubr.bf16.mxu0 0
      %1032 = vmatmul.mubr.bf16.gmra.mrb[0].mxu0 %v326
      %v1033 = vpop.f32.mrb[0].mxu0
      %v1034 = vadd.f32 0.0, %v1033
      %v1035 = vpop.f32.mrb[0].mxu0
      %v1036 = vpop.f32.mrb[0].mxu0
      %v1037 = vadd.f32 0.0, %v1036
      %v1038 = vpop.f32.mrb[0].mxu0
      %1039 = vmatprep.mubr.bf16.mxu0 0
      %1040 = vmatmul.mubr.bf16.gmra.mrb[0].mxu0 %v329
      %v1041 = vpop.f32.mrb[0].mxu0
      %v1042 = vadd.f32 0.0, %v1041
      %v1043 = vpop.f32.mrb[0].mxu0
      %v1044 = vpop.f32.mrb[0].mxu0
      %v1045 = vadd.f32 0.0, %v1044
      %v1046 = vpop.f32.mrb[0].mxu0
      %1047 = vmatprep.mubr.bf16.mxu0 0
      %1048 = vmatmul.mubr.bf16.gmra.mrb[0].mxu0 %v332
      %v1049 = vpop.f32.mrb[0].mxu0
      %v1050 = vadd.f32 0.0, %v1049
      %v1051 = vpop.f32.mrb[0].mxu0
      %v1052 = vpop.f32.mrb[0].mxu0
      %v1053 = vadd.f32 0.0, %v1052
      %v1054 = vpop.f32.mrb[0].mxu0
      %1055 = vmatprep.mubr.bf16.mxu0 0
      %1056 = vmatmul.mubr.bf16.gmra.mrb[0].mxu0 %v994
      %v1057 = vpop.f32.mrb[0].mxu0
      %v1058 = vadd.f32 0.0, %v1057
      %v1059 = vpop.f32.mrb[0].mxu0
      %v1060 = vpop.f32.mrb[0].mxu0
      %v1061 = vadd.f32 0.0, %v1060
      %v1062 = vpop.f32.mrb[0].mxu0
      %1063 = vdwg.mxu0
      %v1064 = vadd.f32 %v976, %v1034
      %v1065 = vadd.f32 %v977, %v1037
      %v1066 = vadd.f32 %v978, %v1042
      %v1067 = vadd.f32 %v979, %v1045
      %v1068 = vadd.f32 %v980, %v1050
      %v1069 = vadd.f32 %v981, %v1053
      %v1070 = vadd.f32 %v982, %v1058
      %v1071 = vadd.f32 %v983, %v1061
      %v1072 = vrot.slane %v259, 2
      %v1073 = vrot.slane %v260, 2
      %v1074 = vsel %vm483, %v1072, %v1073
      %v1076 = vpack.c.bf16 %v1074, %v806
      %s1077 = scalar_lea.vmem %s1, 32
      %v1078 = vld [vmem:[%s1077] sm:$0xf]
      %v1080 = vsel %vm321, %v1076, 0
      %v1083 = vsel %vm334, %v1078, 0
      %1085 = vmatprep.subr.bf16.mxu0 0
      %1086 = vmatpush1.bf16.msra.mxu0 %v1083
      %1087 = vmatprep.subr.bf16.mxu0 0
      %1088 = vmatpush1.bf16.msra.mxu0 0
      %1089 = vmatprep.subr.bf16.mxu0 0
      %1090 = vmatpush1.bf16.msra.mxu0 0
      %1091 = vmatprep.subr.bf16.mxu0 0
      %1092 = vmatpush1.bf16.msra.mxu0 0
      %1093 = vmatprep.subr.bf16.mxu0 0
      %1094 = vmatpush1.bf16.msra.mxu0 0
      %1095 = vmatprep.subr.bf16.mxu0 0
      %1096 = vmatpush1.bf16.msra.mxu0 0
      %1097 = vmatprep.subr.bf16.mxu0 0
      %1098 = vmatpush1.bf16.msra.mxu0 0
      %1099 = vmatprep.subr.bf16.mxu0 0
      %1100 = vmatpush1.bf16.msra.mxu0 0
      %1101 = vmatprep.subr.bf16.mxu0 0
      %1102 = vmatpush1.bf16.msra.mxu0 0
      %1103 = vmatprep.subr.bf16.mxu0 0
      %1104 = vmatpush1.bf16.msra.mxu0 0
      %1105 = vmatprep.subr.bf16.mxu0 0
      %1106 = vmatpush1.bf16.msra.mxu0 0
      %1107 = vmatprep.subr.bf16.mxu0 0
      %1108 = vmatpush1.bf16.msra.mxu0 0
      %1109 = vmatprep.subr.bf16.mxu0 0
      %1110 = vmatpush1.bf16.msra.mxu0 0
      %1111 = vmatprep.subr.bf16.mxu0 0
      %1112 = vmatpush1.bf16.msra.mxu0 0
      %1113 = vmatprep.subr.bf16.mxu0 0
      %1114 = vmatpush1.bf16.msra.mxu0 0
      %1115 = vmatprep.subr.bf16.mxu0 0
      %1116 = vmatpush1.bf16.msra.mxu0 0
      %1117 = vmatprep.mubr.bf16.mxu0 0
      %1118 = vmatmul.mubr.bf16.gmra.mrb[0].mxu0 %v526
      %v1119 = vpop.f32.mrb[0].mxu0
      %v1120 = vadd.f32 0.0, %v1119
      %v1121 = vpop.f32.mrb[0].mxu0
      %v1122 = vpop.f32.mrb[0].mxu0
      %v1123 = vadd.f32 0.0, %v1122
      %v1124 = vpop.f32.mrb[0].mxu0
      %1125 = vmatprep.mubr.bf16.mxu0 0
      %1126 = vmatmul.mubr.bf16.gmra.mrb[0].mxu0 %v529
      %v1127 = vpop.f32.mrb[0].mxu0
      %v1128 = vadd.f32 0.0, %v1127
      %v1129 = vpop.f32.mrb[0].mxu0
      %v1130 = vpop.f32.mrb[0].mxu0
      %v1131 = vadd.f32 0.0, %v1130
      %v1132 = vpop.f32.mrb[0].mxu0
      %1133 = vmatprep.mubr.bf16.mxu0 0
      %1134 = vmatmul.mubr.bf16.gmra.mrb[0].mxu0 %v532
      %v1135 = vpop.f32.mrb[0].mxu0
      %v1136 = vadd.f32 0.0, %v1135
      %v1137 = vpop.f32.mrb[0].mxu0
      %v1138 = vpop.f32.mrb[0].mxu0
      %v1139 = vadd.f32 0.0, %v1138
      %v1140 = vpop.f32.mrb[0].mxu0
      %1141 = vmatprep.mubr.bf16.mxu0 0
      %1142 = vmatmul.mubr.bf16.gmra.mrb[0].mxu0 %v1080
      %v1143 = vpop.f32.mrb[0].mxu0
      %v1144 = vadd.f32 0.0, %v1143
      %v1145 = vpop.f32.mrb[0].mxu0
      %v1146 = vpop.f32.mrb[0].mxu0
      %v1147 = vadd.f32 0.0, %v1146
      %v1148 = vpop.f32.mrb[0].mxu0
      %1149 = vdwg.mxu0
      %v1150 = vadd.f32 %v1064, %v1120
      %v1151 = vadd.f32 %v1065, %v1123
      %v1152 = vadd.f32 %v1066, %v1128
      %v1153 = vadd.f32 %v1067, %v1131
      %v1154 = vadd.f32 %v1068, %v1136
      %v1155 = vadd.f32 %v1069, %v1139
      %v1156 = vadd.f32 %v1070, %v1144
      %v1157 = vadd.f32 %v1071, %v1147
      %1158 = vst [vmem:[%s210] sm:$0xff] %v1150
      %1159 = vst [vmem:[%s210 + $0x8] sm:$0xff] %v1151
      %1160 = vst [vmem:[%s210 + $0x10] sm:$0xff] %v1152
      %1161 = vst [vmem:[%s210 + $0x18] sm:$0xff] %v1153
      %1162 = vst [vmem:[%s210 + $0x20] sm:$0xff] %v1154
      %1163 = vst [vmem:[%s210 + $0x28] sm:$0xff] %v1155
      %1164 = vst [vmem:[%s210 + $0x30] sm:$0xff] %v1156
      %1165 = vst [vmem:[%s210 + $0x38] sm:$0xff] %v1157
      %v1166 = vadd.f32 %v1150, %v1151
      %v1167 = vadd.f32 %v1166, %v1152
      %v1168 = vadd.f32 %v1167, %v1153
      %v1169 = vadd.f32 %v1168, %v1154
      %v1170 = vadd.f32 %v1169, %v1155
      %v1171 = vadd.f32 %v1170, %v1156
      %v1172 = vadd.f32 %v1171, %v1157
      %v1173 = vrot.slane %v1172, 4
      %v1174 = vadd.f32 %v1172, %v1173
      %v1175 = vrot.slane %v1174, 2
      %v1176 = vadd.f32 %v1174, %v1175
      %v1177 = vrot.slane %v1176, 1
      %v1178 = vadd.f32 %v1176, %v1177
      %v1179 = vmul.f32 %v1150, %v1150
      %v1180 = vmul.f32 %v1151, %v1151
      %v1181 = vmul.f32 %v1152, %v1152
      %v1182 = vmul.f32 %v1153, %v1153
      %v1183 = vmul.f32 %v1154, %v1154
      %v1184 = vmul.f32 %v1155, %v1155
      %v1185 = vmul.f32 %v1156, %v1156
      %v1186 = vmul.f32 %v1157, %v1157
      %v1187 = vadd.f32 %v1179, %v1180
      %v1188 = vadd.f32 %v1187, %v1181
      %v1189 = vadd.f32 %v1188, %v1182
      %v1190 = vadd.f32 %v1189, %v1183
      %v1191 = vadd.f32 %v1190, %v1184
      %v1192 = vadd.f32 %v1191, %v1185
      %v1193 = vadd.f32 %v1192, %v1186
      %v1194 = vrot.slane %v1193, 4
      %v1195 = vadd.f32 %v1193, %v1194
      %v1196 = vrot.slane %v1195, 2
      %v1197 = vadd.f32 %v1195, %v1196
      %v1198 = vrot.slane %v1197, 1
      %v1199 = vadd.f32 %v1197, %v1198
      %1200 = vst [vmem:[%s215] sm:$0xff] %v1178
      %1201 = vst [vmem:[%s219] sm:$0xff] %v1199
      %s1202 = smul.u32 8, %s16
      %p1203 = scmp.lt.s32.totalorder %s1202, 15
      %s1204 = scalar_select %p1203, %s1202, 15
      %s1205 = smul.addr %s1204, 8
      %s1206 = scalar_lea.vmem %s2, %s1205
      %p1207 = scmp.lt.s32.totalorder %s16, 1
      %s1208 = scalar_select %p1207, %s16, 1
      %s1209 = smul.addr %s1208, 8
      %s1210 = scalar_lea.vmem %s3, %s1209
      %p1211 = scmp.lt.s32.totalorder %s16, 1
      %s1212 = scalar_select %p1211, %s16, 1
      %s1213 = smul.addr %s1212, 8
      %s1214 = scalar_lea.vmem %s4, %s1213
      // Predicated region
      $region29: #{_lambda_.8} parent=27 // pred_check
        %p1215 = pneg %p81
      $region30: #{_lambda_.8} parent=27 // pred_check_branch
        %1217 = sbr.rel (%p1215) target = $region32
      $region31: #{_lambda_.8} parent=27 // pred_region
        %s1218 = smul.u32 8, %s16
      $region32: #{_lambda_.8} parent=27 // pred_fallthru
        _
      // Predicated region
      $region33: #{_lambda_.8} parent=27 // pred_check
        %p1219 = pneg %p107
      $region34: #{_lambda_.8} parent=27 // pred_check_branch
        %1221 = sbr.rel (%p1219) target = $region36
      $region35: #{_lambda_.8} parent=27 // pred_region
        _
      $region36: #{_lambda_.8} parent=27 // pred_fallthru
        _
      // Predicated region
      $region37: #{_lambda_.8} parent=27 // pred_check
        %p1222 = pneg %p133
      $region38: #{_lambda_.8} parent=27 // pred_check_branch
        %1224 = sbr.rel (%p1222) target = $region40
      $region39: #{_lambda_.8} parent=27 // pred_region
        _
      $region40: #{_lambda_.8} parent=27 // pred_fallthru
        _
    $region28: #{_lambda_.8} parent=5 // pred_fallthru
      _
    %p1225 = scmp.le.s32.totalorder 2, %s11
    // Predicated region
    $region41: #{_lambda_.8} parent=5 // pred_check
      %p1226 = pneg %p1225
    $region42: #{_lambda_.8} parent=5 // pred_check_branch
      %1228 = sbr.rel (%p1226) target = $region44
    $region43: #{_lambda_.8} parent=5 // pred_region
      %s1229 = ssub.s32 %s11, 2
      // Predicated region
      $region45: #{_lambda_.8} parent=43 // pred_check
        %p1230 = pneg %p87
      $region46: #{_lambda_.8} parent=43 // pred_check_branch
        %1232 = sbr.rel (%p1230) target = $region48
      $region47: #{_lambda_.8} parent=43 // pred_region
        %s1233 = smul.u32 8, %s17
        %p1234 = scmp.lt.s32.totalorder %s1233, 15
        %s1235 = scalar_select %p1234, %s1233, 15
        %s1236 = smul.addr %s1235, 8
        %s1237 = scalar_lea.vmem %s2, %s1236
      $region48: #{_lambda_.8} parent=43 // pred_fallthru
        _
      // Predicated region
      $region49: #{_lambda_.8} parent=43 // pred_check
        %p1238 = pneg %p113
      $region50: #{_lambda_.8} parent=43 // pred_check_branch
        %1240 = sbr.rel (%p1238) target = $region52
      $region51: #{_lambda_.8} parent=43 // pred_region
        %p1241 = scmp.lt.s32.totalorder %s17, 1
        %s1242 = scalar_select %p1241, %s17, 1
        %s1243 = smul.addr %s1242, 8
        %s1244 = scalar_lea.vmem %s3, %s1243
      $region52: #{_lambda_.8} parent=43 // pred_fallthru
        _
      // Predicated region
      $region53: #{_lambda_.8} parent=43 // pred_check
        %p1245 = pneg %p139
      $region54: #{_lambda_.8} parent=43 // pred_check_branch
        %1247 = sbr.rel (%p1245) target = $region56
      $region55: #{_lambda_.8} parent=43 // pred_region
        %p1248 = scmp.lt.s32.totalorder %s17, 1
        %s1249 = scalar_select %p1248, %s17, 1
        %s1250 = smul.addr %s1249, 8
        %s1251 = scalar_lea.vmem %s4, %s1250
      $region56: #{_lambda_.8} parent=43 // pred_fallthru
        _
    $region44: #{_lambda_.8} parent=5 // pred_fallthru
      _
  $region6: #{_lambda_.8} parent=0 // loop_footer
    %s15 = sadd.s32 1, %s11
  $region7: #{_lambda_.8} parent=0 // loop_footer_branch
    %10 = sbr.rel target = $region3
  $region8: #{_lambda_.8} parent=0 // loop_exit
    _

</llo_original>
